<compile_context>
chip_gen: v7x
topology: tpu7x:2x2x1
jax: 0.10.0
libtpu: 0.0.40
codegen_flags: <defaults>
</compile_context>

<pallas_src>
import math
from functools import partial

import jax
import jax.numpy as jnp
from jax.experimental import pallas as pl
from jax.experimental.pallas import tpu as pltpu


def _elu_f32(v):
    # ELU(alpha=1) in f32; min() keeps exp() bounded on the unselected lanes.
    # (jnp.expm1 would be marginally more accurate near 0; exp() is kept for
    #  guaranteed Mosaic lowering.)
    return jnp.where(v > 0.0, v, jnp.exp(jnp.minimum(v, 0.0)) - 1.0)


# ---------------------------------------------------------------------------
# Fused DownModule kernel: conv3x3(valid) -> ELU -> conv3x3(valid) -> ELU
#                          -> MaxPool2d(2,2); one image per grid step.
# ---------------------------------------------------------------------------
def _down_module_kernel(x_ref, wa_ref, ba_ref, wb_ref, bb_ref, o_ref,
                        act_ref, cb_ref, *, W, Hp, Wp):
    """pool(ELU(convB(ELU(convA(x))))) for one image, flat (row, chan) layout.

    Refs (batch dim squeezed by the BlockSpecs):
      x_ref  : (H*W, Cin)      bf16  input image, NHWC flattened over (H, W)
      wa_ref : (Cin,  9*Cout)  bf16  conv-A weights, all 9 taps packed wide
      ba_ref : (1, Cout)       f32
      wb_ref : (Cout, 9*Cout)  bf16  conv-B weights, all 9 taps packed wide
      bb_ref : (1, Cout)       f32
      o_ref  : (Hp, Wp, Cout)  f32   pooled output
      act_ref: (HoA*W, Cout)   bf16  scratch: ELU(convA(x)), full-width rows
      cb_ref : (LB, Cout)      f32   scratch: convB pre-activation (flat)

    Flat layout: position f = ho*W + wo keeps the FULL input width W per row;
    the (at most 2) right-most columns of each row are garbage but are never
    read back into a valid output, so no reshapes / transposes are needed.
    """
    HW = x_ref.shape[0]
    Cout = ba_ref.shape[1]
    H = HW // W
    HoA = H - 2                      # conv-A rows (valid 3x3)
    HoB = H - 4                      # conv-B rows
    LA = HoA * W - 2                 # computable conv-A flat positions
    LB = HoB * W - 4                 # computable conv-B flat positions

    # ---- conv A: one whole-image matmul + 9 bulk shifted adds --------------
    pa = jnp.dot(x_ref[...], wa_ref[...], preferred_element_type=jnp.float32)
    acc_a = jnp.broadcast_to(ba_ref[...], (LA, Cout))     # bias folded in
    for t in range(9):
        kh, kw = divmod(t, 3)
        d = kh * W + kw
        acc_a = acc_a + pa[d:d + LA, t * Cout:(t + 1) * Cout]
    act_ref[0:LA, :] = _elu_f32(acc_a).astype(act_ref.dtype)
    # zero the 2 uncomputed tail rows so conv-B's matmul sees finite data
    act_ref[LA:, :] = jnp.zeros((HoA * W - LA, Cout), act_ref.dtype)

    # ---- conv B: same scheme over the activation scratch --------------------
    pb = jnp.dot(act_ref[...], wb_ref[...], preferred_element_type=jnp.float32)
    acc_b = pb[0:LB, 0:Cout]                               # tap (kh=0, kw=0)
    for t in range(1, 9):
        kh, kw = divmod(t, 3)
        d = kh * W + kw
        acc_b = acc_b + pb[d:d + LB, t * Cout:(t + 1) * Cout]
    cb_ref[...] = acc_b            # pre-bias / pre-ELU: pool first (monotone)

    # ---- 2x2 / stride-2 max pool, then bias + ELU; one row store per hp -----
    bb_row = jnp.broadcast_to(bb_ref[...], (Wp, Cout))     # hoisted
    def pool_row(hp, carry):
        base = 2 * hp * W
        if (2 * W) % 8 == 0:
            base = pl.multiple_of(base, 8)
        p00 = cb_ref[pl.ds(base, Wp, stride=2), :]
        p01 = cb_ref[pl.ds(base + 1, Wp, stride=2), :]
        p10 = cb_ref[pl.ds(base + W, Wp, stride=2), :]
        p11 = cb_ref[pl.ds(base + W + 1, Wp, stride=2), :]
        pooled = jnp.maximum(jnp.maximum(p00, p01), jnp.maximum(p10, p11))
        o_ref[hp, :, :] = _elu_f32(pooled + bb_row).astype(o_ref.dtype)
        return carry
    jax.lax.fori_loop(0, Hp, pool_row, 0, unroll=True)


# ---------------------------------------------------------------------------
# VMEM budget estimate (explicit limit per review; capped at 64 MiB for v7x)
# ---------------------------------------------------------------------------
def _rup(a, b):
    return -(-a // b) * b


def _vmem_tile_bytes(rows, cols, itemsize):
    sub = 8 * (4 // itemsize)                 # 8 sublanes f32 / 16 bf16 per tile
    return _rup(max(rows, 1), sub) * _rup(max(cols, 1), 128) * itemsize


def _vmem_limit_bytes(H, W, Cin, Cout, Hp, Wp):
    HoA = H - 2
    wide = 9 * Cout
    est = (
        2 * _vmem_tile_bytes(H * W, Cin, 2)                        # input x2
        + 2 * (_vmem_tile_bytes(Cin, wide, 2)
               + _vmem_tile_bytes(Cout, wide, 2))                  # weights x2
        + 4 * _vmem_tile_bytes(1, Cout, 4)                         # biases
        + 2 * Hp * _vmem_tile_bytes(Wp, Cout, 4)                   # output x2
        + _vmem_tile_bytes(HoA * W, Cout, 2)                       # act scratch
        + _vmem_tile_bytes((H - 4) * W, Cout, 4)                   # convB scratch
        + 2 * _vmem_tile_bytes(H * W, wide, 4)                     # P_A + acc spills
        + 2 * _vmem_tile_bytes(HoA * W, wide, 4)                   # P_B + acc spills
    )
    return int(min(64 * 1024 * 1024, max(16 * 1024 * 1024, 2 * est)))


# ---------------------------------------------------------------------------
# Wrapper
# ---------------------------------------------------------------------------
def down_module_forward(params, x_nchw):
    """DownModule forward (NCHW in / NCHW out); whole module in one pallas_call."""
    wa, ba = params["convA"]          # (3, 3, Cin,  Cout) HWIO, (Cout,)
    wb, bb = params["convB"]          # (3, 3, Cout, Cout) HWIO, (Cout,)
    N, Cin, H, W = x_nchw.shape
    Cout = wa.shape[-1]
    HoA, WoA = H - 2, W - 2
    HoB, WoB = HoA - 2, WoA - 2
    if HoB < 2 or WoB < 2 or HoB % 2 or WoB % 2:
        # TODO(synk): odd / too-small post-conv spatial sizes (MaxPool2d floor)
        # are not handled by the fused kernel.
        raise NotImplementedError("post-conv spatial dims must be even and >= 2")
    Hp, Wp = HoB // 2, WoB // 2
    LB = HoB * W - 4

    # NCHW -> NHWC -> flat (H*W, Cin); bf16 matmul operands.  The transpose is
    # unavoidable for NCHW producers; bf16 halves that HBM copy and the
    # kernel's input DMA.  f32 accumulation / epilogue happens in-kernel.
    x = jnp.transpose(x_nchw, (0, 2, 3, 1)).astype(jnp.bfloat16)
    x = x.reshape(N, H * W, Cin)

    # Wide weight packing: (kh, kw, ci, co) -> (ci, (kh*3 + kw)*Cout + co), so
    # ONE matmul per conv produces all 9 tap contributions side by side.
    wa_wide = jnp.transpose(wa, (2, 0, 1, 3)).reshape(Cin, 9 * Cout).astype(jnp.bfloat16)
    wb_wide = jnp.transpose(wb, (2, 0, 1, 3)).reshape(Cout, 9 * Cout).astype(jnp.bfloat16)
    ba2 = ba.reshape(1, Cout).astype(jnp.float32)
    bb2 = bb.reshape(1, Cout).astype(jnp.float32)

    kernel = partial(_down_module_kernel, W=W, Hp=Hp, Wp=Wp)

    out_nhwc = pl.pallas_call(
        kernel,
        out_shape=jax.ShapeDtypeStruct((N, Hp, Wp, Cout), jnp.float32),
        grid_spec=pltpu.PrefetchScalarGridSpec(
            num_scalar_prefetch=0,
            grid=(N,),                          # 1 image / step; >= 2 steps -> both v7x TCs
            in_specs=[
                pl.BlockSpec((None, H * W, Cin), lambda n: (n, 0, 0)),
                pl.BlockSpec((Cin, 9 * Cout), lambda n: (0, 0)),
                pl.BlockSpec((1, Cout), lambda n: (0, 0)),
                pl.BlockSpec((Cout, 9 * Cout), lambda n: (0, 0)),
                pl.BlockSpec((1, Cout), lambda n: (0, 0)),
            ],
            out_specs=pl.BlockSpec((None, Hp, Wp, Cout), lambda n: (n, 0, 0, 0)),
            scratch_shapes=[
                pltpu.VMEM((HoA * W, Cout), jnp.bfloat16),   # ELU(convA), flat
                pltpu.VMEM((LB, Cout), jnp.float32),         # convB pre-activation
            ],
        ),
        compiler_params=pltpu.CompilerParams(
            dimension_semantics=("parallel",),
            vmem_limit_bytes=_vmem_limit_bytes(H, W, Cin, Cout, Hp, Wp),
        ),
    )(x, wa_wide, ba2, wb_wide, bb2)

    return jnp.transpose(out_nhwc, (0, 3, 1, 2))             # NHWC -> NCHW


# ---------------------------------------------------------------------------
# Pure-JAX reference (mirrors the kernel's bf16 operand rounding)
# ---------------------------------------------------------------------------
def down_module_ref(params, x_nchw):
    wa, ba = params["convA"]
    wb, bb = params["convB"]
    bf = lambda a: a.astype(jnp.bfloat16).astype(jnp.float32)
    dn = ("NHWC", "HWIO", "NHWC")
    x = bf(jnp.transpose(x_nchw, (0, 2, 3, 1)))
    h = jax.lax.conv_general_dilated(x, bf(wa), (1, 1), "VALID",
                                     dimension_numbers=dn,
                                     precision=jax.lax.Precision.HIGHEST) + ba
    h = _elu_f32(h)
    h = jax.lax.conv_general_dilated(bf(h), bf(wb), (1, 1), "VALID",
                                     dimension_numbers=dn,
                                     precision=jax.lax.Precision.HIGHEST) + bb
    h = _elu_f32(h)
    h = jax.lax.reduce_window(h, -jnp.inf, jax.lax.max,
                              (1, 2, 2, 1), (1, 2, 2, 1), "VALID")
    return jnp.transpose(h, (0, 3, 1, 2))


if __name__ == "__main__":
    key = jax.random.PRNGKey(0)
    kwa, kba, kwb, kbb, kx = jax.random.split(key, 5)

    N, in_dims, out_dims, H, W = 2, 4, 16, 16, 16
    params = {
        "convA": (
            math.sqrt(2.0 / (9 * in_dims))
            * jax.random.normal(kwa, (3, 3, in_dims, out_dims), jnp.float32),
            0.05 * jax.random.normal(kba, (out_dims,), jnp.float32),
        ),
        "convB": (
            math.sqrt(2.0 / (9 * out_dims))
            * jax.random.normal(kwb, (3, 3, out_dims, out_dims), jnp.float32),
            0.05 * jax.random.normal(kbb, (out_dims,), jnp.float32),
        ),
    }
    x = jax.random.normal(kx, (N, in_dims, H, W), dtype=jnp.float32)

    out = jax.block_until_ready(jax.jit(down_module_forward)(params, x))
    assert out.shape == (N, out_dims, (H - 4) // 2, (W - 4) // 2), out.shape
    assert bool(jnp.all(jnp.isfinite(out)))

    ref = jax.block_until_ready(down_module_ref(params, x))
    max_err = float(jnp.max(jnp.abs(out - ref)))
    assert max_err < 3e-2, max_err

    print("KERNEL_OK")
</pallas_src>

<mosaic_0001>
module attributes {stable_mosaic.version = 11 : i64} {
  func.func @_down_module_kernel(%arg0: i32, %arg1: memref<1x256x4xbf16, #tpu.memory_space<vmem>>, %arg2: memref<4x144xbf16, #tpu.memory_space<vmem>>, %arg3: memref<1x16xf32, #tpu.memory_space<vmem>>, %arg4: memref<16x144xbf16, #tpu.memory_space<vmem>>, %arg5: memref<1x16xf32, #tpu.memory_space<vmem>>, %arg6: memref<1x6x6x16xf32, #tpu.memory_space<vmem>>, %arg7: memref<224x16xbf16, #tpu.memory_space<vmem>>, %arg8: memref<188x16xf32, #tpu.memory_space<vmem>>) attributes {dimension_semantics = [#tpu.dimension_semantics<parallel>], iteration_bounds = array<i64: 2>, scalar_prefetch = 0 : i64, scratch_operands = 2 : i64, tpu.core_type = #tpu.core_type<tc>, window_params = [{transform_indices = @transform_0, window_bounds = array<i64: 1, 256, 4>}, {pipeline_mode = #tpu.pipeline_mode<synchronous>, transform_indices = @transform_1, window_bounds = array<i64: 4, 144>}, {pipeline_mode = #tpu.pipeline_mode<synchronous>, transform_indices = @transform_2, window_bounds = array<i64: 1, 16>}, {pipeline_mode = #tpu.pipeline_mode<synchronous>, transform_indices = @transform_3, window_bounds = array<i64: 16, 144>}, {pipeline_mode = #tpu.pipeline_mode<synchronous>, transform_indices = @transform_4, window_bounds = array<i64: 1, 16>}, {transform_indices = @transform_5, window_bounds = array<i64: 1, 6, 6, 16>}]} {
    %c0 = arith.constant 0 : index
    %c0_0 = arith.constant 0 : index
    %c0_1 = arith.constant 0 : index
    %0 = vector.load %arg1[%c0, %c0_0, %c0_1] : memref<1x256x4xbf16, #tpu.memory_space<vmem>>, vector<1x256x4xbf16>
    %1 = vector.shape_cast %0 : vector<1x256x4xbf16> to vector<256x4xbf16>
    %c0_2 = arith.constant 0 : index
    %c0_3 = arith.constant 0 : index
    %2 = vector.load %arg2[%c0_2, %c0_3] : memref<4x144xbf16, #tpu.memory_space<vmem>>, vector<4x144xbf16>
    %cst = arith.constant dense<0.000000e+00> : vector<256x144xf32>
    %3 = tpu.matmul %1, %2, %cst {dimension_numbers = #tpu.dot_dimension_numbers<[1], [0], [0], [1], [0, 0, 1, 1], [], []>} : vector<256x4xbf16>, vector<4x144xbf16>, vector<256x144xf32> -> vector<256x144xf32>
    %c0_4 = arith.constant 0 : index
    %c0_5 = arith.constant 0 : index
    %4 = vector.load %arg3[%c0_4, %c0_5] : memref<1x16xf32, #tpu.memory_space<vmem>>, vector<1x16xf32>
    %5 = vector.shape_cast %4 : vector<1x16xf32> to vector<1x16xf32>
    %6 = vector.broadcast %5 : vector<1x16xf32> to vector<222x16xf32>
    %7 = vector.extract_strided_slice %3 {offsets = [0, 0], sizes = [222, 16], strides = [1, 1]} : vector<256x144xf32> to vector<222x16xf32>
    %8 = arith.addf %6, %7 : vector<222x16xf32>
    %9 = vector.extract_strided_slice %3 {offsets = [1, 16], sizes = [222, 16], strides = [1, 1]} : vector<256x144xf32> to vector<222x16xf32>
    %10 = arith.addf %8, %9 : vector<222x16xf32>
    %11 = vector.extract_strided_slice %3 {offsets = [2, 32], sizes = [222, 16], strides = [1, 1]} : vector<256x144xf32> to vector<222x16xf32>
    %12 = arith.addf %10, %11 : vector<222x16xf32>
    %13 = vector.extract_strided_slice %3 {offsets = [16, 48], sizes = [222, 16], strides = [1, 1]} : vector<256x144xf32> to vector<222x16xf32>
    %14 = arith.addf %12, %13 : vector<222x16xf32>
    %15 = vector.extract_strided_slice %3 {offsets = [17, 64], sizes = [222, 16], strides = [1, 1]} : vector<256x144xf32> to vector<222x16xf32>
    %16 = arith.addf %14, %15 : vector<222x16xf32>
    %17 = vector.extract_strided_slice %3 {offsets = [18, 80], sizes = [222, 16], strides = [1, 1]} : vector<256x144xf32> to vector<222x16xf32>
    %18 = arith.addf %16, %17 : vector<222x16xf32>
    %19 = vector.extract_strided_slice %3 {offsets = [32, 96], sizes = [222, 16], strides = [1, 1]} : vector<256x144xf32> to vector<222x16xf32>
    %20 = arith.addf %18, %19 : vector<222x16xf32>
    %21 = vector.extract_strided_slice %3 {offsets = [33, 112], sizes = [222, 16], strides = [1, 1]} : vector<256x144xf32> to vector<222x16xf32>
    %22 = arith.addf %20, %21 : vector<222x16xf32>
    %23 = vector.extract_strided_slice %3 {offsets = [34, 128], sizes = [222, 16], strides = [1, 1]} : vector<256x144xf32> to vector<222x16xf32>
    %24 = arith.addf %22, %23 : vector<222x16xf32>
    %cst_6 = arith.constant 0.000000e+00 : f32
    %25 = vector.broadcast %cst_6 : f32 to vector<222x16xf32>
    %26 = arith.cmpf ogt, %24, %25 : vector<222x16xf32>
    %cst_7 = arith.constant 0.000000e+00 : f32
    %27 = vector.broadcast %cst_7 : f32 to vector<222x16xf32>
    %28 = arith.minimumf %24, %27 : vector<222x16xf32>
    %29 = math.exp %28 : vector<222x16xf32>
    %cst_8 = arith.constant 1.000000e+00 : f32
    %30 = vector.broadcast %cst_8 : f32 to vector<222x16xf32>
    %31 = arith.subf %29, %30 : vector<222x16xf32>
    %32 = arith.select %26, %24, %31 : vector<222x16xi1>, vector<222x16xf32>
    %33 = arith.truncf %32 : vector<222x16xf32> to vector<222x16xbf16>
    %c0_9 = arith.constant 0 : index
    %c0_10 = arith.constant 0 : index
    %34 = vector.load %arg7[%c0_9, %c0_10] : memref<224x16xbf16, #tpu.memory_space<vmem>>, vector<222x16xbf16>
    tpu.vector_store %arg7[%c0_9, %c0_10], %33 {strides = array<i32>} : memref<224x16xbf16, #tpu.memory_space<vmem>>, vector<222x16xbf16>,
    %cst_11 = arith.constant 0.000000e+00 : bf16
    %35 = vector.broadcast %cst_11 : bf16 to vector<2x16xbf16>
    %c222 = arith.constant 222 : index
    %c0_12 = arith.constant 0 : index
    %36 = vector.load %arg7[%c222, %c0_12] : memref<224x16xbf16, #tpu.memory_space<vmem>>, vector<2x16xbf16>
    tpu.vector_store %arg7[%c222, %c0_12], %35 {strides = array<i32>} : memref<224x16xbf16, #tpu.memory_space<vmem>>, vector<2x16xbf16>,
    %c0_13 = arith.constant 0 : index
    %c0_14 = arith.constant 0 : index
    %37 = vector.load %arg7[%c0_13, %c0_14] : memref<224x16xbf16, #tpu.memory_space<vmem>>, vector<224x16xbf16>
    %c0_15 = arith.constant 0 : index
    %c0_16 = arith.constant 0 : index
    %38 = vector.load %arg4[%c0_15, %c0_16] : memref<16x144xbf16, #tpu.memory_space<vmem>>, vector<16x144xbf16>
    %cst_17 = arith.constant dense<0.000000e+00> : vector<224x144xf32>
    %39 = tpu.matmul %37, %38, %cst_17 {dimension_numbers = #tpu.dot_dimension_numbers<[1], [0], [0], [1], [0, 0, 1, 1], [], []>} : vector<224x16xbf16>, vector<16x144xbf16>, vector<224x144xf32> -> vector<224x144xf32>
    %40 = vector.extract_strided_slice %39 {offsets = [0, 0], sizes = [188, 16], strides = [1, 1]} : vector<224x144xf32> to vector<188x16xf32>
    %41 = vector.extract_strided_slice %39 {offsets = [1, 16], sizes = [188, 16], strides = [1, 1]} : vector<224x144xf32> to vector<188x16xf32>
    %42 = arith.addf %40, %41 : vector<188x16xf32>
    %43 = vector.extract_strided_slice %39 {offsets = [2, 32], sizes = [188, 16], strides = [1, 1]} : vector<224x144xf32> to vector<188x16xf32>
    %44 = arith.addf %42, %43 : vector<188x16xf32>
    %45 = vector.extract_strided_slice %39 {offsets = [16, 48], sizes = [188, 16], strides = [1, 1]} : vector<224x144xf32> to vector<188x16xf32>
    %46 = arith.addf %44, %45 : vector<188x16xf32>
    %47 = vector.extract_strided_slice %39 {offsets = [17, 64], sizes = [188, 16], strides = [1, 1]} : vector<224x144xf32> to vector<188x16xf32>
    %48 = arith.addf %46, %47 : vector<188x16xf32>
    %49 = vector.extract_strided_slice %39 {offsets = [18, 80], sizes = [188, 16], strides = [1, 1]} : vector<224x144xf32> to vector<188x16xf32>
    %50 = arith.addf %48, %49 : vector<188x16xf32>
    %51 = vector.extract_strided_slice %39 {offsets = [32, 96], sizes = [188, 16], strides = [1, 1]} : vector<224x144xf32> to vector<188x16xf32>
    %52 = arith.addf %50, %51 : vector<188x16xf32>
    %53 = vector.extract_strided_slice %39 {offsets = [33, 112], sizes = [188, 16], strides = [1, 1]} : vector<224x144xf32> to vector<188x16xf32>
    %54 = arith.addf %52, %53 : vector<188x16xf32>
    %55 = vector.extract_strided_slice %39 {offsets = [34, 128], sizes = [188, 16], strides = [1, 1]} : vector<224x144xf32> to vector<188x16xf32>
    %56 = arith.addf %54, %55 : vector<188x16xf32>
    %c0_18 = arith.constant 0 : index
    %c0_19 = arith.constant 0 : index
    %57 = vector.load %arg8[%c0_18, %c0_19] : memref<188x16xf32, #tpu.memory_space<vmem>>, vector<188x16xf32>
    tpu.vector_store %arg8[%c0_18, %c0_19], %56 {strides = array<i32>} : memref<188x16xf32, #tpu.memory_space<vmem>>, vector<188x16xf32>,
    %c0_20 = arith.constant 0 : index
    %c0_21 = arith.constant 0 : index
    %58 = vector.load %arg5[%c0_20, %c0_21] : memref<1x16xf32, #tpu.memory_space<vmem>>, vector<1x16xf32>
    %59 = vector.shape_cast %58 : vector<1x16xf32> to vector<1x16xf32>
    %60 = vector.broadcast %59 : vector<1x16xf32> to vector<6x16xf32>
    %c0_i32 = arith.constant 0 : i32
    %c2_i32 = arith.constant 2 : i32
    %61 = arith.muli %c2_i32, %c0_i32 : i32
    %c16_i32 = arith.constant 16 : i32
    %62 = arith.muli %61, %c16_i32 : i32
    %63 = tpu.assume_multiple %62, 8 : i32
    %64 = arith.index_cast %63 : i32 to index
    %c0_22 = arith.constant 0 : index
    %65 = tpu.strided_load %arg8[%64, %c0_22] {strides = array<i32: 2, 1>} : memref<188x16xf32, #tpu.memory_space<vmem>>, vector<6x16xf32>
    %c1_i32 = arith.constant 1 : i32
    %66 = arith.addi %63, %c1_i32 : i32
    %67 = arith.index_cast %66 : i32 to index
    %c0_23 = arith.constant 0 : index
    %68 = tpu.strided_load %arg8[%67, %c0_23] {strides = array<i32: 2, 1>} : memref<188x16xf32, #tpu.memory_space<vmem>>, vector<6x16xf32>
    %c16_i32_24 = arith.constant 16 : i32
    %69 = arith.addi %63, %c16_i32_24 : i32
    %70 = arith.index_cast %69 : i32 to index
    %c0_25 = arith.constant 0 : index
    %71 = tpu.strided_load %arg8[%70, %c0_25] {strides = array<i32: 2, 1>} : memref<188x16xf32, #tpu.memory_space<vmem>>, vector<6x16xf32>
    %c16_i32_26 = arith.constant 16 : i32
    %72 = arith.addi %63, %c16_i32_26 : i32
    %c1_i32_27 = arith.constant 1 : i32
    %73 = arith.addi %72, %c1_i32_27 : i32
    %74 = arith.index_cast %73 : i32 to index
    %c0_28 = arith.constant 0 : index
    %75 = tpu.strided_load %arg8[%74, %c0_28] {strides = array<i32: 2, 1>} : memref<188x16xf32, #tpu.memory_space<vmem>>, vector<6x16xf32>
    %76 = arith.maximumf %65, %68 : vector<6x16xf32>
    %77 = arith.maximumf %71, %75 : vector<6x16xf32>
    %78 = arith.maximumf %76, %77 : vector<6x16xf32>
    %79 = arith.addf %78, %60 : vector<6x16xf32>
    %cst_29 = arith.constant 0.000000e+00 : f32
    %80 = vector.broadcast %cst_29 : f32 to vector<6x16xf32>
    %81 = arith.cmpf ogt, %79, %80 : vector<6x16xf32>
    %cst_30 = arith.constant 0.000000e+00 : f32
    %82 = vector.broadcast %cst_30 : f32 to vector<6x16xf32>
    %83 = arith.minimumf %79, %82 : vector<6x16xf32>
    %84 = math.exp %83 : vector<6x16xf32>
    %cst_31 = arith.constant 1.000000e+00 : f32
    %85 = vector.broadcast %cst_31 : f32 to vector<6x16xf32>
    %86 = arith.subf %84, %85 : vector<6x16xf32>
    %87 = arith.select %81, %79, %86 : vector<6x16xi1>, vector<6x16xf32>
    %c0_32 = arith.constant 0 : index
    %88 = arith.index_cast %c0_i32 : i32 to index
    %c0_33 = arith.constant 0 : index
    %c0_34 = arith.constant 0 : index
    %89 = vector.load %arg6[%c0_32, %88, %c0_33, %c0_34] : memref<1x6x6x16xf32, #tpu.memory_space<vmem>>, vector<1x1x6x16xf32>
    %90 = vector.shape_cast %89 : vector<1x1x6x16xf32> to vector<6x16xf32>
    %91 = vector.shape_cast %87 : vector<6x16xf32> to vector<1x1x6x16xf32>
    tpu.vector_store %arg6[%c0_32, %88, %c0_33, %c0_34], %91 {strides = array<i32>} : memref<1x6x6x16xf32, #tpu.memory_space<vmem>>, vector<1x1x6x16xf32>,
    %c1_i32_35 = arith.constant 1 : i32
    %c2_i32_36 = arith.constant 2 : i32
    %92 = arith.muli %c2_i32_36, %c1_i32_35 : i32
    %c16_i32_37 = arith.constant 16 : i32
    %93 = arith.muli %92, %c16_i32_37 : i32
    %94 = tpu.assume_multiple %93, 8 : i32
    %95 = arith.index_cast %94 : i32 to index
    %c0_38 = arith.constant 0 : index
    %96 = tpu.strided_load %arg8[%95, %c0_38] {strides = array<i32: 2, 1>} : memref<188x16xf32, #tpu.memory_space<vmem>>, vector<6x16xf32>
    %c1_i32_39 = arith.constant 1 : i32
    %97 = arith.addi %94, %c1_i32_39 : i32
    %98 = arith.index_cast %97 : i32 to index
    %c0_40 = arith.constant 0 : index
    %99 = tpu.strided_load %arg8[%98, %c0_40] {strides = array<i32: 2, 1>} : memref<188x16xf32, #tpu.memory_space<vmem>>, vector<6x16xf32>
    %c16_i32_41 = arith.constant 16 : i32
    %100 = arith.addi %94, %c16_i32_41 : i32
    %101 = arith.index_cast %100 : i32 to index
    %c0_42 = arith.constant 0 : index
    %102 = tpu.strided_load %arg8[%101, %c0_42] {strides = array<i32: 2, 1>} : memref<188x16xf32, #tpu.memory_space<vmem>>, vector<6x16xf32>
    %c16_i32_43 = arith.constant 16 : i32
    %103 = arith.addi %94, %c16_i32_43 : i32
    %c1_i32_44 = arith.constant 1 : i32
    %104 = arith.addi %103, %c1_i32_44 : i32
    %105 = arith.index_cast %104 : i32 to index
    %c0_45 = arith.constant 0 : index
    %106 = tpu.strided_load %arg8[%105, %c0_45] {strides = array<i32: 2, 1>} : memref<188x16xf32, #tpu.memory_space<vmem>>, vector<6x16xf32>
    %107 = arith.maximumf %96, %99 : vector<6x16xf32>
    %108 = arith.maximumf %102, %106 : vector<6x16xf32>
    %109 = arith.maximumf %107, %108 : vector<6x16xf32>
    %110 = arith.addf %109, %60 : vector<6x16xf32>
    %cst_46 = arith.constant 0.000000e+00 : f32
    %111 = vector.broadcast %cst_46 : f32 to vector<6x16xf32>
    %112 = arith.cmpf ogt, %110, %111 : vector<6x16xf32>
    %cst_47 = arith.constant 0.000000e+00 : f32
    %113 = vector.broadcast %cst_47 : f32 to vector<6x16xf32>
    %114 = arith.minimumf %110, %113 : vector<6x16xf32>
    %115 = math.exp %114 : vector<6x16xf32>
    %cst_48 = arith.constant 1.000000e+00 : f32
    %116 = vector.broadcast %cst_48 : f32 to vector<6x16xf32>
    %117 = arith.subf %115, %116 : vector<6x16xf32>
    %118 = arith.select %112, %110, %117 : vector<6x16xi1>, vector<6x16xf32>
    %c0_49 = arith.constant 0 : index
    %119 = arith.index_cast %c1_i32_35 : i32 to index
    %c0_50 = arith.constant 0 : index
    %c0_51 = arith.constant 0 : index
    %120 = vector.load %arg6[%c0_49, %119, %c0_50, %c0_51] : memref<1x6x6x16xf32, #tpu.memory_space<vmem>>, vector<1x1x6x16xf32>
    %121 = vector.shape_cast %120 : vector<1x1x6x16xf32> to vector<6x16xf32>
    %122 = vector.shape_cast %118 : vector<6x16xf32> to vector<1x1x6x16xf32>
    tpu.vector_store %arg6[%c0_49, %119, %c0_50, %c0_51], %122 {strides = array<i32>} : memref<1x6x6x16xf32, #tpu.memory_space<vmem>>, vector<1x1x6x16xf32>,
    %c2_i32_52 = arith.constant 2 : i32
    %c2_i32_53 = arith.constant 2 : i32
    %123 = arith.muli %c2_i32_53, %c2_i32_52 : i32
    %c16_i32_54 = arith.constant 16 : i32
    %124 = arith.muli %123, %c16_i32_54 : i32
    %125 = tpu.assume_multiple %124, 8 : i32
    %126 = arith.index_cast %125 : i32 to index
    %c0_55 = arith.constant 0 : index
    %127 = tpu.strided_load %arg8[%126, %c0_55] {strides = array<i32: 2, 1>} : memref<188x16xf32, #tpu.memory_space<vmem>>, vector<6x16xf32>
    %c1_i32_56 = arith.constant 1 : i32
    %128 = arith.addi %125, %c1_i32_56 : i32
    %129 = arith.index_cast %128 : i32 to index
    %c0_57 = arith.constant 0 : index
    %130 = tpu.strided_load %arg8[%129, %c0_57] {strides = array<i32: 2, 1>} : memref<188x16xf32, #tpu.memory_space<vmem>>, vector<6x16xf32>
    %c16_i32_58 = arith.constant 16 : i32
    %131 = arith.addi %125, %c16_i32_58 : i32
    %132 = arith.index_cast %131 : i32 to index
    %c0_59 = arith.constant 0 : index
    %133 = tpu.strided_load %arg8[%132, %c0_59] {strides = array<i32: 2, 1>} : memref<188x16xf32, #tpu.memory_space<vmem>>, vector<6x16xf32>
    %c16_i32_60 = arith.constant 16 : i32
    %134 = arith.addi %125, %c16_i32_60 : i32
    %c1_i32_61 = arith.constant 1 : i32
    %135 = arith.addi %134, %c1_i32_61 : i32
    %136 = arith.index_cast %135 : i32 to index
    %c0_62 = arith.constant 0 : index
    %137 = tpu.strided_load %arg8[%136, %c0_62] {strides = array<i32: 2, 1>} : memref<188x16xf32, #tpu.memory_space<vmem>>, vector<6x16xf32>
    %138 = arith.maximumf %127, %130 : vector<6x16xf32>
    %139 = arith.maximumf %133, %137 : vector<6x16xf32>
    %140 = arith.maximumf %138, %139 : vector<6x16xf32>
    %141 = arith.addf %140, %60 : vector<6x16xf32>
    %cst_63 = arith.constant 0.000000e+00 : f32
    %142 = vector.broadcast %cst_63 : f32 to vector<6x16xf32>
    %143 = arith.cmpf ogt, %141, %142 : vector<6x16xf32>
    %cst_64 = arith.constant 0.000000e+00 : f32
    %144 = vector.broadcast %cst_64 : f32 to vector<6x16xf32>
    %145 = arith.minimumf %141, %144 : vector<6x16xf32>
    %146 = math.exp %145 : vector<6x16xf32>
    %cst_65 = arith.constant 1.000000e+00 : f32
    %147 = vector.broadcast %cst_65 : f32 to vector<6x16xf32>
    %148 = arith.subf %146, %147 : vector<6x16xf32>
    %149 = arith.select %143, %141, %148 : vector<6x16xi1>, vector<6x16xf32>
    %c0_66 = arith.constant 0 : index
    %150 = arith.index_cast %c2_i32_52 : i32 to index
    %c0_67 = arith.constant 0 : index
    %c0_68 = arith.constant 0 : index
    %151 = vector.load %arg6[%c0_66, %150, %c0_67, %c0_68] : memref<1x6x6x16xf32, #tpu.memory_space<vmem>>, vector<1x1x6x16xf32>
    %152 = vector.shape_cast %151 : vector<1x1x6x16xf32> to vector<6x16xf32>
    %153 = vector.shape_cast %149 : vector<6x16xf32> to vector<1x1x6x16xf32>
    tpu.vector_store %arg6[%c0_66, %150, %c0_67, %c0_68], %153 {strides = array<i32>} : memref<1x6x6x16xf32, #tpu.memory_space<vmem>>, vector<1x1x6x16xf32>,
    %c3_i32 = arith.constant 3 : i32
    %c2_i32_69 = arith.constant 2 : i32
    %154 = arith.muli %c2_i32_69, %c3_i32 : i32
    %c16_i32_70 = arith.constant 16 : i32
    %155 = arith.muli %154, %c16_i32_70 : i32
    %156 = tpu.assume_multiple %155, 8 : i32
    %157 = arith.index_cast %156 : i32 to index
    %c0_71 = arith.constant 0 : index
    %158 = tpu.strided_load %arg8[%157, %c0_71] {strides = array<i32: 2, 1>} : memref<188x16xf32, #tpu.memory_space<vmem>>, vector<6x16xf32>
    %c1_i32_72 = arith.constant 1 : i32
    %159 = arith.addi %156, %c1_i32_72 : i32
    %160 = arith.index_cast %159 : i32 to index
    %c0_73 = arith.constant 0 : index
    %161 = tpu.strided_load %arg8[%160, %c0_73] {strides = array<i32: 2, 1>} : memref<188x16xf32, #tpu.memory_space<vmem>>, vector<6x16xf32>
    %c16_i32_74 = arith.constant 16 : i32
    %162 = arith.addi %156, %c16_i32_74 : i32
    %163 = arith.index_cast %162 : i32 to index
    %c0_75 = arith.constant 0 : index
    %164 = tpu.strided_load %arg8[%163, %c0_75] {strides = array<i32: 2, 1>} : memref<188x16xf32, #tpu.memory_space<vmem>>, vector<6x16xf32>
    %c16_i32_76 = arith.constant 16 : i32
    %165 = arith.addi %156, %c16_i32_76 : i32
    %c1_i32_77 = arith.constant 1 : i32
    %166 = arith.addi %165, %c1_i32_77 : i32
    %167 = arith.index_cast %166 : i32 to index
    %c0_78 = arith.constant 0 : index
    %168 = tpu.strided_load %arg8[%167, %c0_78] {strides = array<i32: 2, 1>} : memref<188x16xf32, #tpu.memory_space<vmem>>, vector<6x16xf32>
    %169 = arith.maximumf %158, %161 : vector<6x16xf32>
    %170 = arith.maximumf %164, %168 : vector<6x16xf32>
    %171 = arith.maximumf %169, %170 : vector<6x16xf32>
    %172 = arith.addf %171, %60 : vector<6x16xf32>
    %cst_79 = arith.constant 0.000000e+00 : f32
    %173 = vector.broadcast %cst_79 : f32 to vector<6x16xf32>
    %174 = arith.cmpf ogt, %172, %173 : vector<6x16xf32>
    %cst_80 = arith.constant 0.000000e+00 : f32
    %175 = vector.broadcast %cst_80 : f32 to vector<6x16xf32>
    %176 = arith.minimumf %172, %175 : vector<6x16xf32>
    %177 = math.exp %176 : vector<6x16xf32>
    %cst_81 = arith.constant 1.000000e+00 : f32
    %178 = vector.broadcast %cst_81 : f32 to vector<6x16xf32>
    %179 = arith.subf %177, %178 : vector<6x16xf32>
    %180 = arith.select %174, %172, %179 : vector<6x16xi1>, vector<6x16xf32>
    %c0_82 = arith.constant 0 : index
    %181 = arith.index_cast %c3_i32 : i32 to index
    %c0_83 = arith.constant 0 : index
    %c0_84 = arith.constant 0 : index
    %182 = vector.load %arg6[%c0_82, %181, %c0_83, %c0_84] : memref<1x6x6x16xf32, #tpu.memory_space<vmem>>, vector<1x1x6x16xf32>
    %183 = vector.shape_cast %182 : vector<1x1x6x16xf32> to vector<6x16xf32>
    %184 = vector.shape_cast %180 : vector<6x16xf32> to vector<1x1x6x16xf32>
    tpu.vector_store %arg6[%c0_82, %181, %c0_83, %c0_84], %184 {strides = array<i32>} : memref<1x6x6x16xf32, #tpu.memory_space<vmem>>, vector<1x1x6x16xf32>,
    %c4_i32 = arith.constant 4 : i32
    %c2_i32_85 = arith.constant 2 : i32
    %185 = arith.muli %c2_i32_85, %c4_i32 : i32
    %c16_i32_86 = arith.constant 16 : i32
    %186 = arith.muli %185, %c16_i32_86 : i32
    %187 = tpu.assume_multiple %186, 8 : i32
    %188 = arith.index_cast %187 : i32 to index
    %c0_87 = arith.constant 0 : index
    %189 = tpu.strided_load %arg8[%188, %c0_87] {strides = array<i32: 2, 1>} : memref<188x16xf32, #tpu.memory_space<vmem>>, vector<6x16xf32>
    %c1_i32_88 = arith.constant 1 : i32
    %190 = arith.addi %187, %c1_i32_88 : i32
    %191 = arith.index_cast %190 : i32 to index
    %c0_89 = arith.constant 0 : index
    %192 = tpu.strided_load %arg8[%191, %c0_89] {strides = array<i32: 2, 1>} : memref<188x16xf32, #tpu.memory_space<vmem>>, vector<6x16xf32>
    %c16_i32_90 = arith.constant 16 : i32
    %193 = arith.addi %187, %c16_i32_90 : i32
    %194 = arith.index_cast %193 : i32 to index
    %c0_91 = arith.constant 0 : index
    %195 = tpu.strided_load %arg8[%194, %c0_91] {strides = array<i32: 2, 1>} : memref<188x16xf32, #tpu.memory_space<vmem>>, vector<6x16xf32>
    %c16_i32_92 = arith.constant 16 : i32
    %196 = arith.addi %187, %c16_i32_92 : i32
    %c1_i32_93 = arith.constant 1 : i32
    %197 = arith.addi %196, %c1_i32_93 : i32
    %198 = arith.index_cast %197 : i32 to index
    %c0_94 = arith.constant 0 : index
    %199 = tpu.strided_load %arg8[%198, %c0_94] {strides = array<i32: 2, 1>} : memref<188x16xf32, #tpu.memory_space<vmem>>, vector<6x16xf32>
    %200 = arith.maximumf %189, %192 : vector<6x16xf32>
    %201 = arith.maximumf %195, %199 : vector<6x16xf32>
    %202 = arith.maximumf %200, %201 : vector<6x16xf32>
    %203 = arith.addf %202, %60 : vector<6x16xf32>
    %cst_95 = arith.constant 0.000000e+00 : f32
    %204 = vector.broadcast %cst_95 : f32 to vector<6x16xf32>
    %205 = arith.cmpf ogt, %203, %204 : vector<6x16xf32>
    %cst_96 = arith.constant 0.000000e+00 : f32
    %206 = vector.broadcast %cst_96 : f32 to vector<6x16xf32>
    %207 = arith.minimumf %203, %206 : vector<6x16xf32>
    %208 = math.exp %207 : vector<6x16xf32>
    %cst_97 = arith.constant 1.000000e+00 : f32
    %209 = vector.broadcast %cst_97 : f32 to vector<6x16xf32>
    %210 = arith.subf %208, %209 : vector<6x16xf32>
    %211 = arith.select %205, %203, %210 : vector<6x16xi1>, vector<6x16xf32>
    %c0_98 = arith.constant 0 : index
    %212 = arith.index_cast %c4_i32 : i32 to index
    %c0_99 = arith.constant 0 : index
    %c0_100 = arith.constant 0 : index
    %213 = vector.load %arg6[%c0_98, %212, %c0_99, %c0_100] : memref<1x6x6x16xf32, #tpu.memory_space<vmem>>, vector<1x1x6x16xf32>
    %214 = vector.shape_cast %213 : vector<1x1x6x16xf32> to vector<6x16xf32>
    %215 = vector.shape_cast %211 : vector<6x16xf32> to vector<1x1x6x16xf32>
    tpu.vector_store %arg6[%c0_98, %212, %c0_99, %c0_100], %215 {strides = array<i32>} : memref<1x6x6x16xf32, #tpu.memory_space<vmem>>, vector<1x1x6x16xf32>,
    %c5_i32 = arith.constant 5 : i32
    %c2_i32_101 = arith.constant 2 : i32
    %216 = arith.muli %c2_i32_101, %c5_i32 : i32
    %c16_i32_102 = arith.constant 16 : i32
    %217 = arith.muli %216, %c16_i32_102 : i32
    %218 = tpu.assume_multiple %217, 8 : i32
    %219 = arith.index_cast %218 : i32 to index
    %c0_103 = arith.constant 0 : index
    %220 = tpu.strided_load %arg8[%219, %c0_103] {strides = array<i32: 2, 1>} : memref<188x16xf32, #tpu.memory_space<vmem>>, vector<6x16xf32>
    %c1_i32_104 = arith.constant 1 : i32
    %221 = arith.addi %218, %c1_i32_104 : i32
    %222 = arith.index_cast %221 : i32 to index
    %c0_105 = arith.constant 0 : index
    %223 = tpu.strided_load %arg8[%222, %c0_105] {strides = array<i32: 2, 1>} : memref<188x16xf32, #tpu.memory_space<vmem>>, vector<6x16xf32>
    %c16_i32_106 = arith.constant 16 : i32
    %224 = arith.addi %218, %c16_i32_106 : i32
    %225 = arith.index_cast %224 : i32 to index
    %c0_107 = arith.constant 0 : index
    %226 = tpu.strided_load %arg8[%225, %c0_107] {strides = array<i32: 2, 1>} : memref<188x16xf32, #tpu.memory_space<vmem>>, vector<6x16xf32>
    %c16_i32_108 = arith.constant 16 : i32
    %227 = arith.addi %218, %c16_i32_108 : i32
    %c1_i32_109 = arith.constant 1 : i32
    %228 = arith.addi %227, %c1_i32_109 : i32
    %229 = arith.index_cast %228 : i32 to index
    %c0_110 = arith.constant 0 : index
    %230 = tpu.strided_load %arg8[%229, %c0_110] {strides = array<i32: 2, 1>} : memref<188x16xf32, #tpu.memory_space<vmem>>, vector<6x16xf32>
    %231 = arith.maximumf %220, %223 : vector<6x16xf32>
    %232 = arith.maximumf %226, %230 : vector<6x16xf32>
    %233 = arith.maximumf %231, %232 : vector<6x16xf32>
    %234 = arith.addf %233, %60 : vector<6x16xf32>
    %cst_111 = arith.constant 0.000000e+00 : f32
    %235 = vector.broadcast %cst_111 : f32 to vector<6x16xf32>
    %236 = arith.cmpf ogt, %234, %235 : vector<6x16xf32>
    %cst_112 = arith.constant 0.000000e+00 : f32
    %237 = vector.broadcast %cst_112 : f32 to vector<6x16xf32>
    %238 = arith.minimumf %234, %237 : vector<6x16xf32>
    %239 = math.exp %238 : vector<6x16xf32>
    %cst_113 = arith.constant 1.000000e+00 : f32
    %240 = vector.broadcast %cst_113 : f32 to vector<6x16xf32>
    %241 = arith.subf %239, %240 : vector<6x16xf32>
    %242 = arith.select %236, %234, %241 : vector<6x16xi1>, vector<6x16xf32>
    %c0_114 = arith.constant 0 : index
    %243 = arith.index_cast %c5_i32 : i32 to index
    %c0_115 = arith.constant 0 : index
    %c0_116 = arith.constant 0 : index
    %244 = vector.load %arg6[%c0_114, %243, %c0_115, %c0_116] : memref<1x6x6x16xf32, #tpu.memory_space<vmem>>, vector<1x1x6x16xf32>
    %245 = vector.shape_cast %244 : vector<1x1x6x16xf32> to vector<6x16xf32>
    %246 = vector.shape_cast %242 : vector<6x16xf32> to vector<1x1x6x16xf32>
    tpu.vector_store %arg6[%c0_114, %243, %c0_115, %c0_116], %246 {strides = array<i32>} : memref<1x6x6x16xf32, #tpu.memory_space<vmem>>, vector<1x1x6x16xf32>,
    %c6_i32 = arith.constant 6 : i32
    return
  }
  func.func @transform_0(%arg0: i32) -> (i32, i32, i32) {
    %c0_i32 = arith.constant 0 : i32
    %c0_i32_0 = arith.constant 0 : i32
    %c0_i32_1 = arith.constant 0 : i32
    return %arg0, %c0_i32, %c0_i32_0 : i32, i32, i32
  }
  func.func @transform_1(%arg0: i32) -> (i32, i32) {
    %c0_i32 = arith.constant 0 : i32
    %c0_i32_0 = arith.constant 0 : i32
    %c0_i32_1 = arith.constant 0 : i32
    return %c0_i32, %c0_i32_0 : i32, i32
  }
  func.func @transform_2(%arg0: i32) -> (i32, i32) {
    %c0_i32 = arith.constant 0 : i32
    %c0_i32_0 = arith.constant 0 : i32
    %c0_i32_1 = arith.constant 0 : i32
    return %c0_i32, %c0_i32_0 : i32, i32
  }
  func.func @transform_3(%arg0: i32) -> (i32, i32) {
    %c0_i32 = arith.constant 0 : i32
    %c0_i32_0 = arith.constant 0 : i32
    %c0_i32_1 = arith.constant 0 : i32
    return %c0_i32, %c0_i32_0 : i32, i32
  }
  func.func @transform_4(%arg0: i32) -> (i32, i32) {
    %c0_i32 = arith.constant 0 : i32
    %c0_i32_0 = arith.constant 0 : i32
    %c0_i32_1 = arith.constant 0 : i32
    return %c0_i32, %c0_i32_0 : i32, i32
  }
  func.func @transform_5(%arg0: i32) -> (i32, i32, i32, i32) {
    %c0_i32 = arith.constant 0 : i32
    %c0_i32_0 = arith.constant 0 : i32
    %c0_i32_1 = arith.constant 0 : i32
    %c0_i32_2 = arith.constant 0 : i32
    return %arg0, %c0_i32, %c0_i32_0, %c0_i32_1 : i32, i32, i32, i32
  }
}

</mosaic_0001>

<llo_original>
// kernel: down_module_forward.1
$region0: #{down_module_forward.1}
  #allocation0 [shape = 'u32[]', space=smem, size = 0x4, offset = 0x4, fixed_abs, tag = 'smem constant byte address 0x4 - core index']
  #allocation1 [shape = 'u32[144,128]{1,0:T(1,128)}', space=vmem, size = 0x12000, scoped, tag = 'internal scratch']
  #allocation2 [shape = 'bf16[224,16]{1,0:T(16,128)(2,1)}', space=vmem, size = 0xe000, scoped, tag = 'scratch operand']
  #allocation3 [shape = 'f32[188,16]{1,0:T(8,128)}', space=vmem, size = 0x18000, scoped, tag = 'scratch operand']
  %s0 = inlined_call_operand.vmem [shape: bf16[2,256,4], index: 0, kind: input, shape index: {}]
  %s1 = inlined_call_operand.vmem [shape: bf16[4,144], index: 1, kind: input, shape index: {}]
  %s2 = inlined_call_operand.vmem [shape: f32[1,16], index: 2, kind: input, shape index: {}]
  %s3 = inlined_call_operand.vmem [shape: bf16[16,144], index: 3, kind: input, shape index: {}]
  %s4 = inlined_call_operand.vmem [shape: f32[1,16], index: 4, kind: input, shape index: {}]
  %s5 = inlined_call_operand.vmem [shape: f32[2,6,6,16], index: 5, kind: output, shape index: {}]
  %s6 = sld [smem:[#allocation0]]
  $region53: #{down_module_forward.1} parent=0
    _
  %s8 = ssub.s32 1, %s6
  %s9 = scalar_select 0, %s8, %s6
  loop: start=0, step=1, limit=4
  $region2: #{down_module_forward.1} parent=0 // loop_pre_header
    _
  $region3: #{down_module_forward.1} parent=0 // loop_header
    %s11 = sphi 0, %s15
    %p12 = scmp.ge.s32.totalorder %s11, 4
    %s21 = sphi 0, %s23
    %s24 = sphi 0, %s21
    %s25 = sphi 0, %s24
    %s41 = sphi 0, %s25
    %s45 = sphi 0, %s45
    %s47 = sphi 0, %s45
    %s48 = sphi 0, %s47
    %s62 = sphi 0, %s48
    %s66 = sphi 0, %s66
    %s68 = sphi 0, %s66
    %s69 = sphi 0, %s68
    %s83 = sphi 0, %s69
    %s87 = sphi 0, %s87
    %s89 = sphi 0, %s87
    %s90 = sphi 0, %s89
    %s104 = sphi 0, %s90
    %s108 = sphi 0, %s108
    %s110 = sphi 0, %s108
    %s111 = sphi 0, %s110
    %s125 = sphi 0, %s111
    %s131 = sphi 0, %s133
    %s134 = sphi 0, %s131
    %s135 = sphi 0, %s134
    %s151 = sphi 0, %s135
  $region4: #{down_module_forward.1} parent=0 // loop_header_branch
    %14 = sbr.rel (%p12) target = $region8
  $region5: #{down_module_forward.1} parent=0 // loop_body
    %s16 = ssub.s32 %s11, 1
    %s17 = ssub.s32 %s11, 2
    %s18 = sadd.s32 %s11, 1
    %s19 = ssub.s32 %s11, %s18
    %p20 = scmp.eq.s32.totalorder %s19, 0
    %s22 = sadd.s32 %s21, 1
    %s23 = scalar_select %p20, %s21, %s22
    %p26 = pneg %p20
    %p27 = scmp.eq.s32.totalorder %s11, 1
    %p28 = por %p26, %p27
    %p29 = scmp.ne.s32.totalorder %s21, %s24
    %p30 = scmp.eq.s32.totalorder %s11, 0
    %p31 = por %p29, %p30
    %p32 = scmp.ne.s32.totalorder %s21, %s24
    %p33 = scmp.eq.s32.totalorder %s16, 1
    %p34 = por %p32, %p33
    %p35 = scmp.ne.s32.totalorder %s24, %s25
    %p36 = scmp.eq.s32.totalorder %s16, 0
    %p37 = por %p35, %p36
    %p38 = scmp.ne.s32.totalorder %s24, %s25
    %p39 = scmp.eq.s32.totalorder %s17, 1
    %p40 = por %p38, %p39
    %p42 = scmp.ne.s32.totalorder %s25, %s41
    %p43 = scmp.eq.s32.totalorder %s17, 0
    %p44 = por %p42, %p43
    %s46 = sadd.s32 %s45, 1
    %p49 = scmp.eq.s32.totalorder %s11, 1
    %p50 = scmp.ne.s32.totalorder %s45, %s47
    %p51 = scmp.eq.s32.totalorder %s11, 0
    %p52 = por %p50, %p51
    %p53 = scmp.ne.s32.totalorder %s45, %s47
    %p54 = scmp.eq.s32.totalorder %s16, 1
    %p55 = por %p53, %p54
    %p56 = scmp.ne.s32.totalorder %s47, %s48
    %p57 = scmp.eq.s32.totalorder %s16, 0
    %p58 = por %p56, %p57
    %p59 = scmp.ne.s32.totalorder %s47, %s48
    %p60 = scmp.eq.s32.totalorder %s17, 1
    %p61 = por %p59, %p60
    %p63 = scmp.ne.s32.totalorder %s48, %s62
    %p64 = scmp.eq.s32.totalorder %s17, 0
    %p65 = por %p63, %p64
    %s67 = sadd.s32 %s66, 1
    %p70 = scmp.eq.s32.totalorder %s11, 1
    %p71 = scmp.ne.s32.totalorder %s66, %s68
    %p72 = scmp.eq.s32.totalorder %s11, 0
    %p73 = por %p71, %p72
    %p74 = scmp.ne.s32.totalorder %s66, %s68
    %p75 = scmp.eq.s32.totalorder %s16, 1
    %p76 = por %p74, %p75
    %p77 = scmp.ne.s32.totalorder %s68, %s69
    %p78 = scmp.eq.s32.totalorder %s16, 0
    %p79 = por %p77, %p78
    %p80 = scmp.ne.s32.totalorder %s68, %s69
    %p81 = scmp.eq.s32.totalorder %s17, 1
    %p82 = por %p80, %p81
    %p84 = scmp.ne.s32.totalorder %s69, %s83
    %p85 = scmp.eq.s32.totalorder %s17, 0
    %p86 = por %p84, %p85
    %s88 = sadd.s32 %s87, 1
    %p91 = scmp.eq.s32.totalorder %s11, 1
    %p92 = scmp.ne.s32.totalorder %s87, %s89
    %p93 = scmp.eq.s32.totalorder %s11, 0
    %p94 = por %p92, %p93
    %p95 = scmp.ne.s32.totalorder %s87, %s89
    %p96 = scmp.eq.s32.totalorder %s16, 1
    %p97 = por %p95, %p96
    %p98 = scmp.ne.s32.totalorder %s89, %s90
    %p99 = scmp.eq.s32.totalorder %s16, 0
    %p100 = por %p98, %p99
    %p101 = scmp.ne.s32.totalorder %s89, %s90
    %p102 = scmp.eq.s32.totalorder %s17, 1
    %p103 = por %p101, %p102
    %p105 = scmp.ne.s32.totalorder %s90, %s104
    %p106 = scmp.eq.s32.totalorder %s17, 0
    %p107 = por %p105, %p106
    %s109 = sadd.s32 %s108, 1
    %p112 = scmp.eq.s32.totalorder %s11, 1
    %p113 = scmp.ne.s32.totalorder %s108, %s110
    %p114 = scmp.eq.s32.totalorder %s11, 0
    %p115 = por %p113, %p114
    %p116 = scmp.ne.s32.totalorder %s108, %s110
    %p117 = scmp.eq.s32.totalorder %s16, 1
    %p118 = por %p116, %p117
    %p119 = scmp.ne.s32.totalorder %s110, %s111
    %p120 = scmp.eq.s32.totalorder %s16, 0
    %p121 = por %p119, %p120
    %p122 = scmp.ne.s32.totalorder %s110, %s111
    %p123 = scmp.eq.s32.totalorder %s17, 1
    %p124 = por %p122, %p123
    %p126 = scmp.ne.s32.totalorder %s111, %s125
    %p127 = scmp.eq.s32.totalorder %s17, 0
    %p128 = por %p126, %p127
    %s129 = ssub.s32 %s11, %s18
    %p130 = scmp.eq.s32.totalorder %s129, 0
    %s132 = sadd.s32 %s131, 1
    %s133 = scalar_select %p130, %s131, %s132
    %p136 = pneg %p130
    %p137 = scmp.eq.s32.totalorder %s11, 1
    %p138 = por %p136, %p137
    %p139 = scmp.ne.s32.totalorder %s131, %s134
    %p140 = scmp.eq.s32.totalorder %s11, 0
    %p141 = por %p139, %p140
    %p142 = scmp.ne.s32.totalorder %s131, %s134
    %p143 = scmp.eq.s32.totalorder %s16, 1
    %p144 = por %p142, %p143
    %p145 = scmp.ne.s32.totalorder %s134, %s135
    %p146 = scmp.eq.s32.totalorder %s16, 0
    %p147 = por %p145, %p146
    %p148 = scmp.ne.s32.totalorder %s134, %s135
    %p149 = scmp.eq.s32.totalorder %s17, 1
    %p150 = por %p148, %p149
    %p152 = scmp.ne.s32.totalorder %s135, %s151
    %p153 = scmp.eq.s32.totalorder %s17, 0
    %p154 = por %p152, %p153
    %p155 = scmp.le.s32.totalorder 1, %s11
    %p156 = scmp.lt.s32.totalorder %s11, 3
    %p157 = pnand %p155, %p156
    %p158 = pneg %p157
    // Predicated region
    $region9: #{down_module_forward.1} parent=5 // pred_check
      _
    $region10: #{down_module_forward.1} parent=5 // pred_check_branch
      %160 = sbr.rel (%p157) target = $region12
    $region11: #{down_module_forward.1} parent=5 // pred_region
      %s161 = ssub.s32 %s11, 1
      // Predicated region
      $region13: #{down_module_forward.1} parent=11 // pred_check
        %p162 = pneg %p58
      $region14: #{down_module_forward.1} parent=11 // pred_check_branch
        %164 = sbr.rel (%p162) target = $region16
      $region15: #{down_module_forward.1} parent=11 // pred_region
        _
      $region16: #{down_module_forward.1} parent=11 // pred_fallthru
        _
      // Predicated region
      $region17: #{down_module_forward.1} parent=11 // pred_check
        %p165 = pneg %p79
      $region18: #{down_module_forward.1} parent=11 // pred_check_branch
        %167 = sbr.rel (%p165) target = $region20
      $region19: #{down_module_forward.1} parent=11 // pred_region
        _
      $region20: #{down_module_forward.1} parent=11 // pred_fallthru
        _
      // Predicated region
      $region21: #{down_module_forward.1} parent=11 // pred_check
        %p168 = pneg %p100
      $region22: #{down_module_forward.1} parent=11 // pred_check_branch
        %170 = sbr.rel (%p168) target = $region24
      $region23: #{down_module_forward.1} parent=11 // pred_region
        _
      $region24: #{down_module_forward.1} parent=11 // pred_fallthru
        _
      // Predicated region
      $region25: #{down_module_forward.1} parent=11 // pred_check
        %p171 = pneg %p121
      $region26: #{down_module_forward.1} parent=11 // pred_check_branch
        %173 = sbr.rel (%p171) target = $region28
      $region27: #{down_module_forward.1} parent=11 // pred_region
        _
      $region28: #{down_module_forward.1} parent=11 // pred_fallthru
        _
    $region12: #{down_module_forward.1} parent=5 // pred_fallthru
      _
    %p174 = scmp.lt.s32.totalorder %s11, 2
    // Predicated region
    $region29: #{down_module_forward.1} parent=5 // pred_check
      %p175 = pneg %p174
    $region30: #{down_module_forward.1} parent=5 // pred_check_branch
      %177 = sbr.rel (%p175) target = $region32
    $region31: #{down_module_forward.1} parent=5 // pred_region
      // Predicated region
      $region33: #{down_module_forward.1} parent=31 // pred_check
        %p178 = pneg %p31
      $region34: #{down_module_forward.1} parent=31 // pred_check_branch
        %180 = sbr.rel (%p178) target = $region36
      $region35: #{down_module_forward.1} parent=31 // pred_region
        %p181 = scmp.lt.s32.totalorder %s11, 1
        %s182 = scalar_select %p181, %s11, 1
        %s183 = smul.addr %s182, 32
        %s184 = smul.addr %s183, 4
        %s185 = scalar_lea.vmem %s0, %s184
      $region36: #{down_module_forward.1} parent=31 // pred_fallthru
        _
    $region32: #{down_module_forward.1} parent=5 // pred_fallthru
      _
    %p186 = scmp.le.s32.totalorder 1, %s11
    %p187 = scmp.lt.s32.totalorder %s11, 3
    %p188 = pnand %p186, %p187
    %p189 = pneg %p188
    // Predicated region
    $region37: #{down_module_forward.1} parent=5 // pred_check
      _
    $region38: #{down_module_forward.1} parent=5 // pred_check_branch
      %191 = sbr.rel (%p188) target = $region40
    $region39: #{down_module_forward.1} parent=5 // pred_region
      %s192 = ssub.s32 %s11, 1
      %p193 = scmp.lt.s32.totalorder %s16, 1
      %s194 = scalar_select %p193, %s16, 1
      %s195 = smul.addr %s194, 32
      %s196 = smul.addr %s195, 4
      %s197 = scalar_lea.vmem %s0, %s196
      %p198 = pneg %p37
      %p199 = pneg %p34
      %p200 = pneg %p58
      %p201 = pneg %p55
      %p202 = pneg %p79
      %p203 = pneg %p76
      %p204 = pneg %p100
      %p205 = pneg %p97
      %p206 = pneg %p121
      %p207 = pneg %p118
      %p208 = pneg %p147
      %p209 = pneg %p144
      %p210 = scmp.lt.s32.totalorder %s16, 1
      %s211 = scalar_select %p210, %s16, 1
      %s212 = smul.addr %s211, 6
      %s213 = smul.addr %s212, 8
      %s214 = scalar_lea.vmem %s5, %s213
      %p215 = scmp.lt.s32.totalorder %s16, 1
      %s216 = scalar_select %p215, %s16, 1
      %s217 = smul.addr %s216, 32
      %s218 = smul.addr %s217, 4
      %s219 = scalar_lea.vmem %s0, %s218
      %p220 = scmp.lt.s32.totalorder %s16, 1
      %s221 = scalar_select %p220, %s16, 1
      %s222 = smul.addr %s221, 6
      %s223 = smul.addr %s222, 8
      %s224 = scalar_lea.vmem %s5, %s223
      %v226 = vld [vmem:[%s219] sm:$0xf]
      %v227 = vld [vmem:[%s219 + $0x4] sm:$0xf]
      %v228 = vld [vmem:[%s219 + $0x8] sm:$0xf]
      %v229 = vld [vmem:[%s219 + $0xc] sm:$0xf]
      %v230 = vld [vmem:[%s219 + $0x10] sm:$0xf]
      %v231 = vld [vmem:[%s219 + $0x14] sm:$0xf]
      %v232 = vld [vmem:[%s219 + $0x18] sm:$0xf]
      %v233 = vld [vmem:[%s219 + $0x1c] sm:$0xf]
      %v234 = vld [vmem:[%s219 + $0x20] sm:$0xf]
      %v235 = vld [vmem:[%s219 + $0x24] sm:$0xf]
      %v236 = vld [vmem:[%s219 + $0x28] sm:$0xf]
      %v237 = vld [vmem:[%s219 + $0x2c] sm:$0xf]
      %v238 = vld [vmem:[%s219 + $0x30] sm:$0xf]
      %v239 = vld [vmem:[%s219 + $0x34] sm:$0xf]
      %v240 = vld [vmem:[%s219 + $0x38] sm:$0xf]
      %v241 = vld [vmem:[%s219 + $0x3c] sm:$0xf]
      %v242 = vld [vmem:[%s219 + $0x40] sm:$0xf]
      %v243 = vld [vmem:[%s219 + $0x44] sm:$0xf]
      %v244 = vld [vmem:[%s219 + $0x48] sm:$0xf]
      %v245 = vld [vmem:[%s219 + $0x4c] sm:$0xf]
      %v246 = vld [vmem:[%s219 + $0x50] sm:$0xf]
      %v247 = vld [vmem:[%s219 + $0x54] sm:$0xf]
      %v248 = vld [vmem:[%s219 + $0x58] sm:$0xf]
      %v249 = vld [vmem:[%s219 + $0x5c] sm:$0xf]
      %v250 = vld [vmem:[%s219 + $0x60] sm:$0xf]
      %v251 = vld [vmem:[%s219 + $0x64] sm:$0xf]
      %v252 = vld [vmem:[%s219 + $0x68] sm:$0xf]
      %v253 = vld [vmem:[%s219 + $0x6c] sm:$0xf]
      %v254 = vld [vmem:[%s219 + $0x70] sm:$0xf]
      %v255 = vld [vmem:[%s219 + $0x74] sm:$0xf]
      %v256 = vld [vmem:[%s219 + $0x78] sm:$0xf]
      %v257 = vld [vmem:[%s219 + $0x7c] sm:$0xf]
      %v258 = vld [vmem:[%s1] sm:$0xf]
      %v291 = vunpack.c.l.b16 %v226
      %v292 = vunpack.c.l.b16 %v227
      %v293 = vunpack.c.l.b16 %v228
      %v294 = vunpack.c.l.b16 %v229
      %v295 = vunpack.c.l.b16 %v230
      %v296 = vunpack.c.l.b16 %v231
      %v297 = vunpack.c.l.b16 %v232
      %v298 = vunpack.c.l.b16 %v233
      %v299 = vunpack.c.l.b16 %v234
      %v300 = vunpack.c.l.b16 %v235
      %v301 = vunpack.c.l.b16 %v236
      %v302 = vunpack.c.l.b16 %v237
      %v303 = vunpack.c.l.b16 %v238
      %v304 = vunpack.c.l.b16 %v239
      %v305 = vunpack.c.l.b16 %v240
      %v306 = vunpack.c.l.b16 %v241
      %v307 = vunpack.c.l.b16 %v242
      %v308 = vunpack.c.l.b16 %v243
      %v309 = vunpack.c.l.b16 %v244
      %v310 = vunpack.c.l.b16 %v245
      %v311 = vunpack.c.l.b16 %v246
      %v312 = vunpack.c.l.b16 %v247
      %v313 = vunpack.c.l.b16 %v248
      %v314 = vunpack.c.l.b16 %v249
      %v315 = vunpack.c.l.b16 %v250
      %v316 = vunpack.c.l.b16 %v251
      %v317 = vunpack.c.l.b16 %v252
      %v318 = vunpack.c.l.b16 %v253
      %v319 = vunpack.c.l.b16 %v254
      %v320 = vunpack.c.l.b16 %v255
      %v321 = vunpack.c.l.b16 %v256
      %v322 = vunpack.c.l.b16 %v257
      %v323 = vpack.c.b16 %v292, %v291
      %v324 = vpack.c.b16 %v294, %v293
      %v325 = vpack.c.b16 %v296, %v295
      %v326 = vpack.c.b16 %v298, %v297
      %v327 = vpack.c.b16 %v300, %v299
      %v328 = vpack.c.b16 %v302, %v301
      %v329 = vpack.c.b16 %v304, %v303
      %v330 = vpack.c.b16 %v306, %v305
      %v331 = vpack.c.b16 %v308, %v307
      %v332 = vpack.c.b16 %v310, %v309
      %v333 = vpack.c.b16 %v312, %v311
      %v334 = vpack.c.b16 %v314, %v313
      %v335 = vpack.c.b16 %v316, %v315
      %v336 = vpack.c.b16 %v318, %v317
      %v337 = vpack.c.b16 %v320, %v319
      %v338 = vpack.c.b16 %v322, %v321
      %v341 = vunpack.c.l.s4 1983009808
      %v342 = vunpack.c.0.s8 %v341
      %v343 = vlaneseq
      %v344 = vshrl.u32 %v343, 7
      %v345 = vsub.s32 %v342, %v344
      %v346 = vrot.slane %v258, %v345
      %v347 = vcombine.high %v346, %v346
      %vm348 = vcmask 31744
      %v350 = vsel %vm348, %v323, 0
      %v353 = vsel %vm348, %v324, 0
      %v356 = vsel %vm348, %v325, 0
      %v359 = vsel %vm348, %v326, 0
      %v362 = vsel %vm348, %v327, 0
      %v365 = vsel %vm348, %v328, 0
      %v368 = vsel %vm348, %v329, 0
      %v371 = vsel %vm348, %v330, 0
      %v374 = vsel %vm348, %v331, 0
      %v377 = vsel %vm348, %v332, 0
      %v380 = vsel %vm348, %v333, 0
      %v383 = vsel %vm348, %v334, 0
      %v386 = vsel %vm348, %v335, 0
      %v389 = vsel %vm348, %v336, 0
      %v392 = vsel %vm348, %v337, 0
      %v395 = vsel %vm348, %v338, 0
      %vm397 = vcmask 1041408
      %v399 = vsel %vm397, %v346, 0
      %v402 = vsel %vm397, %v347, 0
      %404 = vmatprep.subr.bf16.mxu0 %v402
      %405 = vmatpush1.bf16.msra.mxu0 %v399
      %406 = vmatprep.subr.bf16.mxu0 0
      %407 = vmatpush1.bf16.msra.mxu0 0
      %408 = vmatprep.subr.bf16.mxu0 0
      %409 = vmatpush1.bf16.msra.mxu0 0
      %410 = vmatprep.subr.bf16.mxu0 0
      %411 = vmatpush1.bf16.msra.mxu0 0
      %412 = vmatprep.subr.bf16.mxu0 0
      %413 = vmatpush1.bf16.msra.mxu0 0
      %414 = vmatprep.subr.bf16.mxu0 0
      %415 = vmatpush1.bf16.msra.mxu0 0
      %416 = vmatprep.subr.bf16.mxu0 0
      %417 = vmatpush1.bf16.msra.mxu0 0
      %418 = vmatprep.subr.bf16.mxu0 0
      %419 = vmatpush1.bf16.msra.mxu0 0
      %420 = vmatprep.subr.bf16.mxu0 0
      %421 = vmatpush1.bf16.msra.mxu0 0
      %422 = vmatprep.subr.bf16.mxu0 0
      %423 = vmatpush1.bf16.msra.mxu0 0
      %424 = vmatprep.subr.bf16.mxu0 0
      %425 = vmatpush1.bf16.msra.mxu0 0
      %426 = vmatprep.subr.bf16.mxu0 0
      %427 = vmatpush1.bf16.msra.mxu0 0
      %428 = vmatprep.subr.bf16.mxu0 0
      %429 = vmatpush1.bf16.msra.mxu0 0
      %430 = vmatprep.subr.bf16.mxu0 0
      %431 = vmatpush1.bf16.msra.mxu0 0
      %432 = vmatprep.subr.bf16.mxu0 0
      %433 = vmatpush1.bf16.msra.mxu0 0
      %434 = vmatprep.subr.bf16.mxu0 0
      %435 = vmatpush1.bf16.msra.mxu0 0
      %436 = vmatprep.mubr.bf16.mxu0 0
      %437 = vmatmul.mubr.bf16.gmra.mrb[0].mxu0 %v350
      %v438 = vpop.f32.mrb[0].mxu0
      %v439 = vadd.f32 0.0, %v438
      %v440 = vpop.f32.mrb[0].mxu0
      %v441 = vpop.f32.mrb[0].mxu0
      %v442 = vadd.f32 0.0, %v441
      %v443 = vpop.f32.mrb[0].mxu0
      %444 = vmatprep.mubr.bf16.mxu0 0
      %445 = vmatmul.mubr.bf16.gmra.mrb[0].mxu0 %v353
      %v446 = vpop.f32.mrb[0].mxu0
      %v447 = vadd.f32 0.0, %v446
      %v448 = vpop.f32.mrb[0].mxu0
      %v449 = vpop.f32.mrb[0].mxu0
      %v450 = vadd.f32 0.0, %v449
      %v451 = vpop.f32.mrb[0].mxu0
      %452 = vmatprep.mubr.bf16.mxu0 0
      %453 = vmatmul.mubr.bf16.gmra.mrb[0].mxu0 %v356
      %v454 = vpop.f32.mrb[0].mxu0
      %v455 = vadd.f32 0.0, %v454
      %v456 = vpop.f32.mrb[0].mxu0
      %v457 = vadd.f32 0.0, %v456
      %v458 = vpop.f32.mrb[0].mxu0
      %v459 = vadd.f32 0.0, %v458
      %v460 = vpop.f32.mrb[0].mxu0
      %v461 = vadd.f32 0.0, %v460
      %462 = vmatprep.mubr.bf16.mxu0 0
      %463 = vmatmul.mubr.bf16.gmra.mrb[0].mxu0 %v359
      %v464 = vpop.f32.mrb[0].mxu0
      %v465 = vadd.f32 0.0, %v464
      %v466 = vpop.f32.mrb[0].mxu0
      %v467 = vadd.f32 0.0, %v466
      %v468 = vpop.f32.mrb[0].mxu0
      %v469 = vadd.f32 0.0, %v468
      %v470 = vpop.f32.mrb[0].mxu0
      %v471 = vadd.f32 0.0, %v470
      %472 = vmatprep.mubr.bf16.mxu0 0
      %473 = vmatmul.mubr.bf16.gmra.mrb[0].mxu0 %v362
      %v474 = vpop.f32.mrb[0].mxu0
      %v475 = vadd.f32 0.0, %v474
      %v476 = vpop.f32.mrb[0].mxu0
      %v477 = vadd.f32 0.0, %v476
      %v478 = vpop.f32.mrb[0].mxu0
      %v479 = vadd.f32 0.0, %v478
      %v480 = vpop.f32.mrb[0].mxu0
      %v481 = vadd.f32 0.0, %v480
      %482 = vmatprep.mubr.bf16.mxu0 0
      %483 = vmatmul.mubr.bf16.gmra.mrb[0].mxu0 %v365
      %v484 = vpop.f32.mrb[0].mxu0
      %v485 = vadd.f32 0.0, %v484
      %v486 = vpop.f32.mrb[0].mxu0
      %v487 = vadd.f32 0.0, %v486
      %v488 = vpop.f32.mrb[0].mxu0
      %v489 = vadd.f32 0.0, %v488
      %v490 = vpop.f32.mrb[0].mxu0
      %v491 = vadd.f32 0.0, %v490
      %492 = vmatprep.mubr.bf16.mxu0 0
      %493 = vmatmul.mubr.bf16.gmra.mrb[0].mxu0 %v368
      %v494 = vpop.f32.mrb[0].mxu0
      %v495 = vadd.f32 0.0, %v494
      %v496 = vpop.f32.mrb[0].mxu0
      %v497 = vadd.f32 0.0, %v496
      %v498 = vpop.f32.mrb[0].mxu0
      %v499 = vadd.f32 0.0, %v498
      %v500 = vpop.f32.mrb[0].mxu0
      %v501 = vadd.f32 0.0, %v500
      %502 = vmatprep.mubr.bf16.mxu0 0
      %503 = vmatmul.mubr.bf16.gmra.mrb[0].mxu0 %v371
      %v504 = vpop.f32.mrb[0].mxu0
      %v505 = vadd.f32 0.0, %v504
      %v506 = vpop.f32.mrb[0].mxu0
      %v507 = vadd.f32 0.0, %v506
      %v508 = vpop.f32.mrb[0].mxu0
      %v509 = vadd.f32 0.0, %v508
      %v510 = vpop.f32.mrb[0].mxu0
      %v511 = vadd.f32 0.0, %v510
      %512 = vmatprep.mubr.bf16.mxu0 0
      %513 = vmatmul.mubr.bf16.gmra.mrb[0].mxu0 %v374
      %v514 = vpop.f32.mrb[0].mxu0
      %v515 = vadd.f32 0.0, %v514
      %v516 = vpop.f32.mrb[0].mxu0
      %v517 = vadd.f32 0.0, %v516
      %v518 = vpop.f32.mrb[0].mxu0
      %v519 = vadd.f32 0.0, %v518
      %v520 = vpop.f32.mrb[0].mxu0
      %v521 = vadd.f32 0.0, %v520
      %522 = vmatprep.mubr.bf16.mxu0 0
      %523 = vmatmul.mubr.bf16.gmra.mrb[0].mxu0 %v377
      %v524 = vpop.f32.mrb[0].mxu0
      %v525 = vadd.f32 0.0, %v524
      %v526 = vpop.f32.mrb[0].mxu0
      %v527 = vadd.f32 0.0, %v526
      %v528 = vpop.f32.mrb[0].mxu0
      %v529 = vadd.f32 0.0, %v528
      %v530 = vpop.f32.mrb[0].mxu0
      %v531 = vadd.f32 0.0, %v530
      %532 = vmatprep.mubr.bf16.mxu0 0
      %533 = vmatmul.mubr.bf16.gmra.mrb[0].mxu0 %v380
      %v534 = vpop.f32.mrb[0].mxu0
      %v535 = vadd.f32 0.0, %v534
      %v536 = vpop.f32.mrb[0].mxu0
      %v537 = vadd.f32 0.0, %v536
      %v538 = vpop.f32.mrb[0].mxu0
      %v539 = vadd.f32 0.0, %v538
      %v540 = vpop.f32.mrb[0].mxu0
      %v541 = vadd.f32 0.0, %v540
      %542 = vmatprep.mubr.bf16.mxu0 0
      %543 = vmatmul.mubr.bf16.gmra.mrb[0].mxu0 %v383
      %v544 = vpop.f32.mrb[0].mxu0
      %v545 = vadd.f32 0.0, %v544
      %v546 = vpop.f32.mrb[0].mxu0
      %v547 = vadd.f32 0.0, %v546
      %v548 = vpop.f32.mrb[0].mxu0
      %v549 = vadd.f32 0.0, %v548
      %v550 = vpop.f32.mrb[0].mxu0
      %v551 = vadd.f32 0.0, %v550
      %552 = vmatprep.mubr.bf16.mxu0 0
      %553 = vmatmul.mubr.bf16.gmra.mrb[0].mxu0 %v386
      %v554 = vpop.f32.mrb[0].mxu0
      %v555 = vadd.f32 0.0, %v554
      %v556 = vpop.f32.mrb[0].mxu0
      %v557 = vadd.f32 0.0, %v556
      %v558 = vpop.f32.mrb[0].mxu0
      %v559 = vadd.f32 0.0, %v558
      %v560 = vpop.f32.mrb[0].mxu0
      %v561 = vadd.f32 0.0, %v560
      %562 = vmatprep.mubr.bf16.mxu0 0
      %563 = vmatmul.mubr.bf16.gmra.mrb[0].mxu0 %v389
      %v564 = vpop.f32.mrb[0].mxu0
      %v565 = vadd.f32 0.0, %v564
      %v566 = vpop.f32.mrb[0].mxu0
      %v567 = vadd.f32 0.0, %v566
      %v568 = vpop.f32.mrb[0].mxu0
      %v569 = vadd.f32 0.0, %v568
      %v570 = vpop.f32.mrb[0].mxu0
      %v571 = vadd.f32 0.0, %v570
      %572 = vmatprep.mubr.bf16.mxu0 0
      %573 = vmatmul.mubr.bf16.gmra.mrb[0].mxu0 %v392
      %v574 = vpop.f32.mrb[0].mxu0
      %v575 = vadd.f32 0.0, %v574
      %v576 = vpop.f32.mrb[0].mxu0
      %v577 = vadd.f32 0.0, %v576
      %v578 = vpop.f32.mrb[0].mxu0
      %v579 = vadd.f32 0.0, %v578
      %v580 = vpop.f32.mrb[0].mxu0
      %v581 = vadd.f32 0.0, %v580
      %582 = vmatprep.mubr.bf16.mxu0 0
      %583 = vmatmul.mubr.bf16.gmra.mrb[0].mxu0 %v395
      %v584 = vpop.f32.mrb[0].mxu0
      %v585 = vadd.f32 0.0, %v584
      %v586 = vpop.f32.mrb[0].mxu0
      %v587 = vadd.f32 0.0, %v586
      %v588 = vpop.f32.mrb[0].mxu0
      %v589 = vadd.f32 0.0, %v588
      %v590 = vpop.f32.mrb[0].mxu0
      %v591 = vadd.f32 0.0, %v590
      %592 = vdwg.mxu0
      %v593 = vld [vmem:[%s2] sm:$0x1]
      %v595 = vlaneseq
      %v596 = vshrl.u32 %v595, 7
      %v597 = vsub.s32 0, %v596
      %v598 = vrot.slane %v593, %v597
      %v600 = vadd.f32 %v598, %v439
      %v601 = vadd.f32 %v598, %v442
      %v602 = vadd.f32 %v598, %v447
      %v603 = vadd.f32 %v598, %v450
      %v604 = vadd.f32 %v598, %v455
      %v605 = vadd.f32 %v598, %v459
      %v606 = vadd.f32 %v598, %v465
      %v607 = vadd.f32 %v598, %v469
      %v608 = vadd.f32 %v598, %v475
      %v609 = vadd.f32 %v598, %v479
      %v610 = vadd.f32 %v598, %v485
      %v611 = vadd.f32 %v598, %v489
      %v612 = vadd.f32 %v598, %v495
      %v613 = vadd.f32 %v598, %v499
      %v614 = vadd.f32 %v598, %v505
      %v615 = vadd.f32 %v598, %v509
      %v616 = vadd.f32 %v598, %v515
      %v617 = vadd.f32 %v598, %v519
      %v618 = vadd.f32 %v598, %v525
      %v619 = vadd.f32 %v598, %v529
      %v620 = vadd.f32 %v598, %v535
      %v621 = vadd.f32 %v598, %v539
      %v622 = vadd.f32 %v598, %v545
      %v623 = vadd.f32 %v598, %v549
      %v624 = vadd.f32 %v598, %v555
      %v625 = vadd.f32 %v598, %v559
      %v626 = vadd.f32 %v598, %v565
      %v627 = vadd.f32 %v598, %v569
      %vm656 = vcmask 1046528
      %v657 = vrot.slane %v439, 1
      %v658 = vrot.slane %v442, 1
      %v659 = vsel %vm656, %v657, %v658
      %v660 = vrot.slane %v447, 1
      %v661 = vsel %vm656, %v658, %v660
      %v662 = vrot.slane %v450, 1
      %v663 = vsel %vm656, %v660, %v662
      %v664 = vrot.slane %v455, 1
      %v665 = vsel %vm656, %v662, %v664
      %v666 = vrot.slane %v459, 1
      %v667 = vsel %vm656, %v664, %v666
      %v668 = vrot.slane %v465, 1
      %v669 = vsel %vm656, %v666, %v668
      %v670 = vrot.slane %v469, 1
      %v671 = vsel %vm656, %v668, %v670
      %v672 = vrot.slane %v475, 1
      %v673 = vsel %vm656, %v670, %v672
      %v674 = vrot.slane %v479, 1
      %v675 = vsel %vm656, %v672, %v674
      %v676 = vrot.slane %v485, 1
      %v677 = vsel %vm656, %v674, %v676
      %v678 = vrot.slane %v489, 1
      %v679 = vsel %vm656, %v676, %v678
      %v680 = vrot.slane %v495, 1
      %v681 = vsel %vm656, %v678, %v680
      %v682 = vrot.slane %v499, 1
      %v683 = vsel %vm656, %v680, %v682
      %v684 = vrot.slane %v505, 1
      %v685 = vsel %vm656, %v682, %v684
      %v686 = vrot.slane %v509, 1
      %v687 = vsel %vm656, %v684, %v686
      %v688 = vrot.slane %v515, 1
      %v689 = vsel %vm656, %v686, %v688
      %v690 = vrot.slane %v519, 1
      %v691 = vsel %vm656, %v688, %v690
      %v692 = vrot.slane %v525, 1
      %v693 = vsel %vm656, %v690, %v692
      %v694 = vrot.slane %v529, 1
      %v695 = vsel %vm656, %v692, %v694
      %v696 = vrot.slane %v535, 1
      %v697 = vsel %vm656, %v694, %v696
      %v698 = vrot.slane %v539, 1
      %v699 = vsel %vm656, %v696, %v698
      %v700 = vrot.slane %v545, 1
      %v701 = vsel %vm656, %v698, %v700
      %v702 = vrot.slane %v549, 1
      %v703 = vsel %vm656, %v700, %v702
      %v704 = vrot.slane %v555, 1
      %v705 = vsel %vm656, %v702, %v704
      %v706 = vrot.slane %v559, 1
      %v707 = vsel %vm656, %v704, %v706
      %v708 = vrot.slane %v565, 1
      %v709 = vsel %vm656, %v706, %v708
      %v710 = vrot.slane %v569, 1
      %v711 = vsel %vm656, %v708, %v710
      %712 = vrot.lane.b32.xlu0 %v659, 112
      %v713 = vpop.permute.xlu0 %712
      %714 = vrot.lane.b32.xlu0 %v661, 112
      %v715 = vpop.permute.xlu0 %714
      %716 = vrot.lane.b32.xlu0 %v663, 112
      %v717 = vpop.permute.xlu0 %716
      %718 = vrot.lane.b32.xlu0 %v665, 112
      %v719 = vpop.permute.xlu0 %718
      %720 = vrot.lane.b32.xlu0 %v667, 112
      %v721 = vpop.permute.xlu0 %720
      %722 = vrot.lane.b32.xlu0 %v669, 112
      %v723 = vpop.permute.xlu0 %722
      %724 = vrot.lane.b32.xlu0 %v671, 112
      %v725 = vpop.permute.xlu0 %724
      %726 = vrot.lane.b32.xlu0 %v673, 112
      %v727 = vpop.permute.xlu0 %726
      %728 = vrot.lane.b32.xlu0 %v675, 112
      %v729 = vpop.permute.xlu0 %728
      %730 = vrot.lane.b32.xlu0 %v677, 112
      %v731 = vpop.permute.xlu0 %730
      %732 = vrot.lane.b32.xlu0 %v679, 112
      %v733 = vpop.permute.xlu0 %732
      %734 = vrot.lane.b32.xlu0 %v681, 112
      %v735 = vpop.permute.xlu0 %734
      %736 = vrot.lane.b32.xlu0 %v683, 112
      %v737 = vpop.permute.xlu0 %736
      %738 = vrot.lane.b32.xlu0 %v685, 112
      %v739 = vpop.permute.xlu0 %738
      %740 = vrot.lane.b32.xlu0 %v687, 112
      %v741 = vpop.permute.xlu0 %740
      %742 = vrot.lane.b32.xlu0 %v689, 112
      %v743 = vpop.permute.xlu0 %742
      %744 = vrot.lane.b32.xlu0 %v691, 112
      %v745 = vpop.permute.xlu0 %744
      %746 = vrot.lane.b32.xlu0 %v693, 112
      %v747 = vpop.permute.xlu0 %746
      %748 = vrot.lane.b32.xlu0 %v695, 112
      %v749 = vpop.permute.xlu0 %748
      %750 = vrot.lane.b32.xlu0 %v697, 112
      %v751 = vpop.permute.xlu0 %750
      %752 = vrot.lane.b32.xlu0 %v699, 112
      %v753 = vpop.permute.xlu0 %752
      %754 = vrot.lane.b32.xlu0 %v701, 112
      %v755 = vpop.permute.xlu0 %754
      %756 = vrot.lane.b32.xlu0 %v703, 112
      %v757 = vpop.permute.xlu0 %756
      %758 = vrot.lane.b32.xlu0 %v705, 112
      %v759 = vpop.permute.xlu0 %758
      %760 = vrot.lane.b32.xlu0 %v707, 112
      %v761 = vpop.permute.xlu0 %760
      %762 = vrot.lane.b32.xlu0 %v709, 112
      %v763 = vpop.permute.xlu0 %762
      %764 = vrot.lane.b32.xlu0 %v711, 112
      %v765 = vpop.permute.xlu0 %764
      %766 = vrot.lane.b32.xlu0 %v710, 112
      %v767 = vpop.permute.xlu0 %766
      %v796 = vadd.f32 %v600, %v713
      %v797 = vadd.f32 %v601, %v715
      %v798 = vadd.f32 %v602, %v717
      %v799 = vadd.f32 %v603, %v719
      %v800 = vadd.f32 %v604, %v721
      %v801 = vadd.f32 %v605, %v723
      %v802 = vadd.f32 %v606, %v725
      %v803 = vadd.f32 %v607, %v727
      %v804 = vadd.f32 %v608, %v729
      %v805 = vadd.f32 %v609, %v731
      %v806 = vadd.f32 %v610, %v733
      %v807 = vadd.f32 %v611, %v735
      %v808 = vadd.f32 %v612, %v737
      %v809 = vadd.f32 %v613, %v739
      %v810 = vadd.f32 %v614, %v741
      %v811 = vadd.f32 %v615, %v743
      %v812 = vadd.f32 %v616, %v745
      %v813 = vadd.f32 %v617, %v747
      %v814 = vadd.f32 %v618, %v749
      %v815 = vadd.f32 %v619, %v751
      %v816 = vadd.f32 %v620, %v753
      %v817 = vadd.f32 %v621, %v755
      %v818 = vadd.f32 %v622, %v757
      %v819 = vadd.f32 %v623, %v759
      %v820 = vadd.f32 %v624, %v761
      %v821 = vadd.f32 %v625, %v763
      %v822 = vadd.f32 %v626, %v765
      %v823 = vadd.f32 %v627, %v767
      %vm824 = vcmask 1045504
      %v825 = vrot.slane %v439, 2
      %v826 = vrot.slane %v442, 2
      %v827 = vsel %vm824, %v825, %v826
      %v828 = vrot.slane %v447, 2
      %v829 = vsel %vm824, %v826, %v828
      %v830 = vrot.slane %v450, 2
      %v831 = vsel %vm824, %v828, %v830
      %v832 = vrot.slane %v455, 2
      %v833 = vsel %vm824, %v830, %v832
      %v834 = vrot.slane %v459, 2
      %v835 = vsel %vm824, %v832, %v834
      %v836 = vrot.slane %v465, 2
      %v837 = vsel %vm824, %v834, %v836
      %v838 = vrot.slane %v469, 2
      %v839 = vsel %vm824, %v836, %v838
      %v840 = vrot.slane %v475, 2
      %v841 = vsel %vm824, %v838, %v840
      %v842 = vrot.slane %v479, 2
      %v843 = vsel %vm824, %v840, %v842
      %v844 = vrot.slane %v485, 2
      %v845 = vsel %vm824, %v842, %v844
      %v846 = vrot.slane %v489, 2
      %v847 = vsel %vm824, %v844, %v846
      %v848 = vrot.slane %v495, 2
      %v849 = vsel %vm824, %v846, %v848
      %v850 = vrot.slane %v499, 2
      %v851 = vsel %vm824, %v848, %v850
      %v852 = vrot.slane %v505, 2
      %v853 = vsel %vm824, %v850, %v852
      %v854 = vrot.slane %v509, 2
      %v855 = vsel %vm824, %v852, %v854
      %v856 = vrot.slane %v515, 2
      %v857 = vsel %vm824, %v854, %v856
      %v858 = vrot.slane %v519, 2
      %v859 = vsel %vm824, %v856, %v858
      %v860 = vrot.slane %v525, 2
      %v861 = vsel %vm824, %v858, %v860
      %v862 = vrot.slane %v529, 2
      %v863 = vsel %vm824, %v860, %v862
      %v864 = vrot.slane %v535, 2
      %v865 = vsel %vm824, %v862, %v864
      %v866 = vrot.slane %v539, 2
      %v867 = vsel %vm824, %v864, %v866
      %v868 = vrot.slane %v545, 2
      %v869 = vsel %vm824, %v866, %v868
      %v870 = vrot.slane %v549, 2
      %v871 = vsel %vm824, %v868, %v870
      %v872 = vrot.slane %v555, 2
      %v873 = vsel %vm824, %v870, %v872
      %v874 = vrot.slane %v559, 2
      %v875 = vsel %vm824, %v872, %v874
      %v876 = vrot.slane %v565, 2
      %v877 = vsel %vm824, %v874, %v876
      %v878 = vrot.slane %v569, 2
      %v879 = vsel %vm824, %v876, %v878
      %880 = vrot.lane.b32.xlu0 %v827, 96
      %v881 = vpop.permute.xlu0 %880
      %882 = vrot.lane.b32.xlu0 %v829, 96
      %v883 = vpop.permute.xlu0 %882
      %884 = vrot.lane.b32.xlu0 %v831, 96
      %v885 = vpop.permute.xlu0 %884
      %886 = vrot.lane.b32.xlu0 %v833, 96
      %v887 = vpop.permute.xlu0 %886
      %888 = vrot.lane.b32.xlu0 %v835, 96
      %v889 = vpop.permute.xlu0 %888
      %890 = vrot.lane.b32.xlu0 %v837, 96
      %v891 = vpop.permute.xlu0 %890
      %892 = vrot.lane.b32.xlu0 %v839, 96
      %v893 = vpop.permute.xlu0 %892
      %894 = vrot.lane.b32.xlu0 %v841, 96
      %v895 = vpop.permute.xlu0 %894
      %896 = vrot.lane.b32.xlu0 %v843, 96
      %v897 = vpop.permute.xlu0 %896
      %898 = vrot.lane.b32.xlu0 %v845, 96
      %v899 = vpop.permute.xlu0 %898
      %900 = vrot.lane.b32.xlu0 %v847, 96
      %v901 = vpop.permute.xlu0 %900
      %902 = vrot.lane.b32.xlu0 %v849, 96
      %v903 = vpop.permute.xlu0 %902
      %904 = vrot.lane.b32.xlu0 %v851, 96
      %v905 = vpop.permute.xlu0 %904
      %906 = vrot.lane.b32.xlu0 %v853, 96
      %v907 = vpop.permute.xlu0 %906
      %908 = vrot.lane.b32.xlu0 %v855, 96
      %v909 = vpop.permute.xlu0 %908
      %910 = vrot.lane.b32.xlu0 %v857, 96
      %v911 = vpop.permute.xlu0 %910
      %912 = vrot.lane.b32.xlu0 %v859, 96
      %v913 = vpop.permute.xlu0 %912
      %914 = vrot.lane.b32.xlu0 %v861, 96
      %v915 = vpop.permute.xlu0 %914
      %916 = vrot.lane.b32.xlu0 %v863, 96
      %v917 = vpop.permute.xlu0 %916
      %918 = vrot.lane.b32.xlu0 %v865, 96
      %v919 = vpop.permute.xlu0 %918
      %920 = vrot.lane.b32.xlu0 %v867, 96
      %v921 = vpop.permute.xlu0 %920
      %922 = vrot.lane.b32.xlu0 %v869, 96
      %v923 = vpop.permute.xlu0 %922
      %924 = vrot.lane.b32.xlu0 %v871, 96
      %v925 = vpop.permute.xlu0 %924
      %926 = vrot.lane.b32.xlu0 %v873, 96
      %v927 = vpop.permute.xlu0 %926
      %928 = vrot.lane.b32.xlu0 %v875, 96
      %v929 = vpop.permute.xlu0 %928
      %930 = vrot.lane.b32.xlu0 %v877, 96
      %v931 = vpop.permute.xlu0 %930
      %932 = vrot.lane.b32.xlu0 %v879, 96
      %v933 = vpop.permute.xlu0 %932
      %934 = vrot.lane.b32.xlu0 %v878, 96
      %v935 = vpop.permute.xlu0 %934
      %v964 = vadd.f32 %v796, %v881
      %v965 = vadd.f32 %v797, %v883
      %v966 = vadd.f32 %v798, %v885
      %v967 = vadd.f32 %v799, %v887
      %v968 = vadd.f32 %v800, %v889
      %v969 = vadd.f32 %v801, %v891
      %v970 = vadd.f32 %v802, %v893
      %v971 = vadd.f32 %v803, %v895
      %v972 = vadd.f32 %v804, %v897
      %v973 = vadd.f32 %v805, %v899
      %v974 = vadd.f32 %v806, %v901
      %v975 = vadd.f32 %v807, %v903
      %v976 = vadd.f32 %v808, %v905
      %v977 = vadd.f32 %v809, %v907
      %v978 = vadd.f32 %v810, %v909
      %v979 = vadd.f32 %v811, %v911
      %v980 = vadd.f32 %v812, %v913
      %v981 = vadd.f32 %v813, %v915
      %v982 = vadd.f32 %v814, %v917
      %v983 = vadd.f32 %v815, %v919
      %v984 = vadd.f32 %v816, %v921
      %v985 = vadd.f32 %v817, %v923
      %v986 = vadd.f32 %v818, %v925
      %v987 = vadd.f32 %v819, %v927
      %v988 = vadd.f32 %v820, %v929
      %v989 = vadd.f32 %v821, %v931
      %v990 = vadd.f32 %v822, %v933
      %v991 = vadd.f32 %v823, %v935
      %994 = vrot.lane.b32.xlu0 %v447, 80
      %v995 = vpop.permute.xlu0 %994
      %996 = vrot.lane.b32.xlu0 %v450, 80
      %v997 = vpop.permute.xlu0 %996
      %998 = vrot.lane.b32.xlu0 %v455, 80
      %v999 = vpop.permute.xlu0 %998
      %1000 = vrot.lane.b32.xlu0 %v459, 80
      %v1001 = vpop.permute.xlu0 %1000
      %1002 = vrot.lane.b32.xlu0 %v465, 80
      %v1003 = vpop.permute.xlu0 %1002
      %1004 = vrot.lane.b32.xlu0 %v469, 80
      %v1005 = vpop.permute.xlu0 %1004
      %1006 = vrot.lane.b32.xlu0 %v475, 80
      %v1007 = vpop.permute.xlu0 %1006
      %1008 = vrot.lane.b32.xlu0 %v479, 80
      %v1009 = vpop.permute.xlu0 %1008
      %1010 = vrot.lane.b32.xlu0 %v485, 80
      %v1011 = vpop.permute.xlu0 %1010
      %1012 = vrot.lane.b32.xlu0 %v489, 80
      %v1013 = vpop.permute.xlu0 %1012
      %1014 = vrot.lane.b32.xlu0 %v495, 80
      %v1015 = vpop.permute.xlu0 %1014
      %1016 = vrot.lane.b32.xlu0 %v499, 80
      %v1017 = vpop.permute.xlu0 %1016
      %1018 = vrot.lane.b32.xlu0 %v505, 80
      %v1019 = vpop.permute.xlu0 %1018
      %1020 = vrot.lane.b32.xlu0 %v509, 80
      %v1021 = vpop.permute.xlu0 %1020
      %1022 = vrot.lane.b32.xlu0 %v515, 80
      %v1023 = vpop.permute.xlu0 %1022
      %1024 = vrot.lane.b32.xlu0 %v519, 80
      %v1025 = vpop.permute.xlu0 %1024
      %1026 = vrot.lane.b32.xlu0 %v525, 80
      %v1027 = vpop.permute.xlu0 %1026
      %1028 = vrot.lane.b32.xlu0 %v529, 80
      %v1029 = vpop.permute.xlu0 %1028
      %1030 = vrot.lane.b32.xlu0 %v535, 80
      %v1031 = vpop.permute.xlu0 %1030
      %1032 = vrot.lane.b32.xlu0 %v539, 80
      %v1033 = vpop.permute.xlu0 %1032
      %1034 = vrot.lane.b32.xlu0 %v545, 80
      %v1035 = vpop.permute.xlu0 %1034
      %1036 = vrot.lane.b32.xlu0 %v549, 80
      %v1037 = vpop.permute.xlu0 %1036
      %1038 = vrot.lane.b32.xlu0 %v555, 80
      %v1039 = vpop.permute.xlu0 %1038
      %1040 = vrot.lane.b32.xlu0 %v559, 80
      %v1041 = vpop.permute.xlu0 %1040
      %1042 = vrot.lane.b32.xlu0 %v565, 80
      %v1043 = vpop.permute.xlu0 %1042
      %1044 = vrot.lane.b32.xlu0 %v569, 80
      %v1045 = vpop.permute.xlu0 %1044
      %1046 = vrot.lane.b32.xlu0 %v575, 80
      %v1047 = vpop.permute.xlu0 %1046
      %1048 = vrot.lane.b32.xlu0 %v579, 80
      %v1049 = vpop.permute.xlu0 %1048
      %v1078 = vadd.f32 %v964, %v995
      %v1079 = vadd.f32 %v965, %v997
      %v1080 = vadd.f32 %v966, %v999
      %v1081 = vadd.f32 %v967, %v1001
      %v1082 = vadd.f32 %v968, %v1003
      %v1083 = vadd.f32 %v969, %v1005
      %v1084 = vadd.f32 %v970, %v1007
      %v1085 = vadd.f32 %v971, %v1009
      %v1086 = vadd.f32 %v972, %v1011
      %v1087 = vadd.f32 %v973, %v1013
      %v1088 = vadd.f32 %v974, %v1015
      %v1089 = vadd.f32 %v975, %v1017
      %v1090 = vadd.f32 %v976, %v1019
      %v1091 = vadd.f32 %v977, %v1021
      %v1092 = vadd.f32 %v978, %v1023
      %v1093 = vadd.f32 %v979, %v1025
      %v1094 = vadd.f32 %v980, %v1027
      %v1095 = vadd.f32 %v981, %v1029
      %v1096 = vadd.f32 %v982, %v1031
      %v1097 = vadd.f32 %v983, %v1033
      %v1098 = vadd.f32 %v984, %v1035
      %v1099 = vadd.f32 %v985, %v1037
      %v1100 = vadd.f32 %v986, %v1039
      %v1101 = vadd.f32 %v987, %v1041
      %v1102 = vadd.f32 %v988, %v1043
      %v1103 = vadd.f32 %v989, %v1045
      %v1104 = vadd.f32 %v990, %v1047
      %v1105 = vadd.f32 %v991, %v1049
      %v1106 = vrot.slane %v575, 1
      %v1107 = vsel %vm656, %v710, %v1106
      %v1108 = vrot.slane %v579, 1
      %v1109 = vsel %vm656, %v1106, %v1108
      %1110 = vrot.lane.b32.xlu0 %v663, 64
      %v1111 = vpop.permute.xlu0 %1110
      %1112 = vrot.lane.b32.xlu0 %v665, 64
      %v1113 = vpop.permute.xlu0 %1112
      %1114 = vrot.lane.b32.xlu0 %v667, 64
      %v1115 = vpop.permute.xlu0 %1114
      %1116 = vrot.lane.b32.xlu0 %v669, 64
      %v1117 = vpop.permute.xlu0 %1116
      %1118 = vrot.lane.b32.xlu0 %v671, 64
      %v1119 = vpop.permute.xlu0 %1118
      %1120 = vrot.lane.b32.xlu0 %v673, 64
      %v1121 = vpop.permute.xlu0 %1120
      %1122 = vrot.lane.b32.xlu0 %v675, 64
      %v1123 = vpop.permute.xlu0 %1122
      %1124 = vrot.lane.b32.xlu0 %v677, 64
      %v1125 = vpop.permute.xlu0 %1124
      %1126 = vrot.lane.b32.xlu0 %v679, 64
      %v1127 = vpop.permute.xlu0 %1126
      %1128 = vrot.lane.b32.xlu0 %v681, 64
      %v1129 = vpop.permute.xlu0 %1128
      %1130 = vrot.lane.b32.xlu0 %v683, 64
      %v1131 = vpop.permute.xlu0 %1130
      %1132 = vrot.lane.b32.xlu0 %v685, 64
      %v1133 = vpop.permute.xlu0 %1132
      %1134 = vrot.lane.b32.xlu0 %v687, 64
      %v1135 = vpop.permute.xlu0 %1134
      %1136 = vrot.lane.b32.xlu0 %v689, 64
      %v1137 = vpop.permute.xlu0 %1136
      %1138 = vrot.lane.b32.xlu0 %v691, 64
      %v1139 = vpop.permute.xlu0 %1138
      %1140 = vrot.lane.b32.xlu0 %v693, 64
      %v1141 = vpop.permute.xlu0 %1140
      %1142 = vrot.lane.b32.xlu0 %v695, 64
      %v1143 = vpop.permute.xlu0 %1142
      %1144 = vrot.lane.b32.xlu0 %v697, 64
      %v1145 = vpop.permute.xlu0 %1144
      %1146 = vrot.lane.b32.xlu0 %v699, 64
      %v1147 = vpop.permute.xlu0 %1146
      %1148 = vrot.lane.b32.xlu0 %v701, 64
      %v1149 = vpop.permute.xlu0 %1148
      %1150 = vrot.lane.b32.xlu0 %v703, 64
      %v1151 = vpop.permute.xlu0 %1150
      %1152 = vrot.lane.b32.xlu0 %v705, 64
      %v1153 = vpop.permute.xlu0 %1152
      %1154 = vrot.lane.b32.xlu0 %v707, 64
      %v1155 = vpop.permute.xlu0 %1154
      %1156 = vrot.lane.b32.xlu0 %v709, 64
      %v1157 = vpop.permute.xlu0 %1156
      %1158 = vrot.lane.b32.xlu0 %v711, 64
      %v1159 = vpop.permute.xlu0 %1158
      %1160 = vrot.lane.b32.xlu0 %v1107, 64
      %v1161 = vpop.permute.xlu0 %1160
      %1162 = vrot.lane.b32.xlu0 %v1109, 64
      %v1163 = vpop.permute.xlu0 %1162
      %1164 = vrot.lane.b32.xlu0 %v1108, 64
      %v1165 = vpop.permute.xlu0 %1164
      %v1194 = vadd.f32 %v1078, %v1111
      %v1195 = vadd.f32 %v1079, %v1113
      %v1196 = vadd.f32 %v1080, %v1115
      %v1197 = vadd.f32 %v1081, %v1117
      %v1198 = vadd.f32 %v1082, %v1119
      %v1199 = vadd.f32 %v1083, %v1121
      %v1200 = vadd.f32 %v1084, %v1123
      %v1201 = vadd.f32 %v1085, %v1125
      %v1202 = vadd.f32 %v1086, %v1127
      %v1203 = vadd.f32 %v1087, %v1129
      %v1204 = vadd.f32 %v1088, %v1131
      %v1205 = vadd.f32 %v1089, %v1133
      %v1206 = vadd.f32 %v1090, %v1135
      %v1207 = vadd.f32 %v1091, %v1137
      %v1208 = vadd.f32 %v1092, %v1139
      %v1209 = vadd.f32 %v1093, %v1141
      %v1210 = vadd.f32 %v1094, %v1143
      %v1211 = vadd.f32 %v1095, %v1145
      %v1212 = vadd.f32 %v1096, %v1147
      %v1213 = vadd.f32 %v1097, %v1149
      %v1214 = vadd.f32 %v1098, %v1151
      %v1215 = vadd.f32 %v1099, %v1153
      %v1216 = vadd.f32 %v1100, %v1155
      %v1217 = vadd.f32 %v1101, %v1157
      %v1218 = vadd.f32 %v1102, %v1159
      %v1219 = vadd.f32 %v1103, %v1161
      %v1220 = vadd.f32 %v1104, %v1163
      %v1221 = vadd.f32 %v1105, %v1165
      %v1222 = vrot.slane %v575, 2
      %v1223 = vsel %vm824, %v878, %v1222
      %v1224 = vrot.slane %v579, 2
      %v1225 = vsel %vm824, %v1222, %v1224
      %1226 = vrot.lane.b32.xlu0 %v831, 48
      %v1227 = vpop.permute.xlu0 %1226
      %1228 = vrot.lane.b32.xlu0 %v833, 48
      %v1229 = vpop.permute.xlu0 %1228
      %1230 = vrot.lane.b32.xlu0 %v835, 48
      %v1231 = vpop.permute.xlu0 %1230
      %1232 = vrot.lane.b32.xlu0 %v837, 48
      %v1233 = vpop.permute.xlu0 %1232
      %1234 = vrot.lane.b32.xlu0 %v839, 48
      %v1235 = vpop.permute.xlu0 %1234
      %1236 = vrot.lane.b32.xlu0 %v841, 48
      %v1237 = vpop.permute.xlu0 %1236
      %1238 = vrot.lane.b32.xlu0 %v843, 48
      %v1239 = vpop.permute.xlu0 %1238
      %1240 = vrot.lane.b32.xlu0 %v845, 48
      %v1241 = vpop.permute.xlu0 %1240
      %1242 = vrot.lane.b32.xlu0 %v847, 48
      %v1243 = vpop.permute.xlu0 %1242
      %1244 = vrot.lane.b32.xlu0 %v849, 48
      %v1245 = vpop.permute.xlu0 %1244
      %1246 = vrot.lane.b32.xlu0 %v851, 48
      %v1247 = vpop.permute.xlu0 %1246
      %1248 = vrot.lane.b32.xlu0 %v853, 48
      %v1249 = vpop.permute.xlu0 %1248
      %1250 = vrot.lane.b32.xlu0 %v855, 48
      %v1251 = vpop.permute.xlu0 %1250
      %1252 = vrot.lane.b32.xlu0 %v857, 48
      %v1253 = vpop.permute.xlu0 %1252
      %1254 = vrot.lane.b32.xlu0 %v859, 48
      %v1255 = vpop.permute.xlu0 %1254
      %1256 = vrot.lane.b32.xlu0 %v861, 48
      %v1257 = vpop.permute.xlu0 %1256
      %1258 = vrot.lane.b32.xlu0 %v863, 48
      %v1259 = vpop.permute.xlu0 %1258
      %1260 = vrot.lane.b32.xlu0 %v865, 48
      %v1261 = vpop.permute.xlu0 %1260
      %1262 = vrot.lane.b32.xlu0 %v867, 48
      %v1263 = vpop.permute.xlu0 %1262
      %1264 = vrot.lane.b32.xlu0 %v869, 48
      %v1265 = vpop.permute.xlu0 %1264
      %1266 = vrot.lane.b32.xlu0 %v871, 48
      %v1267 = vpop.permute.xlu0 %1266
      %1268 = vrot.lane.b32.xlu0 %v873, 48
      %v1269 = vpop.permute.xlu0 %1268
      %1270 = vrot.lane.b32.xlu0 %v875, 48
      %v1271 = vpop.permute.xlu0 %1270
      %1272 = vrot.lane.b32.xlu0 %v877, 48
      %v1273 = vpop.permute.xlu0 %1272
      %1274 = vrot.lane.b32.xlu0 %v879, 48
      %v1275 = vpop.permute.xlu0 %1274
      %1276 = vrot.lane.b32.xlu0 %v1223, 48
      %v1277 = vpop.permute.xlu0 %1276
      %1278 = vrot.lane.b32.xlu0 %v1225, 48
      %v1279 = vpop.permute.xlu0 %1278
      %1280 = vrot.lane.b32.xlu0 %v1224, 48
      %v1281 = vpop.permute.xlu0 %1280
      %v1310 = vadd.f32 %v1194, %v1227
      %v1311 = vadd.f32 %v1195, %v1229
      %v1312 = vadd.f32 %v1196, %v1231
      %v1313 = vadd.f32 %v1197, %v1233
      %v1314 = vadd.f32 %v1198, %v1235
      %v1315 = vadd.f32 %v1199, %v1237
      %v1316 = vadd.f32 %v1200, %v1239
      %v1317 = vadd.f32 %v1201, %v1241
      %v1318 = vadd.f32 %v1202, %v1243
      %v1319 = vadd.f32 %v1203, %v1245
      %v1320 = vadd.f32 %v1204, %v1247
      %v1321 = vadd.f32 %v1205, %v1249
      %v1322 = vadd.f32 %v1206, %v1251
      %v1323 = vadd.f32 %v1207, %v1253
      %v1324 = vadd.f32 %v1208, %v1255
      %v1325 = vadd.f32 %v1209, %v1257
      %v1326 = vadd.f32 %v1210, %v1259
      %v1327 = vadd.f32 %v1211, %v1261
      %v1328 = vadd.f32 %v1212, %v1263
      %v1329 = vadd.f32 %v1213, %v1265
      %v1330 = vadd.f32 %v1214, %v1267
      %v1331 = vadd.f32 %v1215, %v1269
      %v1332 = vadd.f32 %v1216, %v1271
      %v1333 = vadd.f32 %v1217, %v1273
      %v1334 = vadd.f32 %v1218, %v1275
      %v1335 = vadd.f32 %v1219, %v1277
      %v1336 = vadd.f32 %v1220, %v1279
      %v1337 = vadd.f32 %v1221, %v1281
      %1340 = vrot.lane.b32.xlu0 %v455, 32
      %v1341 = vpop.permute.xlu0 %1340
      %1342 = vrot.lane.b32.xlu0 %v459, 32
      %v1343 = vpop.permute.xlu0 %1342
      %1344 = vrot.lane.b32.xlu0 %v465, 32
      %v1345 = vpop.permute.xlu0 %1344
      %1346 = vrot.lane.b32.xlu0 %v469, 32
      %v1347 = vpop.permute.xlu0 %1346
      %1348 = vrot.lane.b32.xlu0 %v475, 32
      %v1349 = vpop.permute.xlu0 %1348
      %1350 = vrot.lane.b32.xlu0 %v479, 32
      %v1351 = vpop.permute.xlu0 %1350
      %1352 = vrot.lane.b32.xlu0 %v485, 32
      %v1353 = vpop.permute.xlu0 %1352
      %1354 = vrot.lane.b32.xlu0 %v489, 32
      %v1355 = vpop.permute.xlu0 %1354
      %1356 = vrot.lane.b32.xlu0 %v495, 32
      %v1357 = vpop.permute.xlu0 %1356
      %1358 = vrot.lane.b32.xlu0 %v499, 32
      %v1359 = vpop.permute.xlu0 %1358
      %1360 = vrot.lane.b32.xlu0 %v505, 32
      %v1361 = vpop.permute.xlu0 %1360
      %1362 = vrot.lane.b32.xlu0 %v509, 32
      %v1363 = vpop.permute.xlu0 %1362
      %1364 = vrot.lane.b32.xlu0 %v515, 32
      %v1365 = vpop.permute.xlu0 %1364
      %1366 = vrot.lane.b32.xlu0 %v519, 32
      %v1367 = vpop.permute.xlu0 %1366
      %1368 = vrot.lane.b32.xlu0 %v525, 32
      %v1369 = vpop.permute.xlu0 %1368
      %1370 = vrot.lane.b32.xlu0 %v529, 32
      %v1371 = vpop.permute.xlu0 %1370
      %1372 = vrot.lane.b32.xlu0 %v535, 32
      %v1373 = vpop.permute.xlu0 %1372
      %1374 = vrot.lane.b32.xlu0 %v539, 32
      %v1375 = vpop.permute.xlu0 %1374
      %1376 = vrot.lane.b32.xlu0 %v545, 32
      %v1377 = vpop.permute.xlu0 %1376
      %1378 = vrot.lane.b32.xlu0 %v549, 32
      %v1379 = vpop.permute.xlu0 %1378
      %1380 = vrot.lane.b32.xlu0 %v555, 32
      %v1381 = vpop.permute.xlu0 %1380
      %1382 = vrot.lane.b32.xlu0 %v559, 32
      %v1383 = vpop.permute.xlu0 %1382
      %1384 = vrot.lane.b32.xlu0 %v565, 32
      %v1385 = vpop.permute.xlu0 %1384
      %1386 = vrot.lane.b32.xlu0 %v569, 32
      %v1387 = vpop.permute.xlu0 %1386
      %1388 = vrot.lane.b32.xlu0 %v575, 32
      %v1389 = vpop.permute.xlu0 %1388
      %1390 = vrot.lane.b32.xlu0 %v579, 32
      %v1391 = vpop.permute.xlu0 %1390
      %1392 = vrot.lane.b32.xlu0 %v585, 32
      %v1393 = vpop.permute.xlu0 %1392
      %1394 = vrot.lane.b32.xlu0 %v589, 32
      %v1395 = vpop.permute.xlu0 %1394
      %v1424 = vadd.f32 %v1310, %v1341
      %v1425 = vadd.f32 %v1311, %v1343
      %v1426 = vadd.f32 %v1312, %v1345
      %v1427 = vadd.f32 %v1313, %v1347
      %v1428 = vadd.f32 %v1314, %v1349
      %v1429 = vadd.f32 %v1315, %v1351
      %v1430 = vadd.f32 %v1316, %v1353
      %v1431 = vadd.f32 %v1317, %v1355
      %v1432 = vadd.f32 %v1318, %v1357
      %v1433 = vadd.f32 %v1319, %v1359
      %v1434 = vadd.f32 %v1320, %v1361
      %v1435 = vadd.f32 %v1321, %v1363
      %v1436 = vadd.f32 %v1322, %v1365
      %v1437 = vadd.f32 %v1323, %v1367
      %v1438 = vadd.f32 %v1324, %v1369
      %v1439 = vadd.f32 %v1325, %v1371
      %v1440 = vadd.f32 %v1326, %v1373
      %v1441 = vadd.f32 %v1327, %v1375
      %v1442 = vadd.f32 %v1328, %v1377
      %v1443 = vadd.f32 %v1329, %v1379
      %v1444 = vadd.f32 %v1330, %v1381
      %v1445 = vadd.f32 %v1331, %v1383
      %v1446 = vadd.f32 %v1332, %v1385
      %v1447 = vadd.f32 %v1333, %v1387
      %v1448 = vadd.f32 %v1334, %v1389
      %v1449 = vadd.f32 %v1335, %v1391
      %v1450 = vadd.f32 %v1336, %v1393
      %v1451 = vadd.f32 %v1337, %v1395
      %v1452 = vrot.slane %v585, 1
      %v1453 = vsel %vm656, %v1108, %v1452
      %v1454 = vrot.slane %v589, 1
      %v1455 = vsel %vm656, %v1452, %v1454
      %1456 = vrot.lane.b32.xlu0 %v667, 16
      %v1457 = vpop.permute.xlu0 %1456
      %1458 = vrot.lane.b32.xlu0 %v669, 16
      %v1459 = vpop.permute.xlu0 %1458
      %1460 = vrot.lane.b32.xlu0 %v671, 16
      %v1461 = vpop.permute.xlu0 %1460
      %1462 = vrot.lane.b32.xlu0 %v673, 16
      %v1463 = vpop.permute.xlu0 %1462
      %1464 = vrot.lane.b32.xlu0 %v675, 16
      %v1465 = vpop.permute.xlu0 %1464
      %1466 = vrot.lane.b32.xlu0 %v677, 16
      %v1467 = vpop.permute.xlu0 %1466
      %1468 = vrot.lane.b32.xlu0 %v679, 16
      %v1469 = vpop.permute.xlu0 %1468
      %1470 = vrot.lane.b32.xlu0 %v681, 16
      %v1471 = vpop.permute.xlu0 %1470
      %1472 = vrot.lane.b32.xlu0 %v683, 16
      %v1473 = vpop.permute.xlu0 %1472
      %1474 = vrot.lane.b32.xlu0 %v685, 16
      %v1475 = vpop.permute.xlu0 %1474
      %1476 = vrot.lane.b32.xlu0 %v687, 16
      %v1477 = vpop.permute.xlu0 %1476
      %1478 = vrot.lane.b32.xlu0 %v689, 16
      %v1479 = vpop.permute.xlu0 %1478
      %1480 = vrot.lane.b32.xlu0 %v691, 16
      %v1481 = vpop.permute.xlu0 %1480
      %1482 = vrot.lane.b32.xlu0 %v693, 16
      %v1483 = vpop.permute.xlu0 %1482
      %1484 = vrot.lane.b32.xlu0 %v695, 16
      %v1485 = vpop.permute.xlu0 %1484
      %1486 = vrot.lane.b32.xlu0 %v697, 16
      %v1487 = vpop.permute.xlu0 %1486
      %1488 = vrot.lane.b32.xlu0 %v699, 16
      %v1489 = vpop.permute.xlu0 %1488
      %1490 = vrot.lane.b32.xlu0 %v701, 16
      %v1491 = vpop.permute.xlu0 %1490
      %1492 = vrot.lane.b32.xlu0 %v703, 16
      %v1493 = vpop.permute.xlu0 %1492
      %1494 = vrot.lane.b32.xlu0 %v705, 16
      %v1495 = vpop.permute.xlu0 %1494
      %1496 = vrot.lane.b32.xlu0 %v707, 16
      %v1497 = vpop.permute.xlu0 %1496
      %1498 = vrot.lane.b32.xlu0 %v709, 16
      %v1499 = vpop.permute.xlu0 %1498
      %1500 = vrot.lane.b32.xlu0 %v711, 16
      %v1501 = vpop.permute.xlu0 %1500
      %1502 = vrot.lane.b32.xlu0 %v1107, 16
      %v1503 = vpop.permute.xlu0 %1502
      %1504 = vrot.lane.b32.xlu0 %v1109, 16
      %v1505 = vpop.permute.xlu0 %1504
      %1506 = vrot.lane.b32.xlu0 %v1453, 16
      %v1507 = vpop.permute.xlu0 %1506
      %1508 = vrot.lane.b32.xlu0 %v1455, 16
      %v1509 = vpop.permute.xlu0 %1508
      %1510 = vrot.lane.b32.xlu0 %v1454, 16
      %v1511 = vpop.permute.xlu0 %1510
      %v1540 = vadd.f32 %v1424, %v1457
      %v1541 = vadd.f32 %v1425, %v1459
      %v1542 = vadd.f32 %v1426, %v1461
      %v1543 = vadd.f32 %v1427, %v1463
      %v1544 = vadd.f32 %v1428, %v1465
      %v1545 = vadd.f32 %v1429, %v1467
      %v1546 = vadd.f32 %v1430, %v1469
      %v1547 = vadd.f32 %v1431, %v1471
      %v1548 = vadd.f32 %v1432, %v1473
      %v1549 = vadd.f32 %v1433, %v1475
      %v1550 = vadd.f32 %v1434, %v1477
      %v1551 = vadd.f32 %v1435, %v1479
      %v1552 = vadd.f32 %v1436, %v1481
      %v1553 = vadd.f32 %v1437, %v1483
      %v1554 = vadd.f32 %v1438, %v1485
      %v1555 = vadd.f32 %v1439, %v1487
      %v1556 = vadd.f32 %v1440, %v1489
      %v1557 = vadd.f32 %v1441, %v1491
      %v1558 = vadd.f32 %v1442, %v1493
      %v1559 = vadd.f32 %v1443, %v1495
      %v1560 = vadd.f32 %v1444, %v1497
      %v1561 = vadd.f32 %v1445, %v1499
      %v1562 = vadd.f32 %v1446, %v1501
      %v1563 = vadd.f32 %v1447, %v1503
      %v1564 = vadd.f32 %v1448, %v1505
      %v1565 = vadd.f32 %v1449, %v1507
      %v1566 = vadd.f32 %v1450, %v1509
      %v1567 = vadd.f32 %v1451, %v1511
      %v1596 = vrot.slane %v457, 2
      %v1597 = vrot.slane %v461, 2
      %v1598 = vsel %vm824, %v1596, %v1597
      %v1599 = vrot.slane %v467, 2
      %v1600 = vsel %vm824, %v1597, %v1599
      %v1601 = vrot.slane %v471, 2
      %v1602 = vsel %vm824, %v1599, %v1601
      %v1603 = vrot.slane %v477, 2
      %v1604 = vsel %vm824, %v1601, %v1603
      %v1605 = vrot.slane %v481, 2
      %v1606 = vsel %vm824, %v1603, %v1605
      %v1607 = vrot.slane %v487, 2
      %v1608 = vsel %vm824, %v1605, %v1607
      %v1609 = vrot.slane %v491, 2
      %v1610 = vsel %vm824, %v1607, %v1609
      %v1611 = vrot.slane %v497, 2
      %v1612 = vsel %vm824, %v1609, %v1611
      %v1613 = vrot.slane %v501, 2
      %v1614 = vsel %vm824, %v1611, %v1613
      %v1615 = vrot.slane %v507, 2
      %v1616 = vsel %vm824, %v1613, %v1615
      %v1617 = vrot.slane %v511, 2
      %v1618 = vsel %vm824, %v1615, %v1617
      %v1619 = vrot.slane %v517, 2
      %v1620 = vsel %vm824, %v1617, %v1619
      %v1621 = vrot.slane %v521, 2
      %v1622 = vsel %vm824, %v1619, %v1621
      %v1623 = vrot.slane %v527, 2
      %v1624 = vsel %vm824, %v1621, %v1623
      %v1625 = vrot.slane %v531, 2
      %v1626 = vsel %vm824, %v1623, %v1625
      %v1627 = vrot.slane %v537, 2
      %v1628 = vsel %vm824, %v1625, %v1627
      %v1629 = vrot.slane %v541, 2
      %v1630 = vsel %vm824, %v1627, %v1629
      %v1631 = vrot.slane %v547, 2
      %v1632 = vsel %vm824, %v1629, %v1631
      %v1633 = vrot.slane %v551, 2
      %v1634 = vsel %vm824, %v1631, %v1633
      %v1635 = vrot.slane %v557, 2
      %v1636 = vsel %vm824, %v1633, %v1635
      %v1637 = vrot.slane %v561, 2
      %v1638 = vsel %vm824, %v1635, %v1637
      %v1639 = vrot.slane %v567, 2
      %v1640 = vsel %vm824, %v1637, %v1639
      %v1641 = vrot.slane %v571, 2
      %v1642 = vsel %vm824, %v1639, %v1641
      %v1643 = vrot.slane %v577, 2
      %v1644 = vsel %vm824, %v1641, %v1643
      %v1645 = vrot.slane %v581, 2
      %v1646 = vsel %vm824, %v1643, %v1645
      %v1647 = vrot.slane %v587, 2
      %v1648 = vsel %vm824, %v1645, %v1647
      %v1649 = vrot.slane %v591, 2
      %v1650 = vsel %vm824, %v1647, %v1649
      %v1679 = vadd.f32 %v1540, %v1598
      %v1680 = vadd.f32 %v1541, %v1600
      %v1681 = vadd.f32 %v1542, %v1602
      %v1682 = vadd.f32 %v1543, %v1604
      %v1683 = vadd.f32 %v1544, %v1606
      %v1684 = vadd.f32 %v1545, %v1608
      %v1685 = vadd.f32 %v1546, %v1610
      %v1686 = vadd.f32 %v1547, %v1612
      %v1687 = vadd.f32 %v1548, %v1614
      %v1688 = vadd.f32 %v1549, %v1616
      %v1689 = vadd.f32 %v1550, %v1618
      %v1690 = vadd.f32 %v1551, %v1620
      %v1691 = vadd.f32 %v1552, %v1622
      %v1692 = vadd.f32 %v1553, %v1624
      %v1693 = vadd.f32 %v1554, %v1626
      %v1694 = vadd.f32 %v1555, %v1628
      %v1695 = vadd.f32 %v1556, %v1630
      %v1696 = vadd.f32 %v1557, %v1632
      %v1697 = vadd.f32 %v1558, %v1634
      %v1698 = vadd.f32 %v1559, %v1636
      %v1699 = vadd.f32 %v1560, %v1638
      %v1700 = vadd.f32 %v1561, %v1640
      %v1701 = vadd.f32 %v1562, %v1642
      %v1702 = vadd.f32 %v1563, %v1644
      %v1703 = vadd.f32 %v1564, %v1646
      %v1704 = vadd.f32 %v1565, %v1648
      %v1705 = vadd.f32 %v1566, %v1650
      %v1706 = vadd.f32 %v1567, %v1649
      %vm1707 = vcmp.gt.f32.partialorder %v1679, 0.0
      %vm1708 = vcmp.gt.f32.partialorder %v1680, 0.0
      %vm1709 = vcmp.gt.f32.partialorder %v1681, 0.0
      %vm1710 = vcmp.gt.f32.partialorder %v1682, 0.0
      %vm1711 = vcmp.gt.f32.partialorder %v1683, 0.0
      %vm1712 = vcmp.gt.f32.partialorder %v1684, 0.0
      %vm1713 = vcmp.gt.f32.partialorder %v1685, 0.0
      %vm1714 = vcmp.gt.f32.partialorder %v1686, 0.0
      %vm1715 = vcmp.gt.f32.partialorder %v1687, 0.0
      %vm1716 = vcmp.gt.f32.partialorder %v1688, 0.0
      %vm1717 = vcmp.gt.f32.partialorder %v1689, 0.0
      %vm1718 = vcmp.gt.f32.partialorder %v1690, 0.0
      %vm1719 = vcmp.gt.f32.partialorder %v1691, 0.0
      %vm1720 = vcmp.gt.f32.partialorder %v1692, 0.0
      %vm1721 = vcmp.gt.f32.partialorder %v1693, 0.0
      %vm1722 = vcmp.gt.f32.partialorder %v1694, 0.0
      %vm1723 = vcmp.gt.f32.partialorder %v1695, 0.0
      %vm1724 = vcmp.gt.f32.partialorder %v1696, 0.0
      %vm1725 = vcmp.gt.f32.partialorder %v1697, 0.0
      %vm1726 = vcmp.gt.f32.partialorder %v1698, 0.0
      %vm1727 = vcmp.gt.f32.partialorder %v1699, 0.0
      %vm1728 = vcmp.gt.f32.partialorder %v1700, 0.0
      %vm1729 = vcmp.gt.f32.partialorder %v1701, 0.0
      %vm1730 = vcmp.gt.f32.partialorder %v1702, 0.0
      %vm1731 = vcmp.gt.f32.partialorder %v1703, 0.0
      %vm1732 = vcmp.gt.f32.partialorder %v1704, 0.0
      %vm1733 = vcmp.gt.f32.partialorder %v1705, 0.0
      %vm1734 = vcmp.gt.f32.partialorder %v1706, 0.0
      %v1735 = vmin.f32 %v1679, 0.0
      %v1736 = vmin.f32 %v1680, 0.0
      %v1737 = vmin.f32 %v1681, 0.0
      %v1738 = vmin.f32 %v1682, 0.0
      %v1739 = vmin.f32 %v1683, 0.0
      %v1740 = vmin.f32 %v1684, 0.0
      %v1741 = vmin.f32 %v1685, 0.0
      %v1742 = vmin.f32 %v1686, 0.0
      %v1743 = vmin.f32 %v1687, 0.0
      %v1744 = vmin.f32 %v1688, 0.0
      %v1745 = vmin.f32 %v1689, 0.0
      %v1746 = vmin.f32 %v1690, 0.0
      %v1747 = vmin.f32 %v1691, 0.0
      %v1748 = vmin.f32 %v1692, 0.0
      %v1749 = vmin.f32 %v1693, 0.0
      %v1750 = vmin.f32 %v1694, 0.0
      %v1751 = vmin.f32 %v1695, 0.0
      %v1752 = vmin.f32 %v1696, 0.0
      %v1753 = vmin.f32 %v1697, 0.0
      %v1754 = vmin.f32 %v1698, 0.0
      %v1755 = vmin.f32 %v1699, 0.0
      %v1756 = vmin.f32 %v1700, 0.0
      %v1757 = vmin.f32 %v1701, 0.0
      %v1758 = vmin.f32 %v1702, 0.0
      %v1759 = vmin.f32 %v1703, 0.0
      %v1760 = vmin.f32 %v1704, 0.0
      %v1761 = vmin.f32 %v1705, 0.0
      %v1762 = vmin.f32 %v1706, 0.0
      %v1763 = vmul.f32 %v1735, 1.442695
      %v1764 = vpow.pop %v1763
      %v1765 = vmul.f32 %v1736, 1.442695
      %v1766 = vpow.pop %v1765
      %v1767 = vmul.f32 %v1737, 1.442695
      %v1768 = vpow.pop %v1767
      %v1769 = vmul.f32 %v1738, 1.442695
      %v1770 = vpow.pop %v1769
      %v1771 = vmul.f32 %v1739, 1.442695
      %v1772 = vpow.pop %v1771
      %v1773 = vmul.f32 %v1740, 1.442695
      %v1774 = vpow.pop %v1773
      %v1775 = vmul.f32 %v1741, 1.442695
      %v1776 = vpow.pop %v1775
      %v1777 = vmul.f32 %v1742, 1.442695
      %v1778 = vpow.pop %v1777
      %v1779 = vmul.f32 %v1743, 1.442695
      %v1780 = vpow.pop %v1779
      %v1781 = vmul.f32 %v1744, 1.442695
      %v1782 = vpow.pop %v1781
      %v1783 = vmul.f32 %v1745, 1.442695
      %v1784 = vpow.pop %v1783
      %v1785 = vmul.f32 %v1746, 1.442695
      %v1786 = vpow.pop %v1785
      %v1787 = vmul.f32 %v1747, 1.442695
      %v1788 = vpow.pop %v1787
      %v1789 = vmul.f32 %v1748, 1.442695
      %v1790 = vpow.pop %v1789
      %v1791 = vmul.f32 %v1749, 1.442695
      %v1792 = vpow.pop %v1791
      %v1793 = vmul.f32 %v1750, 1.442695
      %v1794 = vpow.pop %v1793
      %v1795 = vmul.f32 %v1751, 1.442695
      %v1796 = vpow.pop %v1795
      %v1797 = vmul.f32 %v1752, 1.442695
      %v1798 = vpow.pop %v1797
      %v1799 = vmul.f32 %v1753, 1.442695
      %v1800 = vpow.pop %v1799
      %v1801 = vmul.f32 %v1754, 1.442695
      %v1802 = vpow.pop %v1801
      %v1803 = vmul.f32 %v1755, 1.442695
      %v1804 = vpow.pop %v1803
      %v1805 = vmul.f32 %v1756, 1.442695
      %v1806 = vpow.pop %v1805
      %v1807 = vmul.f32 %v1757, 1.442695
      %v1808 = vpow.pop %v1807
      %v1809 = vmul.f32 %v1758, 1.442695
      %v1810 = vpow.pop %v1809
      %v1811 = vmul.f32 %v1759, 1.442695
      %v1812 = vpow.pop %v1811
      %v1813 = vmul.f32 %v1760, 1.442695
      %v1814 = vpow.pop %v1813
      %v1815 = vmul.f32 %v1761, 1.442695
      %v1816 = vpow.pop %v1815
      %v1817 = vmul.f32 %v1762, 1.442695
      %v1818 = vpow.pop %v1817
      %v1819 = vsub.f32 %v1764, 1.0
      %v1820 = vsub.f32 %v1766, 1.0
      %v1821 = vsub.f32 %v1768, 1.0
      %v1822 = vsub.f32 %v1770, 1.0
      %v1823 = vsub.f32 %v1772, 1.0
      %v1824 = vsub.f32 %v1774, 1.0
      %v1825 = vsub.f32 %v1776, 1.0
      %v1826 = vsub.f32 %v1778, 1.0
      %v1827 = vsub.f32 %v1780, 1.0
      %v1828 = vsub.f32 %v1782, 1.0
      %v1829 = vsub.f32 %v1784, 1.0
      %v1830 = vsub.f32 %v1786, 1.0
      %v1831 = vsub.f32 %v1788, 1.0
      %v1832 = vsub.f32 %v1790, 1.0
      %v1833 = vsub.f32 %v1792, 1.0
      %v1834 = vsub.f32 %v1794, 1.0
      %v1835 = vsub.f32 %v1796, 1.0
      %v1836 = vsub.f32 %v1798, 1.0
      %v1837 = vsub.f32 %v1800, 1.0
      %v1838 = vsub.f32 %v1802, 1.0
      %v1839 = vsub.f32 %v1804, 1.0
      %v1840 = vsub.f32 %v1806, 1.0
      %v1841 = vsub.f32 %v1808, 1.0
      %v1842 = vsub.f32 %v1810, 1.0
      %v1843 = vsub.f32 %v1812, 1.0
      %v1844 = vsub.f32 %v1814, 1.0
      %v1845 = vsub.f32 %v1816, 1.0
      %v1846 = vsub.f32 %v1818, 1.0
      %v1847 = vsel %vm1707, %v1679, %v1819
      %v1848 = vsel %vm1708, %v1680, %v1820
      %v1849 = vsel %vm1709, %v1681, %v1821
      %v1850 = vsel %vm1710, %v1682, %v1822
      %v1851 = vsel %vm1711, %v1683, %v1823
      %v1852 = vsel %vm1712, %v1684, %v1824
      %v1853 = vsel %vm1713, %v1685, %v1825
      %v1854 = vsel %vm1714, %v1686, %v1826
      %v1855 = vsel %vm1715, %v1687, %v1827
      %v1856 = vsel %vm1716, %v1688, %v1828
      %v1857 = vsel %vm1717, %v1689, %v1829
      %v1858 = vsel %vm1718, %v1690, %v1830
      %v1859 = vsel %vm1719, %v1691, %v1831
      %v1860 = vsel %vm1720, %v1692, %v1832
      %v1861 = vsel %vm1721, %v1693, %v1833
      %v1862 = vsel %vm1722, %v1694, %v1834
      %v1863 = vsel %vm1723, %v1695, %v1835
      %v1864 = vsel %vm1724, %v1696, %v1836
      %v1865 = vsel %vm1725, %v1697, %v1837
      %v1866 = vsel %vm1726, %v1698, %v1838
      %v1867 = vsel %vm1727, %v1699, %v1839
      %v1868 = vsel %vm1728, %v1700, %v1840
      %v1869 = vsel %vm1729, %v1701, %v1841
      %v1870 = vsel %vm1730, %v1702, %v1842
      %v1871 = vsel %vm1731, %v1703, %v1843
      %v1872 = vsel %vm1732, %v1704, %v1844
      %v1873 = vsel %vm1733, %v1705, %v1845
      %v1874 = vsel %vm1734, %v1706, %v1846
      %v1875 = vpack.c.bf16 %v1848, %v1847
      %v1876 = vpack.c.bf16 %v1850, %v1849
      %v1877 = vpack.c.bf16 %v1852, %v1851
      %v1878 = vpack.c.bf16 %v1854, %v1853
      %v1879 = vpack.c.bf16 %v1856, %v1855
      %v1880 = vpack.c.bf16 %v1858, %v1857
      %v1881 = vpack.c.bf16 %v1860, %v1859
      %v1882 = vpack.c.bf16 %v1862, %v1861
      %v1883 = vpack.c.bf16 %v1864, %v1863
      %v1884 = vpack.c.bf16 %v1866, %v1865
      %v1885 = vpack.c.bf16 %v1868, %v1867
      %v1886 = vpack.c.bf16 %v1870, %v1869
      %v1887 = vpack.c.bf16 %v1872, %v1871
      %v1888 = vpack.c.bf16 %v1874, %v1873
      %vm1889 = vcmask 130048
      %1890 = vst.msk [vmem:[#allocation2] sm:$0xff] %vm1889, %v1875
      %1891 = vst.msk [vmem:[#allocation2 + $0x8] sm:$0xff] %vm1889, %v1876
      %1892 = vst.msk [vmem:[#allocation2 + $0x10] sm:$0xff] %vm1889, %v1877
      %1893 = vst.msk [vmem:[#allocation2 + $0x18] sm:$0xff] %vm1889, %v1878
      %1894 = vst.msk [vmem:[#allocation2 + $0x20] sm:$0xff] %vm1889, %v1879
      %1895 = vst.msk [vmem:[#allocation2 + $0x28] sm:$0xff] %vm1889, %v1880
      %1896 = vst.msk [vmem:[#allocation2 + $0x30] sm:$0xff] %vm1889, %v1881
      %1897 = vst.msk [vmem:[#allocation2 + $0x38] sm:$0xff] %vm1889, %v1882
      %1898 = vst.msk [vmem:[#allocation2 + $0x40] sm:$0xff] %vm1889, %v1883
      %1899 = vst.msk [vmem:[#allocation2 + $0x48] sm:$0xff] %vm1889, %v1884
      %1900 = vst.msk [vmem:[#allocation2 + $0x50] sm:$0xff] %vm1889, %v1885
      %1901 = vst.msk [vmem:[#allocation2 + $0x58] sm:$0xff] %vm1889, %v1886
      %1902 = vst.msk [vmem:[#allocation2 + $0x60] sm:$0xff] %vm1889, %v1887
      %vm1903 = vcmask 129024
      %1904 = vst.msk [vmem:[#allocation2 + $0x68] sm:$0x7f] %vm1903, %v1888
      %vm1905 = vcmask 130055
      %1906 = vst.msk [vmem:[#allocation2 + $0x68] sm:$0x80] %vm1905, 0
      %v1907 = vld [vmem:[#allocation2] sm:$0xff]
      %v1908 = vld [vmem:[#allocation2 + $0x8] sm:$0xff]
      %v1909 = vld [vmem:[#allocation2 + $0x10] sm:$0xff]
      %v1910 = vld [vmem:[#allocation2 + $0x18] sm:$0xff]
      %v1911 = vld [vmem:[#allocation2 + $0x20] sm:$0xff]
      %v1912 = vld [vmem:[#allocation2 + $0x28] sm:$0xff]
      %v1913 = vld [vmem:[#allocation2 + $0x30] sm:$0xff]
      %v1914 = vld [vmem:[#allocation2 + $0x38] sm:$0xff]
      %v1915 = vld [vmem:[#allocation2 + $0x40] sm:$0xff]
      %v1916 = vld [vmem:[#allocation2 + $0x48] sm:$0xff]
      %v1917 = vld [vmem:[#allocation2 + $0x50] sm:$0xff]
      %v1918 = vld [vmem:[#allocation2 + $0x58] sm:$0xff]
      %v1919 = vld [vmem:[#allocation2 + $0x60] sm:$0xff]
      %v1920 = vld [vmem:[#allocation2 + $0x68] sm:$0xff]
      %v1921 = vld [vmem:[%s3] sm:$0xff]
      %v1922 = vld [vmem:[%s3 + $0x8] sm:$0xff]
      %v1925 = vunpack.c.l.b16 %v1921
      %v1926 = vunpack.c.h.b16 %v1921
      %v1927 = vunpack.c.l.b16 %v1922
      %v1928 = vunpack.c.h.b16 %v1922
      %v1929 = vpack.c.b16 %v1927, %v1925
      %v1930 = vpack.c.b16 %v1928, %v1926
      %v1934 = vsel %vm1889, %v1907, 0
      %v1937 = vsel %vm1889, %v1908, 0
      %v1940 = vsel %vm1889, %v1909, 0
      %v1943 = vsel %vm1889, %v1910, 0
      %v1946 = vsel %vm1889, %v1911, 0
      %v1949 = vsel %vm1889, %v1912, 0
      %v1952 = vsel %vm1889, %v1913, 0
      %v1955 = vsel %vm1889, %v1914, 0
      %v1958 = vsel %vm1889, %v1915, 0
      %v1961 = vsel %vm1889, %v1916, 0
      %v1964 = vsel %vm1889, %v1917, 0
      %v1967 = vsel %vm1889, %v1918, 0
      %v1970 = vsel %vm1889, %v1919, 0
      %v1973 = vsel %vm1889, %v1920, 0
      %1975 = vmatprep.subr.bf16.mxu0 %v1930
      %1976 = vmatpush1.bf16.msra.mxu0 %v1929
      %1977 = vmatprep.subr.bf16.mxu0 0
      %1978 = vmatpush1.bf16.msra.mxu0 0
      %1979 = vmatprep.subr.bf16.mxu0 0
      %1980 = vmatpush1.bf16.msra.mxu0 0
      %1981 = vmatprep.subr.bf16.mxu0 0
      %1982 = vmatpush1.bf16.msra.mxu0 0
      %1983 = vmatprep.subr.bf16.mxu0 0
      %1984 = vmatpush1.bf16.msra.mxu0 0
      %1985 = vmatprep.subr.bf16.mxu0 0
      %1986 = vmatpush1.bf16.msra.mxu0 0
      %1987 = vmatprep.subr.bf16.mxu0 0
      %1988 = vmatpush1.bf16.msra.mxu0 0
      %1989 = vmatprep.subr.bf16.mxu0 0
      %1990 = vmatpush1.bf16.msra.mxu0 0
      %1991 = vmatprep.subr.bf16.mxu0 0
      %1992 = vmatpush1.bf16.msra.mxu0 0
      %1993 = vmatprep.subr.bf16.mxu0 0
      %1994 = vmatpush1.bf16.msra.mxu0 0
      %1995 = vmatprep.subr.bf16.mxu0 0
      %1996 = vmatpush1.bf16.msra.mxu0 0
      %1997 = vmatprep.subr.bf16.mxu0 0
      %1998 = vmatpush1.bf16.msra.mxu0 0
      %1999 = vmatprep.subr.bf16.mxu0 0
      %2000 = vmatpush1.bf16.msra.mxu0 0
      %2001 = vmatprep.subr.bf16.mxu0 0
      %2002 = vmatpush1.bf16.msra.mxu0 0
      %2003 = vmatprep.subr.bf16.mxu0 0
      %2004 = vmatpush1.bf16.msra.mxu0 0
      %2005 = vmatprep.subr.bf16.mxu0 0
      %2006 = vmatpush1.bf16.msra.mxu0 0
      %2007 = vmatprep.mubr.bf16.mxu0 0
      %2008 = vmatmul.mubr.bf16.gmra.mrb[0].mxu0 %v1934
      %v2009 = vpop.f32.mrb[0].mxu0
      %v2010 = vadd.f32 0.0, %v2009
      %v2011 = vpop.f32.mrb[0].mxu0
      %v2012 = vpop.f32.mrb[0].mxu0
      %v2013 = vadd.f32 0.0, %v2012
      %v2014 = vpop.f32.mrb[0].mxu0
      %2015 = vmatprep.mubr.bf16.mxu0 0
      %2016 = vmatmul.mubr.bf16.gmra.mrb[0].mxu0 %v1937
      %v2017 = vpop.f32.mrb[0].mxu0
      %v2018 = vadd.f32 0.0, %v2017
      %v2019 = vpop.f32.mrb[0].mxu0
      %v2020 = vpop.f32.mrb[0].mxu0
      %v2021 = vadd.f32 0.0, %v2020
      %v2022 = vpop.f32.mrb[0].mxu0
      %2023 = vmatprep.mubr.bf16.mxu0 0
      %2024 = vmatmul.mubr.bf16.gmra.mrb[0].mxu0 %v1940
      %v2025 = vpop.f32.mrb[0].mxu0
      %v2026 = vadd.f32 0.0, %v2025
      %v2027 = vpop.f32.mrb[0].mxu0
      %v2028 = vadd.f32 0.0, %v2027
      %v2029 = vpop.f32.mrb[0].mxu0
      %v2030 = vadd.f32 0.0, %v2029
      %v2031 = vpop.f32.mrb[0].mxu0
      %v2032 = vadd.f32 0.0, %v2031
      %2033 = vmatprep.mubr.bf16.mxu0 0
      %2034 = vmatmul.mubr.bf16.gmra.mrb[0].mxu0 %v1943
      %v2035 = vpop.f32.mrb[0].mxu0
      %v2036 = vadd.f32 0.0, %v2035
      %v2037 = vpop.f32.mrb[0].mxu0
      %v2038 = vadd.f32 0.0, %v2037
      %v2039 = vpop.f32.mrb[0].mxu0
      %v2040 = vadd.f32 0.0, %v2039
      %v2041 = vpop.f32.mrb[0].mxu0
      %v2042 = vadd.f32 0.0, %v2041
      %2043 = vmatprep.mubr.bf16.mxu0 0
      %2044 = vmatmul.mubr.bf16.gmra.mrb[0].mxu0 %v1946
      %v2045 = vpop.f32.mrb[0].mxu0
      %v2046 = vadd.f32 0.0, %v2045
      %v2047 = vpop.f32.mrb[0].mxu0
      %v2048 = vadd.f32 0.0, %v2047
      %v2049 = vpop.f32.mrb[0].mxu0
      %v2050 = vadd.f32 0.0, %v2049
      %v2051 = vpop.f32.mrb[0].mxu0
      %v2052 = vadd.f32 0.0, %v2051
      %2053 = vmatprep.mubr.bf16.mxu0 0
      %2054 = vmatmul.mubr.bf16.gmra.mrb[0].mxu0 %v1949
      %v2055 = vpop.f32.mrb[0].mxu0
      %v2056 = vadd.f32 0.0, %v2055
      %v2057 = vpop.f32.mrb[0].mxu0
      %v2058 = vadd.f32 0.0, %v2057
      %v2059 = vpop.f32.mrb[0].mxu0
      %v2060 = vadd.f32 0.0, %v2059
      %v2061 = vpop.f32.mrb[0].mxu0
      %v2062 = vadd.f32 0.0, %v2061
      %2063 = vmatprep.mubr.bf16.mxu0 0
      %2064 = vmatmul.mubr.bf16.gmra.mrb[0].mxu0 %v1952
      %v2065 = vpop.f32.mrb[0].mxu0
      %v2066 = vadd.f32 0.0, %v2065
      %v2067 = vpop.f32.mrb[0].mxu0
      %v2068 = vadd.f32 0.0, %v2067
      %v2069 = vpop.f32.mrb[0].mxu0
      %v2070 = vadd.f32 0.0, %v2069
      %v2071 = vpop.f32.mrb[0].mxu0
      %v2072 = vadd.f32 0.0, %v2071
      %2073 = vmatprep.mubr.bf16.mxu0 0
      %2074 = vmatmul.mubr.bf16.gmra.mrb[0].mxu0 %v1955
      %v2075 = vpop.f32.mrb[0].mxu0
      %v2076 = vadd.f32 0.0, %v2075
      %v2077 = vpop.f32.mrb[0].mxu0
      %v2078 = vadd.f32 0.0, %v2077
      %v2079 = vpop.f32.mrb[0].mxu0
      %v2080 = vadd.f32 0.0, %v2079
      %v2081 = vpop.f32.mrb[0].mxu0
      %v2082 = vadd.f32 0.0, %v2081
      %2083 = vmatprep.mubr.bf16.mxu0 0
      %2084 = vmatmul.mubr.bf16.gmra.mrb[0].mxu0 %v1958
      %v2085 = vpop.f32.mrb[0].mxu0
      %v2086 = vadd.f32 0.0, %v2085
      %v2087 = vpop.f32.mrb[0].mxu0
      %v2088 = vadd.f32 0.0, %v2087
      %v2089 = vpop.f32.mrb[0].mxu0
      %v2090 = vadd.f32 0.0, %v2089
      %v2091 = vpop.f32.mrb[0].mxu0
      %v2092 = vadd.f32 0.0, %v2091
      %2093 = vmatprep.mubr.bf16.mxu0 0
      %2094 = vmatmul.mubr.bf16.gmra.mrb[0].mxu0 %v1961
      %v2095 = vpop.f32.mrb[0].mxu0
      %v2096 = vadd.f32 0.0, %v2095
      %v2097 = vpop.f32.mrb[0].mxu0
      %v2098 = vadd.f32 0.0, %v2097
      %v2099 = vpop.f32.mrb[0].mxu0
      %v2100 = vadd.f32 0.0, %v2099
      %v2101 = vpop.f32.mrb[0].mxu0
      %v2102 = vadd.f32 0.0, %v2101
      %2103 = vmatprep.mubr.bf16.mxu0 0
      %2104 = vmatmul.mubr.bf16.gmra.mrb[0].mxu0 %v1964
      %v2105 = vpop.f32.mrb[0].mxu0
      %v2106 = vadd.f32 0.0, %v2105
      %v2107 = vpop.f32.mrb[0].mxu0
      %v2108 = vadd.f32 0.0, %v2107
      %v2109 = vpop.f32.mrb[0].mxu0
      %v2110 = vadd.f32 0.0, %v2109
      %v2111 = vpop.f32.mrb[0].mxu0
      %v2112 = vadd.f32 0.0, %v2111
      %2113 = vmatprep.mubr.bf16.mxu0 0
      %2114 = vmatmul.mubr.bf16.gmra.mrb[0].mxu0 %v1967
      %v2115 = vpop.f32.mrb[0].mxu0
      %v2116 = vadd.f32 0.0, %v2115
      %v2117 = vpop.f32.mrb[0].mxu0
      %v2118 = vadd.f32 0.0, %v2117
      %v2119 = vpop.f32.mrb[0].mxu0
      %v2120 = vadd.f32 0.0, %v2119
      %v2121 = vpop.f32.mrb[0].mxu0
      %v2122 = vadd.f32 0.0, %v2121
      %2123 = vmatprep.mubr.bf16.mxu0 0
      %2124 = vmatmul.mubr.bf16.gmra.mrb[0].mxu0 %v1970
      %v2125 = vpop.f32.mrb[0].mxu0
      %v2126 = vadd.f32 0.0, %v2125
      %v2127 = vpop.f32.mrb[0].mxu0
      %v2128 = vadd.f32 0.0, %v2127
      %v2129 = vpop.f32.mrb[0].mxu0
      %v2130 = vadd.f32 0.0, %v2129
      %v2131 = vpop.f32.mrb[0].mxu0
      %v2132 = vadd.f32 0.0, %v2131
      %2133 = vmatprep.mubr.bf16.mxu0 0
      %2134 = vmatmul.mubr.bf16.gmra.mrb[0].mxu0 %v1973
      %v2135 = vpop.f32.mrb[0].mxu0
      %v2136 = vadd.f32 0.0, %v2135
      %v2137 = vpop.f32.mrb[0].mxu0
      %v2138 = vadd.f32 0.0, %v2137
      %v2139 = vpop.f32.mrb[0].mxu0
      %v2140 = vadd.f32 0.0, %v2139
      %v2141 = vpop.f32.mrb[0].mxu0
      %v2142 = vadd.f32 0.0, %v2141
      %2143 = vdwg.mxu0
      %v2168 = vrot.slane %v2010, 1
      %v2169 = vrot.slane %v2013, 1
      %v2170 = vsel %vm656, %v2168, %v2169
      %v2171 = vrot.slane %v2018, 1
      %v2172 = vsel %vm656, %v2169, %v2171
      %v2173 = vrot.slane %v2021, 1
      %v2174 = vsel %vm656, %v2171, %v2173
      %v2175 = vrot.slane %v2026, 1
      %v2176 = vsel %vm656, %v2173, %v2175
      %v2177 = vrot.slane %v2030, 1
      %v2178 = vsel %vm656, %v2175, %v2177
      %v2179 = vrot.slane %v2036, 1
      %v2180 = vsel %vm656, %v2177, %v2179
      %v2181 = vrot.slane %v2040, 1
      %v2182 = vsel %vm656, %v2179, %v2181
      %v2183 = vrot.slane %v2046, 1
      %v2184 = vsel %vm656, %v2181, %v2183
      %v2185 = vrot.slane %v2050, 1
      %v2186 = vsel %vm656, %v2183, %v2185
      %v2187 = vrot.slane %v2056, 1
      %v2188 = vsel %vm656, %v2185, %v2187
      %v2189 = vrot.slane %v2060, 1
      %v2190 = vsel %vm656, %v2187, %v2189
      %v2191 = vrot.slane %v2066, 1
      %v2192 = vsel %vm656, %v2189, %v2191
      %v2193 = vrot.slane %v2070, 1
      %v2194 = vsel %vm656, %v2191, %v2193
      %v2195 = vrot.slane %v2076, 1
      %v2196 = vsel %vm656, %v2193, %v2195
      %v2197 = vrot.slane %v2080, 1
      %v2198 = vsel %vm656, %v2195, %v2197
      %v2199 = vrot.slane %v2086, 1
      %v2200 = vsel %vm656, %v2197, %v2199
      %v2201 = vrot.slane %v2090, 1
      %v2202 = vsel %vm656, %v2199, %v2201
      %v2203 = vrot.slane %v2096, 1
      %v2204 = vsel %vm656, %v2201, %v2203
      %v2205 = vrot.slane %v2100, 1
      %v2206 = vsel %vm656, %v2203, %v2205
      %v2207 = vrot.slane %v2106, 1
      %v2208 = vsel %vm656, %v2205, %v2207
      %v2209 = vrot.slane %v2110, 1
      %v2210 = vsel %vm656, %v2207, %v2209
      %v2211 = vrot.slane %v2116, 1
      %v2212 = vsel %vm656, %v2209, %v2211
      %v2213 = vrot.slane %v2120, 1
      %v2214 = vsel %vm656, %v2211, %v2213
      %2215 = vrot.lane.b32.xlu0 %v2170, 112
      %v2216 = vpop.permute.xlu0 %2215
      %2217 = vrot.lane.b32.xlu0 %v2172, 112
      %v2218 = vpop.permute.xlu0 %2217
      %2219 = vrot.lane.b32.xlu0 %v2174, 112
      %v2220 = vpop.permute.xlu0 %2219
      %2221 = vrot.lane.b32.xlu0 %v2176, 112
      %v2222 = vpop.permute.xlu0 %2221
      %2223 = vrot.lane.b32.xlu0 %v2178, 112
      %v2224 = vpop.permute.xlu0 %2223
      %2225 = vrot.lane.b32.xlu0 %v2180, 112
      %v2226 = vpop.permute.xlu0 %2225
      %2227 = vrot.lane.b32.xlu0 %v2182, 112
      %v2228 = vpop.permute.xlu0 %2227
      %2229 = vrot.lane.b32.xlu0 %v2184, 112
      %v2230 = vpop.permute.xlu0 %2229
      %2231 = vrot.lane.b32.xlu0 %v2186, 112
      %v2232 = vpop.permute.xlu0 %2231
      %2233 = vrot.lane.b32.xlu0 %v2188, 112
      %v2234 = vpop.permute.xlu0 %2233
      %2235 = vrot.lane.b32.xlu0 %v2190, 112
      %v2236 = vpop.permute.xlu0 %2235
      %2237 = vrot.lane.b32.xlu0 %v2192, 112
      %v2238 = vpop.permute.xlu0 %2237
      %2239 = vrot.lane.b32.xlu0 %v2194, 112
      %v2240 = vpop.permute.xlu0 %2239
      %2241 = vrot.lane.b32.xlu0 %v2196, 112
      %v2242 = vpop.permute.xlu0 %2241
      %2243 = vrot.lane.b32.xlu0 %v2198, 112
      %v2244 = vpop.permute.xlu0 %2243
      %2245 = vrot.lane.b32.xlu0 %v2200, 112
      %v2246 = vpop.permute.xlu0 %2245
      %2247 = vrot.lane.b32.xlu0 %v2202, 112
      %v2248 = vpop.permute.xlu0 %2247
      %2249 = vrot.lane.b32.xlu0 %v2204, 112
      %v2250 = vpop.permute.xlu0 %2249
      %2251 = vrot.lane.b32.xlu0 %v2206, 112
      %v2252 = vpop.permute.xlu0 %2251
      %2253 = vrot.lane.b32.xlu0 %v2208, 112
      %v2254 = vpop.permute.xlu0 %2253
      %2255 = vrot.lane.b32.xlu0 %v2210, 112
      %v2256 = vpop.permute.xlu0 %2255
      %2257 = vrot.lane.b32.xlu0 %v2212, 112
      %v2258 = vpop.permute.xlu0 %2257
      %2259 = vrot.lane.b32.xlu0 %v2214, 112
      %v2260 = vpop.permute.xlu0 %2259
      %2261 = vrot.lane.b32.xlu0 %v2213, 112
      %v2262 = vpop.permute.xlu0 %2261
      %v2287 = vadd.f32 %v2010, %v2216
      %v2288 = vadd.f32 %v2013, %v2218
      %v2289 = vadd.f32 %v2018, %v2220
      %v2290 = vadd.f32 %v2021, %v2222
      %v2291 = vadd.f32 %v2026, %v2224
      %v2292 = vadd.f32 %v2030, %v2226
      %v2293 = vadd.f32 %v2036, %v2228
      %v2294 = vadd.f32 %v2040, %v2230
      %v2295 = vadd.f32 %v2046, %v2232
      %v2296 = vadd.f32 %v2050, %v2234
      %v2297 = vadd.f32 %v2056, %v2236
      %v2298 = vadd.f32 %v2060, %v2238
      %v2299 = vadd.f32 %v2066, %v2240
      %v2300 = vadd.f32 %v2070, %v2242
      %v2301 = vadd.f32 %v2076, %v2244
      %v2302 = vadd.f32 %v2080, %v2246
      %v2303 = vadd.f32 %v2086, %v2248
      %v2304 = vadd.f32 %v2090, %v2250
      %v2305 = vadd.f32 %v2096, %v2252
      %v2306 = vadd.f32 %v2100, %v2254
      %v2307 = vadd.f32 %v2106, %v2256
      %v2308 = vadd.f32 %v2110, %v2258
      %v2309 = vadd.f32 %v2116, %v2260
      %v2310 = vadd.f32 %v2120, %v2262
      %v2311 = vrot.slane %v2010, 2
      %v2312 = vrot.slane %v2013, 2
      %v2313 = vsel %vm824, %v2311, %v2312
      %v2314 = vrot.slane %v2018, 2
      %v2315 = vsel %vm824, %v2312, %v2314
      %v2316 = vrot.slane %v2021, 2
      %v2317 = vsel %vm824, %v2314, %v2316
      %v2318 = vrot.slane %v2026, 2
      %v2319 = vsel %vm824, %v2316, %v2318
      %v2320 = vrot.slane %v2030, 2
      %v2321 = vsel %vm824, %v2318, %v2320
      %v2322 = vrot.slane %v2036, 2
      %v2323 = vsel %vm824, %v2320, %v2322
      %v2324 = vrot.slane %v2040, 2
      %v2325 = vsel %vm824, %v2322, %v2324
      %v2326 = vrot.slane %v2046, 2
      %v2327 = vsel %vm824, %v2324, %v2326
      %v2328 = vrot.slane %v2050, 2
      %v2329 = vsel %vm824, %v2326, %v2328
      %v2330 = vrot.slane %v2056, 2
      %v2331 = vsel %vm824, %v2328, %v2330
      %v2332 = vrot.slane %v2060, 2
      %v2333 = vsel %vm824, %v2330, %v2332
      %v2334 = vrot.slane %v2066, 2
      %v2335 = vsel %vm824, %v2332, %v2334
      %v2336 = vrot.slane %v2070, 2
      %v2337 = vsel %vm824, %v2334, %v2336
      %v2338 = vrot.slane %v2076, 2
      %v2339 = vsel %vm824, %v2336, %v2338
      %v2340 = vrot.slane %v2080, 2
      %v2341 = vsel %vm824, %v2338, %v2340
      %v2342 = vrot.slane %v2086, 2
      %v2343 = vsel %vm824, %v2340, %v2342
      %v2344 = vrot.slane %v2090, 2
      %v2345 = vsel %vm824, %v2342, %v2344
      %v2346 = vrot.slane %v2096, 2
      %v2347 = vsel %vm824, %v2344, %v2346
      %v2348 = vrot.slane %v2100, 2
      %v2349 = vsel %vm824, %v2346, %v2348
      %v2350 = vrot.slane %v2106, 2
      %v2351 = vsel %vm824, %v2348, %v2350
      %v2352 = vrot.slane %v2110, 2
      %v2353 = vsel %vm824, %v2350, %v2352
      %v2354 = vrot.slane %v2116, 2
      %v2355 = vsel %vm824, %v2352, %v2354
      %v2356 = vrot.slane %v2120, 2
      %v2357 = vsel %vm824, %v2354, %v2356
      %2358 = vrot.lane.b32.xlu0 %v2313, 96
      %v2359 = vpop.permute.xlu0 %2358
      %2360 = vrot.lane.b32.xlu0 %v2315, 96
      %v2361 = vpop.permute.xlu0 %2360
      %2362 = vrot.lane.b32.xlu0 %v2317, 96
      %v2363 = vpop.permute.xlu0 %2362
      %2364 = vrot.lane.b32.xlu0 %v2319, 96
      %v2365 = vpop.permute.xlu0 %2364
      %2366 = vrot.lane.b32.xlu0 %v2321, 96
      %v2367 = vpop.permute.xlu0 %2366
      %2368 = vrot.lane.b32.xlu0 %v2323, 96
      %v2369 = vpop.permute.xlu0 %2368
      %2370 = vrot.lane.b32.xlu0 %v2325, 96
      %v2371 = vpop.permute.xlu0 %2370
      %2372 = vrot.lane.b32.xlu0 %v2327, 96
      %v2373 = vpop.permute.xlu0 %2372
      %2374 = vrot.lane.b32.xlu0 %v2329, 96
      %v2375 = vpop.permute.xlu0 %2374
      %2376 = vrot.lane.b32.xlu0 %v2331, 96
      %v2377 = vpop.permute.xlu0 %2376
      %2378 = vrot.lane.b32.xlu0 %v2333, 96
      %v2379 = vpop.permute.xlu0 %2378
      %2380 = vrot.lane.b32.xlu0 %v2335, 96
      %v2381 = vpop.permute.xlu0 %2380
      %2382 = vrot.lane.b32.xlu0 %v2337, 96
      %v2383 = vpop.permute.xlu0 %2382
      %2384 = vrot.lane.b32.xlu0 %v2339, 96
      %v2385 = vpop.permute.xlu0 %2384
      %2386 = vrot.lane.b32.xlu0 %v2341, 96
      %v2387 = vpop.permute.xlu0 %2386
      %2388 = vrot.lane.b32.xlu0 %v2343, 96
      %v2389 = vpop.permute.xlu0 %2388
      %2390 = vrot.lane.b32.xlu0 %v2345, 96
      %v2391 = vpop.permute.xlu0 %2390
      %2392 = vrot.lane.b32.xlu0 %v2347, 96
      %v2393 = vpop.permute.xlu0 %2392
      %2394 = vrot.lane.b32.xlu0 %v2349, 96
      %v2395 = vpop.permute.xlu0 %2394
      %2396 = vrot.lane.b32.xlu0 %v2351, 96
      %v2397 = vpop.permute.xlu0 %2396
      %2398 = vrot.lane.b32.xlu0 %v2353, 96
      %v2399 = vpop.permute.xlu0 %2398
      %2400 = vrot.lane.b32.xlu0 %v2355, 96
      %v2401 = vpop.permute.xlu0 %2400
      %2402 = vrot.lane.b32.xlu0 %v2357, 96
      %v2403 = vpop.permute.xlu0 %2402
      %2404 = vrot.lane.b32.xlu0 %v2356, 96
      %v2405 = vpop.permute.xlu0 %2404
      %v2430 = vadd.f32 %v2287, %v2359
      %v2431 = vadd.f32 %v2288, %v2361
      %v2432 = vadd.f32 %v2289, %v2363
      %v2433 = vadd.f32 %v2290, %v2365
      %v2434 = vadd.f32 %v2291, %v2367
      %v2435 = vadd.f32 %v2292, %v2369
      %v2436 = vadd.f32 %v2293, %v2371
      %v2437 = vadd.f32 %v2294, %v2373
      %v2438 = vadd.f32 %v2295, %v2375
      %v2439 = vadd.f32 %v2296, %v2377
      %v2440 = vadd.f32 %v2297, %v2379
      %v2441 = vadd.f32 %v2298, %v2381
      %v2442 = vadd.f32 %v2299, %v2383
      %v2443 = vadd.f32 %v2300, %v2385
      %v2444 = vadd.f32 %v2301, %v2387
      %v2445 = vadd.f32 %v2302, %v2389
      %v2446 = vadd.f32 %v2303, %v2391
      %v2447 = vadd.f32 %v2304, %v2393
      %v2448 = vadd.f32 %v2305, %v2395
      %v2449 = vadd.f32 %v2306, %v2397
      %v2450 = vadd.f32 %v2307, %v2399
      %v2451 = vadd.f32 %v2308, %v2401
      %v2452 = vadd.f32 %v2309, %v2403
      %v2453 = vadd.f32 %v2310, %v2405
      %2456 = vrot.lane.b32.xlu0 %v2018, 80
      %v2457 = vpop.permute.xlu0 %2456
      %2458 = vrot.lane.b32.xlu0 %v2021, 80
      %v2459 = vpop.permute.xlu0 %2458
      %2460 = vrot.lane.b32.xlu0 %v2026, 80
      %v2461 = vpop.permute.xlu0 %2460
      %2462 = vrot.lane.b32.xlu0 %v2030, 80
      %v2463 = vpop.permute.xlu0 %2462
      %2464 = vrot.lane.b32.xlu0 %v2036, 80
      %v2465 = vpop.permute.xlu0 %2464
      %2466 = vrot.lane.b32.xlu0 %v2040, 80
      %v2467 = vpop.permute.xlu0 %2466
      %2468 = vrot.lane.b32.xlu0 %v2046, 80
      %v2469 = vpop.permute.xlu0 %2468
      %2470 = vrot.lane.b32.xlu0 %v2050, 80
      %v2471 = vpop.permute.xlu0 %2470
      %2472 = vrot.lane.b32.xlu0 %v2056, 80
      %v2473 = vpop.permute.xlu0 %2472
      %2474 = vrot.lane.b32.xlu0 %v2060, 80
      %v2475 = vpop.permute.xlu0 %2474
      %2476 = vrot.lane.b32.xlu0 %v2066, 80
      %v2477 = vpop.permute.xlu0 %2476
      %2478 = vrot.lane.b32.xlu0 %v2070, 80
      %v2479 = vpop.permute.xlu0 %2478
      %2480 = vrot.lane.b32.xlu0 %v2076, 80
      %v2481 = vpop.permute.xlu0 %2480
      %2482 = vrot.lane.b32.xlu0 %v2080, 80
      %v2483 = vpop.permute.xlu0 %2482
      %2484 = vrot.lane.b32.xlu0 %v2086, 80
      %v2485 = vpop.permute.xlu0 %2484
      %2486 = vrot.lane.b32.xlu0 %v2090, 80
      %v2487 = vpop.permute.xlu0 %2486
      %2488 = vrot.lane.b32.xlu0 %v2096, 80
      %v2489 = vpop.permute.xlu0 %2488
      %2490 = vrot.lane.b32.xlu0 %v2100, 80
      %v2491 = vpop.permute.xlu0 %2490
      %2492 = vrot.lane.b32.xlu0 %v2106, 80
      %v2493 = vpop.permute.xlu0 %2492
      %2494 = vrot.lane.b32.xlu0 %v2110, 80
      %v2495 = vpop.permute.xlu0 %2494
      %2496 = vrot.lane.b32.xlu0 %v2116, 80
      %v2497 = vpop.permute.xlu0 %2496
      %2498 = vrot.lane.b32.xlu0 %v2120, 80
      %v2499 = vpop.permute.xlu0 %2498
      %2500 = vrot.lane.b32.xlu0 %v2126, 80
      %v2501 = vpop.permute.xlu0 %2500
      %2502 = vrot.lane.b32.xlu0 %v2130, 80
      %v2503 = vpop.permute.xlu0 %2502
      %v2528 = vadd.f32 %v2430, %v2457
      %v2529 = vadd.f32 %v2431, %v2459
      %v2530 = vadd.f32 %v2432, %v2461
      %v2531 = vadd.f32 %v2433, %v2463
      %v2532 = vadd.f32 %v2434, %v2465
      %v2533 = vadd.f32 %v2435, %v2467
      %v2534 = vadd.f32 %v2436, %v2469
      %v2535 = vadd.f32 %v2437, %v2471
      %v2536 = vadd.f32 %v2438, %v2473
      %v2537 = vadd.f32 %v2439, %v2475
      %v2538 = vadd.f32 %v2440, %v2477
      %v2539 = vadd.f32 %v2441, %v2479
      %v2540 = vadd.f32 %v2442, %v2481
      %v2541 = vadd.f32 %v2443, %v2483
      %v2542 = vadd.f32 %v2444, %v2485
      %v2543 = vadd.f32 %v2445, %v2487
      %v2544 = vadd.f32 %v2446, %v2489
      %v2545 = vadd.f32 %v2447, %v2491
      %v2546 = vadd.f32 %v2448, %v2493
      %v2547 = vadd.f32 %v2449, %v2495
      %v2548 = vadd.f32 %v2450, %v2497
      %v2549 = vadd.f32 %v2451, %v2499
      %v2550 = vadd.f32 %v2452, %v2501
      %v2551 = vadd.f32 %v2453, %v2503
      %v2552 = vrot.slane %v2126, 1
      %v2553 = vsel %vm656, %v2213, %v2552
      %v2554 = vrot.slane %v2130, 1
      %v2555 = vsel %vm656, %v2552, %v2554
      %2556 = vrot.lane.b32.xlu0 %v2174, 64
      %v2557 = vpop.permute.xlu0 %2556
      %2558 = vrot.lane.b32.xlu0 %v2176, 64
      %v2559 = vpop.permute.xlu0 %2558
      %2560 = vrot.lane.b32.xlu0 %v2178, 64
      %v2561 = vpop.permute.xlu0 %2560
      %2562 = vrot.lane.b32.xlu0 %v2180, 64
      %v2563 = vpop.permute.xlu0 %2562
      %2564 = vrot.lane.b32.xlu0 %v2182, 64
      %v2565 = vpop.permute.xlu0 %2564
      %2566 = vrot.lane.b32.xlu0 %v2184, 64
      %v2567 = vpop.permute.xlu0 %2566
      %2568 = vrot.lane.b32.xlu0 %v2186, 64
      %v2569 = vpop.permute.xlu0 %2568
      %2570 = vrot.lane.b32.xlu0 %v2188, 64
      %v2571 = vpop.permute.xlu0 %2570
      %2572 = vrot.lane.b32.xlu0 %v2190, 64
      %v2573 = vpop.permute.xlu0 %2572
      %2574 = vrot.lane.b32.xlu0 %v2192, 64
      %v2575 = vpop.permute.xlu0 %2574
      %2576 = vrot.lane.b32.xlu0 %v2194, 64
      %v2577 = vpop.permute.xlu0 %2576
      %2578 = vrot.lane.b32.xlu0 %v2196, 64
      %v2579 = vpop.permute.xlu0 %2578
      %2580 = vrot.lane.b32.xlu0 %v2198, 64
      %v2581 = vpop.permute.xlu0 %2580
      %2582 = vrot.lane.b32.xlu0 %v2200, 64
      %v2583 = vpop.permute.xlu0 %2582
      %2584 = vrot.lane.b32.xlu0 %v2202, 64
      %v2585 = vpop.permute.xlu0 %2584
      %2586 = vrot.lane.b32.xlu0 %v2204, 64
      %v2587 = vpop.permute.xlu0 %2586
      %2588 = vrot.lane.b32.xlu0 %v2206, 64
      %v2589 = vpop.permute.xlu0 %2588
      %2590 = vrot.lane.b32.xlu0 %v2208, 64
      %v2591 = vpop.permute.xlu0 %2590
      %2592 = vrot.lane.b32.xlu0 %v2210, 64
      %v2593 = vpop.permute.xlu0 %2592
      %2594 = vrot.lane.b32.xlu0 %v2212, 64
      %v2595 = vpop.permute.xlu0 %2594
      %2596 = vrot.lane.b32.xlu0 %v2214, 64
      %v2597 = vpop.permute.xlu0 %2596
      %2598 = vrot.lane.b32.xlu0 %v2553, 64
      %v2599 = vpop.permute.xlu0 %2598
      %2600 = vrot.lane.b32.xlu0 %v2555, 64
      %v2601 = vpop.permute.xlu0 %2600
      %2602 = vrot.lane.b32.xlu0 %v2554, 64
      %v2603 = vpop.permute.xlu0 %2602
      %v2628 = vadd.f32 %v2528, %v2557
      %v2629 = vadd.f32 %v2529, %v2559
      %v2630 = vadd.f32 %v2530, %v2561
      %v2631 = vadd.f32 %v2531, %v2563
      %v2632 = vadd.f32 %v2532, %v2565
      %v2633 = vadd.f32 %v2533, %v2567
      %v2634 = vadd.f32 %v2534, %v2569
      %v2635 = vadd.f32 %v2535, %v2571
      %v2636 = vadd.f32 %v2536, %v2573
      %v2637 = vadd.f32 %v2537, %v2575
      %v2638 = vadd.f32 %v2538, %v2577
      %v2639 = vadd.f32 %v2539, %v2579
      %v2640 = vadd.f32 %v2540, %v2581
      %v2641 = vadd.f32 %v2541, %v2583
      %v2642 = vadd.f32 %v2542, %v2585
      %v2643 = vadd.f32 %v2543, %v2587
      %v2644 = vadd.f32 %v2544, %v2589
      %v2645 = vadd.f32 %v2545, %v2591
      %v2646 = vadd.f32 %v2546, %v2593
      %v2647 = vadd.f32 %v2547, %v2595
      %v2648 = vadd.f32 %v2548, %v2597
      %v2649 = vadd.f32 %v2549, %v2599
      %v2650 = vadd.f32 %v2550, %v2601
      %v2651 = vadd.f32 %v2551, %v2603
      %v2652 = vrot.slane %v2126, 2
      %v2653 = vsel %vm824, %v2356, %v2652
      %v2654 = vrot.slane %v2130, 2
      %v2655 = vsel %vm824, %v2652, %v2654
      %2656 = vrot.lane.b32.xlu0 %v2317, 48
      %v2657 = vpop.permute.xlu0 %2656
      %2658 = vrot.lane.b32.xlu0 %v2319, 48
      %v2659 = vpop.permute.xlu0 %2658
      %2660 = vrot.lane.b32.xlu0 %v2321, 48
      %v2661 = vpop.permute.xlu0 %2660
      %2662 = vrot.lane.b32.xlu0 %v2323, 48
      %v2663 = vpop.permute.xlu0 %2662
      %2664 = vrot.lane.b32.xlu0 %v2325, 48
      %v2665 = vpop.permute.xlu0 %2664
      %2666 = vrot.lane.b32.xlu0 %v2327, 48
      %v2667 = vpop.permute.xlu0 %2666
      %2668 = vrot.lane.b32.xlu0 %v2329, 48
      %v2669 = vpop.permute.xlu0 %2668
      %2670 = vrot.lane.b32.xlu0 %v2331, 48
      %v2671 = vpop.permute.xlu0 %2670
      %2672 = vrot.lane.b32.xlu0 %v2333, 48
      %v2673 = vpop.permute.xlu0 %2672
      %2674 = vrot.lane.b32.xlu0 %v2335, 48
      %v2675 = vpop.permute.xlu0 %2674
      %2676 = vrot.lane.b32.xlu0 %v2337, 48
      %v2677 = vpop.permute.xlu0 %2676
      %2678 = vrot.lane.b32.xlu0 %v2339, 48
      %v2679 = vpop.permute.xlu0 %2678
      %2680 = vrot.lane.b32.xlu0 %v2341, 48
      %v2681 = vpop.permute.xlu0 %2680
      %2682 = vrot.lane.b32.xlu0 %v2343, 48
      %v2683 = vpop.permute.xlu0 %2682
      %2684 = vrot.lane.b32.xlu0 %v2345, 48
      %v2685 = vpop.permute.xlu0 %2684
      %2686 = vrot.lane.b32.xlu0 %v2347, 48
      %v2687 = vpop.permute.xlu0 %2686
      %2688 = vrot.lane.b32.xlu0 %v2349, 48
      %v2689 = vpop.permute.xlu0 %2688
      %2690 = vrot.lane.b32.xlu0 %v2351, 48
      %v2691 = vpop.permute.xlu0 %2690
      %2692 = vrot.lane.b32.xlu0 %v2353, 48
      %v2693 = vpop.permute.xlu0 %2692
      %2694 = vrot.lane.b32.xlu0 %v2355, 48
      %v2695 = vpop.permute.xlu0 %2694
      %2696 = vrot.lane.b32.xlu0 %v2357, 48
      %v2697 = vpop.permute.xlu0 %2696
      %2698 = vrot.lane.b32.xlu0 %v2653, 48
      %v2699 = vpop.permute.xlu0 %2698
      %2700 = vrot.lane.b32.xlu0 %v2655, 48
      %v2701 = vpop.permute.xlu0 %2700
      %2702 = vrot.lane.b32.xlu0 %v2654, 48
      %v2703 = vpop.permute.xlu0 %2702
      %v2728 = vadd.f32 %v2628, %v2657
      %v2729 = vadd.f32 %v2629, %v2659
      %v2730 = vadd.f32 %v2630, %v2661
      %v2731 = vadd.f32 %v2631, %v2663
      %v2732 = vadd.f32 %v2632, %v2665
      %v2733 = vadd.f32 %v2633, %v2667
      %v2734 = vadd.f32 %v2634, %v2669
      %v2735 = vadd.f32 %v2635, %v2671
      %v2736 = vadd.f32 %v2636, %v2673
      %v2737 = vadd.f32 %v2637, %v2675
      %v2738 = vadd.f32 %v2638, %v2677
      %v2739 = vadd.f32 %v2639, %v2679
      %v2740 = vadd.f32 %v2640, %v2681
      %v2741 = vadd.f32 %v2641, %v2683
      %v2742 = vadd.f32 %v2642, %v2685
      %v2743 = vadd.f32 %v2643, %v2687
      %v2744 = vadd.f32 %v2644, %v2689
      %v2745 = vadd.f32 %v2645, %v2691
      %v2746 = vadd.f32 %v2646, %v2693
      %v2747 = vadd.f32 %v2647, %v2695
      %v2748 = vadd.f32 %v2648, %v2697
      %v2749 = vadd.f32 %v2649, %v2699
      %v2750 = vadd.f32 %v2650, %v2701
      %v2751 = vadd.f32 %v2651, %v2703
      %2754 = vrot.lane.b32.xlu0 %v2026, 32
      %v2755 = vpop.permute.xlu0 %2754
      %2756 = vrot.lane.b32.xlu0 %v2030, 32
      %v2757 = vpop.permute.xlu0 %2756
      %2758 = vrot.lane.b32.xlu0 %v2036, 32
      %v2759 = vpop.permute.xlu0 %2758
      %2760 = vrot.lane.b32.xlu0 %v2040, 32
      %v2761 = vpop.permute.xlu0 %2760
      %2762 = vrot.lane.b32.xlu0 %v2046, 32
      %v2763 = vpop.permute.xlu0 %2762
      %2764 = vrot.lane.b32.xlu0 %v2050, 32
      %v2765 = vpop.permute.xlu0 %2764
      %2766 = vrot.lane.b32.xlu0 %v2056, 32
      %v2767 = vpop.permute.xlu0 %2766
      %2768 = vrot.lane.b32.xlu0 %v2060, 32
      %v2769 = vpop.permute.xlu0 %2768
      %2770 = vrot.lane.b32.xlu0 %v2066, 32
      %v2771 = vpop.permute.xlu0 %2770
      %2772 = vrot.lane.b32.xlu0 %v2070, 32
      %v2773 = vpop.permute.xlu0 %2772
      %2774 = vrot.lane.b32.xlu0 %v2076, 32
      %v2775 = vpop.permute.xlu0 %2774
      %2776 = vrot.lane.b32.xlu0 %v2080, 32
      %v2777 = vpop.permute.xlu0 %2776
      %2778 = vrot.lane.b32.xlu0 %v2086, 32
      %v2779 = vpop.permute.xlu0 %2778
      %2780 = vrot.lane.b32.xlu0 %v2090, 32
      %v2781 = vpop.permute.xlu0 %2780
      %2782 = vrot.lane.b32.xlu0 %v2096, 32
      %v2783 = vpop.permute.xlu0 %2782
      %2784 = vrot.lane.b32.xlu0 %v2100, 32
      %v2785 = vpop.permute.xlu0 %2784
      %2786 = vrot.lane.b32.xlu0 %v2106, 32
      %v2787 = vpop.permute.xlu0 %2786
      %2788 = vrot.lane.b32.xlu0 %v2110, 32
      %v2789 = vpop.permute.xlu0 %2788
      %2790 = vrot.lane.b32.xlu0 %v2116, 32
      %v2791 = vpop.permute.xlu0 %2790
      %2792 = vrot.lane.b32.xlu0 %v2120, 32
      %v2793 = vpop.permute.xlu0 %2792
      %2794 = vrot.lane.b32.xlu0 %v2126, 32
      %v2795 = vpop.permute.xlu0 %2794
      %2796 = vrot.lane.b32.xlu0 %v2130, 32
      %v2797 = vpop.permute.xlu0 %2796
      %2798 = vrot.lane.b32.xlu0 %v2136, 32
      %v2799 = vpop.permute.xlu0 %2798
      %2800 = vrot.lane.b32.xlu0 %v2140, 32
      %v2801 = vpop.permute.xlu0 %2800
      %v2826 = vadd.f32 %v2728, %v2755
      %v2827 = vadd.f32 %v2729, %v2757
      %v2828 = vadd.f32 %v2730, %v2759
      %v2829 = vadd.f32 %v2731, %v2761
      %v2830 = vadd.f32 %v2732, %v2763
      %v2831 = vadd.f32 %v2733, %v2765
      %v2832 = vadd.f32 %v2734, %v2767
      %v2833 = vadd.f32 %v2735, %v2769
      %v2834 = vadd.f32 %v2736, %v2771
      %v2835 = vadd.f32 %v2737, %v2773
      %v2836 = vadd.f32 %v2738, %v2775
      %v2837 = vadd.f32 %v2739, %v2777
      %v2838 = vadd.f32 %v2740, %v2779
      %v2839 = vadd.f32 %v2741, %v2781
      %v2840 = vadd.f32 %v2742, %v2783
      %v2841 = vadd.f32 %v2743, %v2785
      %v2842 = vadd.f32 %v2744, %v2787
      %v2843 = vadd.f32 %v2745, %v2789
      %v2844 = vadd.f32 %v2746, %v2791
      %v2845 = vadd.f32 %v2747, %v2793
      %v2846 = vadd.f32 %v2748, %v2795
      %v2847 = vadd.f32 %v2749, %v2797
      %v2848 = vadd.f32 %v2750, %v2799
      %v2849 = vadd.f32 %v2751, %v2801
      %v2850 = vrot.slane %v2136, 1
      %v2851 = vsel %vm656, %v2554, %v2850
      %v2852 = vrot.slane %v2140, 1
      %v2853 = vsel %vm656, %v2850, %v2852
      %2854 = vrot.lane.b32.xlu0 %v2178, 16
      %v2855 = vpop.permute.xlu0 %2854
      %2856 = vrot.lane.b32.xlu0 %v2180, 16
      %v2857 = vpop.permute.xlu0 %2856
      %2858 = vrot.lane.b32.xlu0 %v2182, 16
      %v2859 = vpop.permute.xlu0 %2858
      %2860 = vrot.lane.b32.xlu0 %v2184, 16
      %v2861 = vpop.permute.xlu0 %2860
      %2862 = vrot.lane.b32.xlu0 %v2186, 16
      %v2863 = vpop.permute.xlu0 %2862
      %2864 = vrot.lane.b32.xlu0 %v2188, 16
      %v2865 = vpop.permute.xlu0 %2864
      %2866 = vrot.lane.b32.xlu0 %v2190, 16
      %v2867 = vpop.permute.xlu0 %2866
      %2868 = vrot.lane.b32.xlu0 %v2192, 16
      %v2869 = vpop.permute.xlu0 %2868
      %2870 = vrot.lane.b32.xlu0 %v2194, 16
      %v2871 = vpop.permute.xlu0 %2870
      %2872 = vrot.lane.b32.xlu0 %v2196, 16
      %v2873 = vpop.permute.xlu0 %2872
      %2874 = vrot.lane.b32.xlu0 %v2198, 16
      %v2875 = vpop.permute.xlu0 %2874
      %2876 = vrot.lane.b32.xlu0 %v2200, 16
      %v2877 = vpop.permute.xlu0 %2876
      %2878 = vrot.lane.b32.xlu0 %v2202, 16
      %v2879 = vpop.permute.xlu0 %2878
      %2880 = vrot.lane.b32.xlu0 %v2204, 16
      %v2881 = vpop.permute.xlu0 %2880
      %2882 = vrot.lane.b32.xlu0 %v2206, 16
      %v2883 = vpop.permute.xlu0 %2882
      %2884 = vrot.lane.b32.xlu0 %v2208, 16
      %v2885 = vpop.permute.xlu0 %2884
      %2886 = vrot.lane.b32.xlu0 %v2210, 16
      %v2887 = vpop.permute.xlu0 %2886
      %2888 = vrot.lane.b32.xlu0 %v2212, 16
      %v2889 = vpop.permute.xlu0 %2888
      %2890 = vrot.lane.b32.xlu0 %v2214, 16
      %v2891 = vpop.permute.xlu0 %2890
      %2892 = vrot.lane.b32.xlu0 %v2553, 16
      %v2893 = vpop.permute.xlu0 %2892
      %2894 = vrot.lane.b32.xlu0 %v2555, 16
      %v2895 = vpop.permute.xlu0 %2894
      %2896 = vrot.lane.b32.xlu0 %v2851, 16
      %v2897 = vpop.permute.xlu0 %2896
      %2898 = vrot.lane.b32.xlu0 %v2853, 16
      %v2899 = vpop.permute.xlu0 %2898
      %2900 = vrot.lane.b32.xlu0 %v2852, 16
      %v2901 = vpop.permute.xlu0 %2900
      %v2926 = vadd.f32 %v2826, %v2855
      %v2927 = vadd.f32 %v2827, %v2857
      %v2928 = vadd.f32 %v2828, %v2859
      %v2929 = vadd.f32 %v2829, %v2861
      %v2930 = vadd.f32 %v2830, %v2863
      %v2931 = vadd.f32 %v2831, %v2865
      %v2932 = vadd.f32 %v2832, %v2867
      %v2933 = vadd.f32 %v2833, %v2869
      %v2934 = vadd.f32 %v2834, %v2871
      %v2935 = vadd.f32 %v2835, %v2873
      %v2936 = vadd.f32 %v2836, %v2875
      %v2937 = vadd.f32 %v2837, %v2877
      %v2938 = vadd.f32 %v2838, %v2879
      %v2939 = vadd.f32 %v2839, %v2881
      %v2940 = vadd.f32 %v2840, %v2883
      %v2941 = vadd.f32 %v2841, %v2885
      %v2942 = vadd.f32 %v2842, %v2887
      %v2943 = vadd.f32 %v2843, %v2889
      %v2944 = vadd.f32 %v2844, %v2891
      %v2945 = vadd.f32 %v2845, %v2893
      %v2946 = vadd.f32 %v2846, %v2895
      %v2947 = vadd.f32 %v2847, %v2897
      %v2948 = vadd.f32 %v2848, %v2899
      %v2949 = vadd.f32 %v2849, %v2901
      %v2974 = vrot.slane %v2028, 2
      %v2975 = vrot.slane %v2032, 2
      %v2976 = vsel %vm824, %v2974, %v2975
      %v2977 = vrot.slane %v2038, 2
      %v2978 = vsel %vm824, %v2975, %v2977
      %v2979 = vrot.slane %v2042, 2
      %v2980 = vsel %vm824, %v2977, %v2979
      %v2981 = vrot.slane %v2048, 2
      %v2982 = vsel %vm824, %v2979, %v2981
      %v2983 = vrot.slane %v2052, 2
      %v2984 = vsel %vm824, %v2981, %v2983
      %v2985 = vrot.slane %v2058, 2
      %v2986 = vsel %vm824, %v2983, %v2985
      %v2987 = vrot.slane %v2062, 2
      %v2988 = vsel %vm824, %v2985, %v2987
      %v2989 = vrot.slane %v2068, 2
      %v2990 = vsel %vm824, %v2987, %v2989
      %v2991 = vrot.slane %v2072, 2
      %v2992 = vsel %vm824, %v2989, %v2991
      %v2993 = vrot.slane %v2078, 2
      %v2994 = vsel %vm824, %v2991, %v2993
      %v2995 = vrot.slane %v2082, 2
      %v2996 = vsel %vm824, %v2993, %v2995
      %v2997 = vrot.slane %v2088, 2
      %v2998 = vsel %vm824, %v2995, %v2997
      %v2999 = vrot.slane %v2092, 2
      %v3000 = vsel %vm824, %v2997, %v2999
      %v3001 = vrot.slane %v2098, 2
      %v3002 = vsel %vm824, %v2999, %v3001
      %v3003 = vrot.slane %v2102, 2
      %v3004 = vsel %vm824, %v3001, %v3003
      %v3005 = vrot.slane %v2108, 2
      %v3006 = vsel %vm824, %v3003, %v3005
      %v3007 = vrot.slane %v2112, 2
      %v3008 = vsel %vm824, %v3005, %v3007
      %v3009 = vrot.slane %v2118, 2
      %v3010 = vsel %vm824, %v3007, %v3009
      %v3011 = vrot.slane %v2122, 2
      %v3012 = vsel %vm824, %v3009, %v3011
      %v3013 = vrot.slane %v2128, 2
      %v3014 = vsel %vm824, %v3011, %v3013
      %v3015 = vrot.slane %v2132, 2
      %v3016 = vsel %vm824, %v3013, %v3015
      %v3017 = vrot.slane %v2138, 2
      %v3018 = vsel %vm824, %v3015, %v3017
      %v3019 = vrot.slane %v2142, 2
      %v3020 = vsel %vm824, %v3017, %v3019
      %v3045 = vadd.f32 %v2926, %v2976
      %v3046 = vadd.f32 %v2927, %v2978
      %v3047 = vadd.f32 %v2928, %v2980
      %v3048 = vadd.f32 %v2929, %v2982
      %v3049 = vadd.f32 %v2930, %v2984
      %v3050 = vadd.f32 %v2931, %v2986
      %v3051 = vadd.f32 %v2932, %v2988
      %v3052 = vadd.f32 %v2933, %v2990
      %v3053 = vadd.f32 %v2934, %v2992
      %v3054 = vadd.f32 %v2935, %v2994
      %v3055 = vadd.f32 %v2936, %v2996
      %v3056 = vadd.f32 %v2937, %v2998
      %v3057 = vadd.f32 %v2938, %v3000
      %v3058 = vadd.f32 %v2939, %v3002
      %v3059 = vadd.f32 %v2940, %v3004
      %v3060 = vadd.f32 %v2941, %v3006
      %v3061 = vadd.f32 %v2942, %v3008
      %v3062 = vadd.f32 %v2943, %v3010
      %v3063 = vadd.f32 %v2944, %v3012
      %v3064 = vadd.f32 %v2945, %v3014
      %v3065 = vadd.f32 %v2946, %v3016
      %v3066 = vadd.f32 %v2947, %v3018
      %v3067 = vadd.f32 %v2948, %v3020
      %v3068 = vadd.f32 %v2949, %v3019
      %3069 = vst.msk [vmem:[#allocation3] sm:$0xff] %vm1889, %v3045
      %3070 = vst.msk [vmem:[#allocation3 + $0x8] sm:$0xff] %vm1889, %v3046
      %3071 = vst.msk [vmem:[#allocation3 + $0x10] sm:$0xff] %vm1889, %v3047
      %3072 = vst.msk [vmem:[#allocation3 + $0x18] sm:$0xff] %vm1889, %v3048
      %3073 = vst.msk [vmem:[#allocation3 + $0x20] sm:$0xff] %vm1889, %v3049
      %3074 = vst.msk [vmem:[#allocation3 + $0x28] sm:$0xff] %vm1889, %v3050
      %3075 = vst.msk [vmem:[#allocation3 + $0x30] sm:$0xff] %vm1889, %v3051
      %3076 = vst.msk [vmem:[#allocation3 + $0x38] sm:$0xff] %vm1889, %v3052
      %3077 = vst.msk [vmem:[#allocation3 + $0x40] sm:$0xff] %vm1889, %v3053
      %3078 = vst.msk [vmem:[#allocation3 + $0x48] sm:$0xff] %vm1889, %v3054
      %3079 = vst.msk [vmem:[#allocation3 + $0x50] sm:$0xff] %vm1889, %v3055
      %3080 = vst.msk [vmem:[#allocation3 + $0x58] sm:$0xff] %vm1889, %v3056
      %3081 = vst.msk [vmem:[#allocation3 + $0x60] sm:$0xff] %vm1889, %v3057
      %3082 = vst.msk [vmem:[#allocation3 + $0x68] sm:$0xff] %vm1889, %v3058
      %3083 = vst.msk [vmem:[#allocation3 + $0x70] sm:$0xff] %vm1889, %v3059
      %3084 = vst.msk [vmem:[#allocation3 + $0x78] sm:$0xff] %vm1889, %v3060
      %3085 = vst.msk [vmem:[#allocation3 + $0x80] sm:$0xff] %vm1889, %v3061
      %3086 = vst.msk [vmem:[#allocation3 + $0x88] sm:$0xff] %vm1889, %v3062
      %3087 = vst.msk [vmem:[#allocation3 + $0x90] sm:$0xff] %vm1889, %v3063
      %3088 = vst.msk [vmem:[#allocation3 + $0x98] sm:$0xff] %vm1889, %v3064
      %3089 = vst.msk [vmem:[#allocation3 + $0xa0] sm:$0xff] %vm1889, %v3065
      %3090 = vst.msk [vmem:[#allocation3 + $0xa8] sm:$0xff] %vm1889, %v3066
      %3091 = vst.msk [vmem:[#allocation3 + $0xb0] sm:$0xff] %vm1889, %v3067
      %vm3092 = vcmask 125952
      %3093 = vst.msk [vmem:[#allocation3 + $0xb8] sm:$0xf] %vm3092, %v3068
      %v3094 = vld [vmem:[%s4] sm:$0x1]
      %v3096 = vlaneseq
      %v3097 = vshrl.u32 %v3096, 7
      %v3098 = vsub.s32 0, %v3097
      %v3099 = vrot.slane %v3094, %v3098
      %v3101 = vld [vmem:[#allocation3] ss:$2 sm:$0x3f]
      %s3102 = sadd.s32 0, 1
      %s3103 = scalar_lea.vmem [#allocation3], %s3102
      %v3104 = vld [vmem:[%s3103] ss:$2 sm:$0x3f]
      %s3105 = sadd.s32 0, 16
      %s3106 = scalar_lea.vmem [#allocation3], %s3105
      %v3107 = vld [vmem:[%s3106] ss:$2 sm:$0x3f]
      %s3108 = sadd.s32 0, 17
      %s3109 = scalar_lea.vmem [#allocation3], %s3108
      %v3110 = vld [vmem:[%s3109] ss:$2 sm:$0x3f]
      %v3111 = vmax.f32 %v3101, %v3104
      %v3112 = vmax.f32 %v3107, %v3110
      %v3113 = vmax.f32 %v3111, %v3112
      %v3114 = vadd.f32 %v3113, %v3099
      %vm3115 = vcmp.gt.f32.partialorder %v3114, 0.0
      %v3116 = vmin.f32 %v3114, 0.0
      %v3117 = vmul.f32 %v3116, 1.442695
      %v3118 = vpow.pop %v3117
      %v3119 = vsub.f32 %v3118, 1.0
      %v3120 = vsel %vm3115, %v3114, %v3119
      %vm3121 = vcmask 128000
      %3122 = vst.msk [vmem:[%s224] sm:$0x3f] %vm3121, %v3120
      %s3123 = scalar_lea.vmem [#allocation3], 32
      %v3124 = vld [vmem:[%s3123] ss:$2 sm:$0x3f]
      %s3125 = sadd.s32 32, 1
      %s3126 = scalar_lea.vmem [#allocation3], %s3125
      %v3127 = vld [vmem:[%s3126] ss:$2 sm:$0x3f]
      %s3128 = sadd.s32 32, 16
      %s3129 = scalar_lea.vmem [#allocation3], %s3128
      %v3130 = vld [vmem:[%s3129] ss:$2 sm:$0x3f]
      %s3131 = sadd.s32 32, 17
      %s3132 = scalar_lea.vmem [#allocation3], %s3131
      %v3133 = vld [vmem:[%s3132] ss:$2 sm:$0x3f]
      %v3134 = vmax.f32 %v3124, %v3127
      %v3135 = vmax.f32 %v3130, %v3133
      %v3136 = vmax.f32 %v3134, %v3135
      %v3137 = vadd.f32 %v3136, %v3099
      %vm3138 = vcmp.gt.f32.partialorder %v3137, 0.0
      %v3139 = vmin.f32 %v3137, 0.0
      %v3140 = vmul.f32 %v3139, 1.442695
      %v3141 = vpow.pop %v3140
      %v3142 = vsub.f32 %v3141, 1.0
      %v3143 = vsel %vm3138, %v3137, %v3142
      %s3144 = scalar_lea.vmem %s224, 8
      %3145 = vst.msk [vmem:[%s3144] sm:$0x3f] %vm3121, %v3143
      %s3146 = scalar_lea.vmem [#allocation3], 64
      %v3147 = vld [vmem:[%s3146] ss:$2 sm:$0x3f]
      %s3148 = sadd.s32 64, 1
      %s3149 = scalar_lea.vmem [#allocation3], %s3148
      %v3150 = vld [vmem:[%s3149] ss:$2 sm:$0x3f]
      %s3151 = sadd.s32 64, 16
      %s3152 = scalar_lea.vmem [#allocation3], %s3151
      %v3153 = vld [vmem:[%s3152] ss:$2 sm:$0x3f]
      %s3154 = sadd.s32 64, 17
      %s3155 = scalar_lea.vmem [#allocation3], %s3154
      %v3156 = vld [vmem:[%s3155] ss:$2 sm:$0x3f]
      %v3157 = vmax.f32 %v3147, %v3150
      %v3158 = vmax.f32 %v3153, %v3156
      %v3159 = vmax.f32 %v3157, %v3158
      %v3160 = vadd.f32 %v3159, %v3099
      %vm3161 = vcmp.gt.f32.partialorder %v3160, 0.0
      %v3162 = vmin.f32 %v3160, 0.0
      %v3163 = vmul.f32 %v3162, 1.442695
      %v3164 = vpow.pop %v3163
      %v3165 = vsub.f32 %v3164, 1.0
      %v3166 = vsel %vm3161, %v3160, %v3165
      %s3167 = scalar_lea.vmem %s224, 16
      %3168 = vst.msk [vmem:[%s3167] sm:$0x3f] %vm3121, %v3166
      %s3169 = scalar_lea.vmem [#allocation3], 96
      %v3170 = vld [vmem:[%s3169] ss:$2 sm:$0x3f]
      %s3171 = sadd.s32 96, 1
      %s3172 = scalar_lea.vmem [#allocation3], %s3171
      %v3173 = vld [vmem:[%s3172] ss:$2 sm:$0x3f]
      %s3174 = sadd.s32 96, 16
      %s3175 = scalar_lea.vmem [#allocation3], %s3174
      %v3176 = vld [vmem:[%s3175] ss:$2 sm:$0x3f]
      %s3177 = sadd.s32 96, 17
      %s3178 = scalar_lea.vmem [#allocation3], %s3177
      %v3179 = vld [vmem:[%s3178] ss:$2 sm:$0x3f]
      %v3180 = vmax.f32 %v3170, %v3173
      %v3181 = vmax.f32 %v3176, %v3179
      %v3182 = vmax.f32 %v3180, %v3181
      %v3183 = vadd.f32 %v3182, %v3099
      %vm3184 = vcmp.gt.f32.partialorder %v3183, 0.0
      %v3185 = vmin.f32 %v3183, 0.0
      %v3186 = vmul.f32 %v3185, 1.442695
      %v3187 = vpow.pop %v3186
      %v3188 = vsub.f32 %v3187, 1.0
      %v3189 = vsel %vm3184, %v3183, %v3188
      %s3190 = scalar_lea.vmem %s224, 24
      %3191 = vst.msk [vmem:[%s3190] sm:$0x3f] %vm3121, %v3189
      %s3192 = scalar_lea.vmem [#allocation3], 128
      %v3193 = vld [vmem:[%s3192] ss:$2 sm:$0x3f]
      %s3194 = sadd.s32 128, 1
      %s3195 = scalar_lea.vmem [#allocation3], %s3194
      %v3196 = vld [vmem:[%s3195] ss:$2 sm:$0x3f]
      %s3197 = sadd.s32 128, 16
      %s3198 = scalar_lea.vmem [#allocation3], %s3197
      %v3199 = vld [vmem:[%s3198] ss:$2 sm:$0x3f]
      %s3200 = sadd.s32 128, 17
      %s3201 = scalar_lea.vmem [#allocation3], %s3200
      %v3202 = vld [vmem:[%s3201] ss:$2 sm:$0x3f]
      %v3203 = vmax.f32 %v3193, %v3196
      %v3204 = vmax.f32 %v3199, %v3202
      %v3205 = vmax.f32 %v3203, %v3204
      %v3206 = vadd.f32 %v3205, %v3099
      %vm3207 = vcmp.gt.f32.partialorder %v3206, 0.0
      %v3208 = vmin.f32 %v3206, 0.0
      %v3209 = vmul.f32 %v3208, 1.442695
      %v3210 = vpow.pop %v3209
      %v3211 = vsub.f32 %v3210, 1.0
      %v3212 = vsel %vm3207, %v3206, %v3211
      %s3213 = scalar_lea.vmem %s224, 32
      %3214 = vst.msk [vmem:[%s3213] sm:$0x3f] %vm3121, %v3212
      %s3215 = scalar_lea.vmem [#allocation3], 160
      %v3216 = vld [vmem:[%s3215] ss:$2 sm:$0x3f]
      %s3217 = sadd.s32 160, 1
      %s3218 = scalar_lea.vmem [#allocation3], %s3217
      %v3219 = vld [vmem:[%s3218] ss:$2 sm:$0x3f]
      %s3220 = sadd.s32 160, 16
      %s3221 = scalar_lea.vmem [#allocation3], %s3220
      %v3222 = vld [vmem:[%s3221] ss:$2 sm:$0x3f]
      %s3223 = sadd.s32 160, 17
      %s3224 = scalar_lea.vmem [#allocation3], %s3223
      %v3225 = vld [vmem:[%s3224] ss:$2 sm:$0x3f]
      %v3226 = vmax.f32 %v3216, %v3219
      %v3227 = vmax.f32 %v3222, %v3225
      %v3228 = vmax.f32 %v3226, %v3227
      %v3229 = vadd.f32 %v3228, %v3099
      %vm3230 = vcmp.gt.f32.partialorder %v3229, 0.0
      %v3231 = vmin.f32 %v3229, 0.0
      %v3232 = vmul.f32 %v3231, 1.442695
      %v3233 = vpow.pop %v3232
      %v3234 = vsub.f32 %v3233, 1.0
      %v3235 = vsel %vm3230, %v3229, %v3234
      %s3236 = scalar_lea.vmem %s224, 40
      %3237 = vst.msk [vmem:[%s3236] sm:$0x3f] %vm3121, %v3235
      %p3238 = scmp.lt.s32.totalorder %s16, 1
      %s3239 = scalar_select %p3238, %s16, 1
      %s3240 = smul.addr %s3239, 6
      %s3241 = smul.addr %s3240, 8
      %s3242 = scalar_lea.vmem %s5, %s3241
      // Predicated region
      $region41: #{down_module_forward.1} parent=39 // pred_check
        %p3243 = pneg %p144
      $region42: #{down_module_forward.1} parent=39 // pred_check_branch
        %3245 = sbr.rel (%p3243) target = $region44
      $region43: #{down_module_forward.1} parent=39 // pred_region
        _
      $region44: #{down_module_forward.1} parent=39 // pred_fallthru
        _
    $region40: #{down_module_forward.1} parent=5 // pred_fallthru
      _
    %p3246 = scmp.le.s32.totalorder 2, %s11
    // Predicated region
    $region45: #{down_module_forward.1} parent=5 // pred_check
      %p3247 = pneg %p3246
    $region46: #{down_module_forward.1} parent=5 // pred_check_branch
      %3249 = sbr.rel (%p3247) target = $region48
    $region47: #{down_module_forward.1} parent=5 // pred_region
      %s3250 = ssub.s32 %s11, 2
      // Predicated region
      $region49: #{down_module_forward.1} parent=47 // pred_check
        %p3251 = pneg %p150
      $region50: #{down_module_forward.1} parent=47 // pred_check_branch
        %3253 = sbr.rel (%p3251) target = $region52
      $region51: #{down_module_forward.1} parent=47 // pred_region
        %p3254 = scmp.lt.s32.totalorder %s17, 1
        %s3255 = scalar_select %p3254, %s17, 1
        %s3256 = smul.addr %s3255, 6
        %s3257 = smul.addr %s3256, 8
        %s3258 = scalar_lea.vmem %s5, %s3257
      $region52: #{down_module_forward.1} parent=47 // pred_fallthru
        _
    $region48: #{down_module_forward.1} parent=5 // pred_fallthru
      _
  $region6: #{down_module_forward.1} parent=0 // loop_footer
    %s15 = sadd.s32 1, %s11
  $region7: #{down_module_forward.1} parent=0 // loop_footer_branch
    %10 = sbr.rel target = $region3
  $region8: #{down_module_forward.1} parent=0 // loop_exit
    _

</llo_original>
